<compile_context>
chip_gen: v6e
topology: v6e:2x2x1
jax: 0.10.0
libtpu: 0.0.40
codegen_flags: <defaults>
</compile_context>

<pallas_src>
import jax
import jax.numpy as jnp
from jax.experimental import pallas as pl
from jax.experimental.pallas import tpu as pltpu

# ----------------------- small ViT config -----------------------------------
B = 2                      # batch
C = 3                      # input channels
IMG = 32                   # image side
PATCH = 16                 # patch side (as in ViT-B/16)
N_PATCH = (IMG // PATCH) ** 2          # 4 patches
PATCH_DIM = C * PATCH * PATCH          # 768 values per patch
D = 32                     # embed dim (scaled down from 768)
HEADS = 4                  # attention heads
DH = D // HEADS            # head dim
DEPTH = 2                  # transformer blocks (scaled from 12)
MLP = 4 * D                # MLP hidden dim
S = N_PATCH + 1            # sequence length = cls + patches
EPS = 1e-6                 # timm ViT LayerNorm eps

BBLK = 2                   # batch elements folded into one grid step
BS = BBLK * S              # flattened token rows per grid step
HS = HEADS * S             # head-block-diagonal rows / score columns

# row offsets inside the packed per-layer weight slab (contraction dim last,
# i.e. transposed, except fc2 which is already (MLP, D))
W_QKV0, W_QKV1 = 0, 3 * D
W_PROJ0, W_PROJ1 = W_QKV1, W_QKV1 + D
W_FC10, W_FC11 = W_PROJ1, W_PROJ1 + MLP
W_FC20, W_FC21 = W_FC11, W_FC11 + MLP
W_ROWS = W_FC21


def _layernorm(x, g, b):
    mu = jnp.mean(x, axis=-1, keepdims=True)
    var = jnp.mean((x - mu) ** 2, axis=-1, keepdims=True)
    return (x - mu) * jax.lax.rsqrt(var + EPS) * g + b


def _gelu(x):
    # TODO(synk): timm ViT uses exact erf-GELU (nn.GELU); tanh approximation used here.
    return jax.nn.gelu(x, approximate=True)


def _group_ids(shape, dim, group):
    """Head-group id of each index along `dim` (groups of size `group`).
    Built from iota + compares only (no integer division in-kernel)."""
    idx = jax.lax.broadcasted_iota(jnp.int32, shape, dim)
    gid = (idx >= group).astype(jnp.int32)
    for h in range(2, HEADS):
        gid = gid + (idx >= h * group).astype(jnp.int32)
    return gid


# ----------------------------- Pallas kernel --------------------------------
def encoder_vit_kernel(patches_ref, pe_w_ref, const_ref, w_ref, ln_ref, wb_ref,
                       out_ref, ao_sc):
    f32, bf16 = jnp.float32, jnp.bfloat16

    # patch embed over all BBLK*S rows at once (row b*S is a zero "patch"
    # standing in for the cls slot; cls/pos/pe_b come from the const slab)
    x = jnp.dot(patches_ref[...].astype(bf16), pe_w_ref[...],
                preferred_element_type=f32)
    x = x + const_ref[0:BS, :]                                        # (BS, D)

    # head-block masks: built once (hoisted), reused for every layer & image
    head_mask = (_group_ids((HS, D), 0, S) ==
                 _group_ids((HS, D), 1, DH)).astype(f32)              # (HS, D)
    seg_sum = (_group_ids((HS, HS), 0, S) ==
               _group_ids((HS, HS), 1, S)).astype(f32)                # (HS, HS)

    # TODO(synk): at real ViT-B depth, put layers on a grid axis / fori_loop and
    # stream per-layer weights instead of this static unroll (VMEM / live-range guard).
    for l in range(DEPTH):
        w_l = w_ref[l]                                                # (W_ROWS, D) bf16
        ln_l = ln_ref[l]                                              # (6, D) f32
        wb_l = wb_ref[l]                                              # (2, MLP) f32
        ln1_g, ln1_b = ln_l[0:1], ln_l[1:2]
        ln2_g, ln2_b = ln_l[2:3], ln_l[3:4]
        proj_b, fc2_b = ln_l[4:5], ln_l[5:6]
        qkv_b = wb_l[0:1, 0:3 * D]
        fc1_b = wb_l[1:2, :]

        # ---------------- multi-head self-attention ----------------
        xn = _layernorm(x, ln1_g, ln1_b).astype(bf16)
        qkv = jax.lax.dot_general(xn, w_l[W_QKV0:W_QKV1],
                                  (((1,), (1,)), ((), ())),
                                  preferred_element_type=f32) + qkv_b  # (BS, 3D)
        q, k, v = qkv[:, :D], qkv[:, D:2 * D], qkv[:, 2 * D:]

        for b in range(BBLK):            # softmax stays per image
            rows = slice(b * S, (b + 1) * S)
            qb = q[rows].astype(bf16)    # (S, D); DH**-0.5 already folded into W
            kbd = (jnp.concatenate([k[rows]] * HEADS, axis=0)
                   * head_mask).astype(bf16)                           # (HS, D)
            vbd = (jnp.concatenate([v[rows]] * HEADS, axis=0)
                   * head_mask).astype(bf16)
            # all-head scores in one MXU op; columns grouped head-major
            s = jax.lax.dot_general(qb, kbd, (((1,), (1,)), ((), ())),
                                    preferred_element_type=f32)        # (S, HS)
            s = s - jnp.max(s, axis=-1, keepdims=True)
            e = jnp.exp(s)
            denom = jnp.dot(e, seg_sum, preferred_element_type=f32)    # per-head sums
            p = e * pl.reciprocal(denom, approx=True)
            # context for all heads, already lane-concatenated -> scratch
            ao_sc[rows, :] = jnp.dot(p.astype(bf16), vbd,
                                     preferred_element_type=f32)

        ao = ao_sc[...].astype(bf16)
        x = x + jax.lax.dot_general(ao, w_l[W_PROJ0:W_PROJ1],
                                    (((1,), (1,)), ((), ())),
                                    preferred_element_type=f32) + proj_b

        # --------------------------- MLP ----------------------------
        xn2 = _layernorm(x, ln2_g, ln2_b).astype(bf16)
        h1 = jax.lax.dot_general(xn2, w_l[W_FC10:W_FC11],
                                 (((1,), (1,)), ((), ())),
                                 preferred_element_type=f32) + fc1_b   # (BS, MLP)
        h1 = _gelu(h1).astype(bf16)
        x = x + jnp.dot(h1, w_l[W_FC20:W_FC21],
                        preferred_element_type=f32) + fc2_b

    # final encoder LayerNorm
    out_ref[...] = _layernorm(x, const_ref[BS:BS + 1, :],
                              const_ref[BS + 1:BS + 2, :])


# ------------------------------- wrapper -------------------------------------
def _pack_params(params):
    f32, bf16 = jnp.float32, jnp.bfloat16
    scale = DH ** -0.5

    # additive slab: row 0 of each image = cls + pos[0]; rows 1..S-1 = pe_b + pos[i]
    add_s = jnp.concatenate([params['cls'] + params['pos'][0:1],
                             params['pos'][1:] + params['pe_b']], axis=0)     # (S, D)
    const = jnp.concatenate([jnp.tile(add_s, (BBLK, 1)),
                             params['norm_g'], params['norm_b']],
                            axis=0).astype(f32)                               # (BS+2, D)

    # per-layer weight slab (contraction dim last); attention scale folded into q rows
    qkv_wT = jnp.swapaxes(params['qkv_w'], 1, 2)                              # (DEPTH, 3D, D)
    wq = (qkv_wT[:, :D, :].astype(f32) * scale).astype(bf16)
    w_slab = jnp.concatenate([
        wq, qkv_wT[:, D:, :],
        jnp.swapaxes(params['proj_w'], 1, 2),
        jnp.swapaxes(params['fc1_w'], 1, 2),
        params['fc2_w'],
    ], axis=1).astype(bf16)                                                   # (DEPTH, W_ROWS, D)

    ln_slab = jnp.concatenate([params['ln1_g'], params['ln1_b'],
                               params['ln2_g'], params['ln2_b'],
                               params['proj_b'], params['fc2_b']],
                              axis=1).astype(f32)                             # (DEPTH, 6, D)

    qkv_b = jnp.concatenate([params['qkv_b'][:, :, :D] * scale,
                             params['qkv_b'][:, :, D:]], axis=2)
    qkv_b = jnp.pad(qkv_b, ((0, 0), (0, 0), (0, MLP - 3 * D)))
    wide_b = jnp.concatenate([qkv_b, params['fc1_b']], axis=1).astype(f32)    # (DEPTH, 2, MLP)

    return const, w_slab, ln_slab, wide_b


def encoder_vit_forward(x_nchw, params):
    Bn = x_nchw.shape[0]
    assert Bn % BBLK == 0
    # patchify (glue): NCHW -> (B, N_patches, C*P*P), flatten order (c, ph, pw)
    # matching Conv2d weight.reshape(D, C*P*P); prepend one zero "patch" row per
    # image for the cls slot so the kernel never concatenates along sublanes.
    p = x_nchw.reshape(Bn, C, IMG // PATCH, PATCH, IMG // PATCH, PATCH)
    p = p.transpose(0, 2, 4, 1, 3, 5).reshape(Bn, N_PATCH, PATCH_DIM)
    p = jnp.pad(p, ((0, 0), (1, 0), (0, 0))).reshape(Bn * S, PATCH_DIM)

    const, w_slab, ln_slab, wide_b = _pack_params(params)

    out = pl.pallas_call(
        encoder_vit_kernel,
        out_shape=jax.ShapeDtypeStruct((Bn * S, D), jnp.float32),
        grid_spec=pltpu.PrefetchScalarGridSpec(
            num_scalar_prefetch=0,
            grid=(Bn // BBLK,),
            in_specs=[
                pl.BlockSpec((BS, PATCH_DIM), lambda i: (i, 0)),
                pl.BlockSpec((PATCH_DIM, D), lambda i: (0, 0)),
                pl.BlockSpec((BS + 2, D), lambda i: (0, 0)),
                pl.BlockSpec((DEPTH, W_ROWS, D), lambda i: (0, 0, 0)),
                pl.BlockSpec((DEPTH, 6, D), lambda i: (0, 0, 0)),
                pl.BlockSpec((DEPTH, 2, MLP), lambda i: (0, 0, 0)),
            ],
            out_specs=pl.BlockSpec((BS, D), lambda i: (i, 0)),
            scratch_shapes=[pltpu.VMEM((BS, D), jnp.float32)],
        ),
        compiler_params=pltpu.CompilerParams(
            dimension_semantics=("parallel",)),   # independent batch blocks (v7x megacore)
    )(p, params['pe_w'], const, w_slab, ln_slab, wide_b)

    return out.reshape(Bn, S, D)


# -------------------------- deterministic params -----------------------------
def init_params(key):
    keys = jax.random.split(key, 8)
    bf16 = jnp.bfloat16

    def nrm(k, shape, scale=0.02):
        return (scale * jax.random.normal(k, shape)).astype(jnp.float32)

    return dict(
        pe_w=nrm(keys[0], (PATCH_DIM, D)).astype(bf16),
        pe_b=jnp.zeros((1, D), jnp.float32),
        cls=nrm(keys[1], (1, D)),
        pos=nrm(keys[2], (S, D)),
        ln1_g=jnp.ones((DEPTH, 1, D), jnp.float32),
        ln1_b=jnp.zeros((DEPTH, 1, D), jnp.float32),
        qkv_w=nrm(keys[3], (DEPTH, D, 3 * D)).astype(bf16),
        qkv_b=jnp.zeros((DEPTH, 1, 3 * D), jnp.float32),
        proj_w=nrm(keys[4], (DEPTH, D, D)).astype(bf16),
        proj_b=jnp.zeros((DEPTH, 1, D), jnp.float32),
        ln2_g=jnp.ones((DEPTH, 1, D), jnp.float32),
        ln2_b=jnp.zeros((DEPTH, 1, D), jnp.float32),
        fc1_w=nrm(keys[5], (DEPTH, D, MLP)).astype(bf16),
        fc1_b=jnp.zeros((DEPTH, 1, MLP), jnp.float32),
        fc2_w=nrm(keys[6], (DEPTH, MLP, D)).astype(bf16),
        fc2_b=jnp.zeros((DEPTH, 1, D), jnp.float32),
        norm_g=jnp.ones((1, D), jnp.float32),
        norm_b=jnp.zeros((1, D), jnp.float32),
    )


# ----------------------------- pure-JAX reference ----------------------------
def reference_forward(x_nchw, params):
    Bn = x_nchw.shape[0]
    p = x_nchw.reshape(Bn, C, IMG // PATCH, PATCH, IMG // PATCH, PATCH)
    p = p.transpose(0, 2, 4, 1, 3, 5).reshape(Bn, N_PATCH, PATCH_DIM)
    tok = p @ params['pe_w'] + params['pe_b']
    cls = jnp.broadcast_to(params['cls'][None], (Bn, 1, D))
    x = jnp.concatenate([cls, tok], axis=1) + params['pos'][None]
    for l in range(DEPTH):
        xn = _layernorm(x, params['ln1_g'][l], params['ln1_b'][l])
        qkv = xn @ params['qkv_w'][l] + params['qkv_b'][l]
        q, k, v = qkv[..., :D], qkv[..., D:2 * D], qkv[..., 2 * D:]
        q = q.reshape(Bn, S, HEADS, DH).transpose(0, 2, 1, 3) * (DH ** -0.5)
        k = k.reshape(Bn, S, HEADS, DH).transpose(0, 2, 1, 3)
        v = v.reshape(Bn, S, HEADS, DH).transpose(0, 2, 1, 3)
        att = jax.nn.softmax(q @ k.transpose(0, 1, 3, 2), axis=-1)
        ao = (att @ v).transpose(0, 2, 1, 3).reshape(Bn, S, D)
        x = x + ao @ params['proj_w'][l] + params['proj_b'][l]
        xn2 = _layernorm(x, params['ln2_g'][l], params['ln2_b'][l])
        h1 = _gelu(xn2 @ params['fc1_w'][l] + params['fc1_b'][l])
        x = x + h1 @ params['fc2_w'][l] + params['fc2_b'][l]
    return _layernorm(x, params['norm_g'], params['norm_b'])


if __name__ == "__main__":
    key = jax.random.PRNGKey(0)
    kx, kp = jax.random.split(key)
    x = jax.random.normal(kx, (B, C, IMG, IMG), dtype=jnp.float32)
    params = init_params(kp)

    out = encoder_vit_forward(x, params)
    out = jax.block_until_ready(out)

    ref = reference_forward(x, params)
    assert out.shape == (B, S, D), out.shape
    # bf16 matmul operands + approx reciprocal in the kernel vs f32 reference
    assert jnp.allclose(out, ref, atol=3e-2, rtol=3e-2), (
        float(jnp.max(jnp.abs(out - ref))))
    print("KERNEL_OK")
</pallas_src>

<mosaic_0001>
module attributes {stable_mosaic.version = 11 : i64} {
  func.func @encoder_vit_kernel(%arg0: i32, %arg1: memref<10x768xf32, #tpu.memory_space<vmem>>, %arg2: memref<768x32xbf16, #tpu.memory_space<vmem>>, %arg3: memref<12x32xf32, #tpu.memory_space<vmem>>, %arg4: memref<2x384x32xbf16, #tpu.memory_space<vmem>>, %arg5: memref<2x6x32xf32, #tpu.memory_space<vmem>>, %arg6: memref<2x2x128xf32, #tpu.memory_space<vmem>>, %arg7: memref<10x32xf32, #tpu.memory_space<vmem>>, %arg8: memref<10x32xf32, #tpu.memory_space<vmem>>) attributes {dimension_semantics = [#tpu.dimension_semantics<parallel>], iteration_bounds = array<i64: 1>, scalar_prefetch = 0 : i64, scratch_operands = 1 : i64, tpu.core_type = #tpu.core_type<tc>, window_params = [{transform_indices = @transform_0, window_bounds = array<i64: 10, 768>}, {pipeline_mode = #tpu.pipeline_mode<synchronous>, transform_indices = @transform_1, window_bounds = array<i64: 768, 32>}, {pipeline_mode = #tpu.pipeline_mode<synchronous>, transform_indices = @transform_2, window_bounds = array<i64: 12, 32>}, {pipeline_mode = #tpu.pipeline_mode<synchronous>, transform_indices = @transform_3, window_bounds = array<i64: 2, 384, 32>}, {pipeline_mode = #tpu.pipeline_mode<synchronous>, transform_indices = @transform_4, window_bounds = array<i64: 2, 6, 32>}, {pipeline_mode = #tpu.pipeline_mode<synchronous>, transform_indices = @transform_5, window_bounds = array<i64: 2, 2, 128>}, {transform_indices = @transform_6, window_bounds = array<i64: 10, 32>}]} {
    %c0 = arith.constant 0 : index
    %c0_0 = arith.constant 0 : index
    %0 = vector.load %arg1[%c0, %c0_0] : memref<10x768xf32, #tpu.memory_space<vmem>>, vector<10x768xf32>
    %1 = arith.truncf %0 : vector<10x768xf32> to vector<10x768xbf16>
    %c0_1 = arith.constant 0 : index
    %c0_2 = arith.constant 0 : index
    %2 = vector.load %arg2[%c0_1, %c0_2] : memref<768x32xbf16, #tpu.memory_space<vmem>>, vector<768x32xbf16>
    %cst = arith.constant dense<0.000000e+00> : vector<10x32xf32>
    %3 = tpu.matmul %1, %2, %cst {dimension_numbers = #tpu.dot_dimension_numbers<[1], [0], [0], [1], [0, 0, 1, 1], [], []>} : vector<10x768xbf16>, vector<768x32xbf16>, vector<10x32xf32> -> vector<10x32xf32>
    %c0_3 = arith.constant 0 : index
    %c0_4 = arith.constant 0 : index
    %4 = vector.load %arg3[%c0_3, %c0_4] : memref<12x32xf32, #tpu.memory_space<vmem>>, vector<10x32xf32>
    %5 = arith.addf %3, %4 : vector<10x32xf32>
    %6 = tpu.iota {dimensions = array<i32: 0>} : vector<20x32xi32>
    %c5_i32 = arith.constant 5 : i32
    %7 = vector.broadcast %c5_i32 : i32 to vector<20x32xi32>
    %8 = arith.cmpi sge, %6, %7 : vector<20x32xi32>
    %9 = arith.extui %8 : vector<20x32xi1> to vector<20x32xi32>
    %c10_i32 = arith.constant 10 : i32
    %10 = vector.broadcast %c10_i32 : i32 to vector<20x32xi32>
    %11 = arith.cmpi sge, %6, %10 : vector<20x32xi32>
    %12 = arith.extui %11 : vector<20x32xi1> to vector<20x32xi32>
    %13 = arith.addi %9, %12 : vector<20x32xi32>
    %c15_i32 = arith.constant 15 : i32
    %14 = vector.broadcast %c15_i32 : i32 to vector<20x32xi32>
    %15 = arith.cmpi sge, %6, %14 : vector<20x32xi32>
    %16 = arith.extui %15 : vector<20x32xi1> to vector<20x32xi32>
    %17 = arith.addi %13, %16 : vector<20x32xi32>
    %18 = tpu.iota {dimensions = array<i32: 1>} : vector<20x32xi32>
    %c8_i32 = arith.constant 8 : i32
    %19 = vector.broadcast %c8_i32 : i32 to vector<20x32xi32>
    %20 = arith.cmpi sge, %18, %19 : vector<20x32xi32>
    %21 = arith.extui %20 : vector<20x32xi1> to vector<20x32xi32>
    %c16_i32 = arith.constant 16 : i32
    %22 = vector.broadcast %c16_i32 : i32 to vector<20x32xi32>
    %23 = arith.cmpi sge, %18, %22 : vector<20x32xi32>
    %24 = arith.extui %23 : vector<20x32xi1> to vector<20x32xi32>
    %25 = arith.addi %21, %24 : vector<20x32xi32>
    %c24_i32 = arith.constant 24 : i32
    %26 = vector.broadcast %c24_i32 : i32 to vector<20x32xi32>
    %27 = arith.cmpi sge, %18, %26 : vector<20x32xi32>
    %28 = arith.extui %27 : vector<20x32xi1> to vector<20x32xi32>
    %29 = arith.addi %25, %28 : vector<20x32xi32>
    %30 = arith.cmpi eq, %17, %29 : vector<20x32xi32>
    %31 = arith.extui %30 : vector<20x32xi1> to vector<20x32xi32>
    %32 = arith.sitofp %31 : vector<20x32xi32> to vector<20x32xf32>
    %33 = tpu.iota {dimensions = array<i32: 0>} : vector<20x20xi32>
    %c5_i32_5 = arith.constant 5 : i32
    %34 = vector.broadcast %c5_i32_5 : i32 to vector<20x20xi32>
    %35 = arith.cmpi sge, %33, %34 : vector<20x20xi32>
    %36 = arith.extui %35 : vector<20x20xi1> to vector<20x20xi32>
    %c10_i32_6 = arith.constant 10 : i32
    %37 = vector.broadcast %c10_i32_6 : i32 to vector<20x20xi32>
    %38 = arith.cmpi sge, %33, %37 : vector<20x20xi32>
    %39 = arith.extui %38 : vector<20x20xi1> to vector<20x20xi32>
    %40 = arith.addi %36, %39 : vector<20x20xi32>
    %c15_i32_7 = arith.constant 15 : i32
    %41 = vector.broadcast %c15_i32_7 : i32 to vector<20x20xi32>
    %42 = arith.cmpi sge, %33, %41 : vector<20x20xi32>
    %43 = arith.extui %42 : vector<20x20xi1> to vector<20x20xi32>
    %44 = arith.addi %40, %43 : vector<20x20xi32>
    %45 = tpu.iota {dimensions = array<i32: 1>} : vector<20x20xi32>
    %c5_i32_8 = arith.constant 5 : i32
    %46 = vector.broadcast %c5_i32_8 : i32 to vector<20x20xi32>
    %47 = arith.cmpi sge, %45, %46 : vector<20x20xi32>
    %48 = arith.extui %47 : vector<20x20xi1> to vector<20x20xi32>
    %c10_i32_9 = arith.constant 10 : i32
    %49 = vector.broadcast %c10_i32_9 : i32 to vector<20x20xi32>
    %50 = arith.cmpi sge, %45, %49 : vector<20x20xi32>
    %51 = arith.extui %50 : vector<20x20xi1> to vector<20x20xi32>
    %52 = arith.addi %48, %51 : vector<20x20xi32>
    %c15_i32_10 = arith.constant 15 : i32
    %53 = vector.broadcast %c15_i32_10 : i32 to vector<20x20xi32>
    %54 = arith.cmpi sge, %45, %53 : vector<20x20xi32>
    %55 = arith.extui %54 : vector<20x20xi1> to vector<20x20xi32>
    %56 = arith.addi %52, %55 : vector<20x20xi32>
    %57 = arith.cmpi eq, %44, %56 : vector<20x20xi32>
    %58 = arith.extui %57 : vector<20x20xi1> to vector<20x20xi32>
    %59 = arith.sitofp %58 : vector<20x20xi32> to vector<20x20xf32>
    %c0_11 = arith.constant 0 : index
    %c0_12 = arith.constant 0 : index
    %c0_13 = arith.constant 0 : index
    %60 = vector.load %arg4[%c0_11, %c0_12, %c0_13] : memref<2x384x32xbf16, #tpu.memory_space<vmem>>, vector<1x384x32xbf16>
    %61 = vector.shape_cast %60 : vector<1x384x32xbf16> to vector<384x32xbf16>
    %c0_14 = arith.constant 0 : index
    %c0_15 = arith.constant 0 : index
    %c0_16 = arith.constant 0 : index
    %62 = vector.load %arg5[%c0_14, %c0_15, %c0_16] : memref<2x6x32xf32, #tpu.memory_space<vmem>>, vector<1x6x32xf32>
    %63 = vector.shape_cast %62 : vector<1x6x32xf32> to vector<6x32xf32>
    %c0_17 = arith.constant 0 : index
    %c0_18 = arith.constant 0 : index
    %c0_19 = arith.constant 0 : index
    %64 = vector.load %arg6[%c0_17, %c0_18, %c0_19] : memref<2x2x128xf32, #tpu.memory_space<vmem>>, vector<1x2x128xf32>
    %65 = vector.shape_cast %64 : vector<1x2x128xf32> to vector<2x128xf32>
    %66 = vector.extract_strided_slice %63 {offsets = [0, 0], sizes = [1, 32], strides = [1, 1]} : vector<6x32xf32> to vector<1x32xf32>
    %67 = vector.extract_strided_slice %63 {offsets = [1, 0], sizes = [1, 32], strides = [1, 1]} : vector<6x32xf32> to vector<1x32xf32>
    %68 = vector.extract_strided_slice %63 {offsets = [2, 0], sizes = [1, 32], strides = [1, 1]} : vector<6x32xf32> to vector<1x32xf32>
    %69 = vector.extract_strided_slice %63 {offsets = [3, 0], sizes = [1, 32], strides = [1, 1]} : vector<6x32xf32> to vector<1x32xf32>
    %70 = vector.extract_strided_slice %63 {offsets = [4, 0], sizes = [1, 32], strides = [1, 1]} : vector<6x32xf32> to vector<1x32xf32>
    %71 = vector.extract_strided_slice %63 {offsets = [5, 0], sizes = [1, 32], strides = [1, 1]} : vector<6x32xf32> to vector<1x32xf32>
    %72 = vector.extract_strided_slice %65 {offsets = [0, 0], sizes = [1, 96], strides = [1, 1]} : vector<2x128xf32> to vector<1x96xf32>
    %73 = vector.extract_strided_slice %65 {offsets = [1, 0], sizes = [1, 128], strides = [1, 1]} : vector<2x128xf32> to vector<1x128xf32>
    %cst_20 = arith.constant dense<0.000000e+00> : vector<10xf32>
    %74 = vector.multi_reduction <add>, %5, %cst_20 [1] : vector<10x32xf32> to vector<10xf32>
    %75 = vector.shape_cast %74 : vector<10xf32> to vector<10x1xf32>
    %cst_21 = arith.constant 3.200000e+01 : f32
    %76 = vector.broadcast %cst_21 : f32 to vector<10x1xf32>
    %77 = arith.divf %75, %76 : vector<10x1xf32>
    %78 = vector.broadcast %77 : vector<10x1xf32> to vector<10x32xf32>
    %79 = arith.subf %5, %78 : vector<10x32xf32>
    %80 = arith.mulf %79, %79 : vector<10x32xf32>
    %cst_22 = arith.constant dense<0.000000e+00> : vector<10xf32>
    %81 = vector.multi_reduction <add>, %80, %cst_22 [1] : vector<10x32xf32> to vector<10xf32>
    %82 = vector.shape_cast %81 : vector<10xf32> to vector<10x1xf32>
    %cst_23 = arith.constant 3.200000e+01 : f32
    %83 = vector.broadcast %cst_23 : f32 to vector<10x1xf32>
    %84 = arith.divf %82, %83 : vector<10x1xf32>
    %85 = vector.broadcast %77 : vector<10x1xf32> to vector<10x32xf32>
    %86 = arith.subf %5, %85 : vector<10x32xf32>
    %cst_24 = arith.constant 9.99999997E-7 : f32
    %87 = vector.broadcast %cst_24 : f32 to vector<10x1xf32>
    %88 = arith.addf %84, %87 : vector<10x1xf32>
    %89 = math.rsqrt %88 : vector<10x1xf32>
    %90 = vector.broadcast %89 : vector<10x1xf32> to vector<10x32xf32>
    %91 = arith.mulf %86, %90 : vector<10x32xf32>
    %92 = vector.broadcast %66 : vector<1x32xf32> to vector<10x32xf32>
    %93 = arith.mulf %91, %92 : vector<10x32xf32>
    %94 = vector.broadcast %67 : vector<1x32xf32> to vector<10x32xf32>
    %95 = arith.addf %93, %94 : vector<10x32xf32>
    %96 = arith.truncf %95 : vector<10x32xf32> to vector<10x32xbf16>
    %97 = vector.extract_strided_slice %61 {offsets = [0, 0], sizes = [96, 32], strides = [1, 1]} : vector<384x32xbf16> to vector<96x32xbf16>
    %cst_25 = arith.constant dense<0.000000e+00> : vector<10x96xf32>
    %98 = tpu.matmul %96, %97, %cst_25 {dimension_numbers = #tpu.dot_dimension_numbers<[1], [1], [0], [0], [0, 0, 1, 0], [], []>} : vector<10x32xbf16>, vector<96x32xbf16>, vector<10x96xf32> -> vector<10x96xf32>
    %99 = vector.broadcast %72 : vector<1x96xf32> to vector<10x96xf32>
    %100 = arith.addf %98, %99 : vector<10x96xf32>
    %101 = vector.extract_strided_slice %100 {offsets = [0, 0], sizes = [10, 32], strides = [1, 1]} : vector<10x96xf32> to vector<10x32xf32>
    %102 = vector.extract_strided_slice %100 {offsets = [0, 32], sizes = [10, 32], strides = [1, 1]} : vector<10x96xf32> to vector<10x32xf32>
    %103 = vector.extract_strided_slice %100 {offsets = [0, 64], sizes = [10, 32], strides = [1, 1]} : vector<10x96xf32> to vector<10x32xf32>
    %104 = vector.extract_strided_slice %101 {offsets = [0, 0], sizes = [5, 32], strides = [1, 1]} : vector<10x32xf32> to vector<5x32xf32>
    %105 = arith.truncf %104 : vector<5x32xf32> to vector<5x32xbf16>
    %106 = vector.extract_strided_slice %102 {offsets = [0, 0], sizes = [5, 32], strides = [1, 1]} : vector<10x32xf32> to vector<5x32xf32>
    %107 = tpu.concatenate %106, %106, %106, %106 in 0 : vector<5x32xf32>, vector<5x32xf32>, vector<5x32xf32>, vector<5x32xf32> -> vector<20x32xf32>
    %108 = arith.mulf %107, %32 : vector<20x32xf32>
    %109 = arith.truncf %108 : vector<20x32xf32> to vector<20x32xbf16>
    %110 = vector.extract_strided_slice %103 {offsets = [0, 0], sizes = [5, 32], strides = [1, 1]} : vector<10x32xf32> to vector<5x32xf32>
    %111 = tpu.concatenate %110, %110, %110, %110 in 0 : vector<5x32xf32>, vector<5x32xf32>, vector<5x32xf32>, vector<5x32xf32> -> vector<20x32xf32>
    %112 = arith.mulf %111, %32 : vector<20x32xf32>
    %113 = arith.truncf %112 : vector<20x32xf32> to vector<20x32xbf16>
    %cst_26 = arith.constant dense<0.000000e+00> : vector<5x20xf32>
    %114 = tpu.matmul %105, %109, %cst_26 {dimension_numbers = #tpu.dot_dimension_numbers<[1], [1], [0], [0], [0, 0, 1, 0], [], []>} : vector<5x32xbf16>, vector<20x32xbf16>, vector<5x20xf32> -> vector<5x20xf32>
    %cst_27 = arith.constant dense<0xFF800000> : vector<5xf32>
    %115 = vector.multi_reduction <maximumf>, %114, %cst_27 [1] : vector<5x20xf32> to vector<5xf32>
    %116 = vector.shape_cast %115 : vector<5xf32> to vector<5x1xf32>
    %117 = vector.broadcast %116 : vector<5x1xf32> to vector<5x20xf32>
    %118 = arith.subf %114, %117 : vector<5x20xf32>
    %119 = math.exp %118 : vector<5x20xf32>
    %cst_28 = arith.constant dense<0.000000e+00> : vector<5x20xf32>
    %120 = tpu.matmul %119, %59, %cst_28 {dimension_numbers = #tpu.dot_dimension_numbers<[1], [0], [0], [1], [0, 0, 1, 1], [], []>} : vector<5x20xf32>, vector<20x20xf32>, vector<5x20xf32> -> vector<5x20xf32>
    %121 = tpu.reciprocal %120 {approx = true} : vector<5x20xf32> -> vector<5x20xf32>
    %122 = arith.mulf %119, %121 : vector<5x20xf32>
    %123 = arith.truncf %122 : vector<5x20xf32> to vector<5x20xbf16>
    %cst_29 = arith.constant dense<0.000000e+00> : vector<5x32xf32>
    %124 = tpu.matmul %123, %113, %cst_29 {dimension_numbers = #tpu.dot_dimension_numbers<[1], [0], [0], [1], [0, 0, 1, 1], [], []>} : vector<5x20xbf16>, vector<20x32xbf16>, vector<5x32xf32> -> vector<5x32xf32>
    %c0_30 = arith.constant 0 : index
    %c0_31 = arith.constant 0 : index
    %125 = vector.load %arg8[%c0_30, %c0_31] : memref<10x32xf32, #tpu.memory_space<vmem>>, vector<5x32xf32>
    tpu.vector_store %arg8[%c0_30, %c0_31], %124 {strides = array<i32>} : memref<10x32xf32, #tpu.memory_space<vmem>>, vector<5x32xf32>,
    %126 = vector.extract_strided_slice %101 {offsets = [5, 0], sizes = [5, 32], strides = [1, 1]} : vector<10x32xf32> to vector<5x32xf32>
    %127 = arith.truncf %126 : vector<5x32xf32> to vector<5x32xbf16>
    %128 = vector.extract_strided_slice %102 {offsets = [5, 0], sizes = [5, 32], strides = [1, 1]} : vector<10x32xf32> to vector<5x32xf32>
    %129 = tpu.concatenate %128, %128, %128, %128 in 0 : vector<5x32xf32>, vector<5x32xf32>, vector<5x32xf32>, vector<5x32xf32> -> vector<20x32xf32>
    %130 = arith.mulf %129, %32 : vector<20x32xf32>
    %131 = arith.truncf %130 : vector<20x32xf32> to vector<20x32xbf16>
    %132 = vector.extract_strided_slice %103 {offsets = [5, 0], sizes = [5, 32], strides = [1, 1]} : vector<10x32xf32> to vector<5x32xf32>
    %133 = tpu.concatenate %132, %132, %132, %132 in 0 : vector<5x32xf32>, vector<5x32xf32>, vector<5x32xf32>, vector<5x32xf32> -> vector<20x32xf32>
    %134 = arith.mulf %133, %32 : vector<20x32xf32>
    %135 = arith.truncf %134 : vector<20x32xf32> to vector<20x32xbf16>
    %cst_32 = arith.constant dense<0.000000e+00> : vector<5x20xf32>
    %136 = tpu.matmul %127, %131, %cst_32 {dimension_numbers = #tpu.dot_dimension_numbers<[1], [1], [0], [0], [0, 0, 1, 0], [], []>} : vector<5x32xbf16>, vector<20x32xbf16>, vector<5x20xf32> -> vector<5x20xf32>
    %cst_33 = arith.constant dense<0xFF800000> : vector<5xf32>
    %137 = vector.multi_reduction <maximumf>, %136, %cst_33 [1] : vector<5x20xf32> to vector<5xf32>
    %138 = vector.shape_cast %137 : vector<5xf32> to vector<5x1xf32>
    %139 = vector.broadcast %138 : vector<5x1xf32> to vector<5x20xf32>
    %140 = arith.subf %136, %139 : vector<5x20xf32>
    %141 = math.exp %140 : vector<5x20xf32>
    %cst_34 = arith.constant dense<0.000000e+00> : vector<5x20xf32>
    %142 = tpu.matmul %141, %59, %cst_34 {dimension_numbers = #tpu.dot_dimension_numbers<[1], [0], [0], [1], [0, 0, 1, 1], [], []>} : vector<5x20xf32>, vector<20x20xf32>, vector<5x20xf32> -> vector<5x20xf32>
    %143 = tpu.reciprocal %142 {approx = true} : vector<5x20xf32> -> vector<5x20xf32>
    %144 = arith.mulf %141, %143 : vector<5x20xf32>
    %145 = arith.truncf %144 : vector<5x20xf32> to vector<5x20xbf16>
    %cst_35 = arith.constant dense<0.000000e+00> : vector<5x32xf32>
    %146 = tpu.matmul %145, %135, %cst_35 {dimension_numbers = #tpu.dot_dimension_numbers<[1], [0], [0], [1], [0, 0, 1, 1], [], []>} : vector<5x20xbf16>, vector<20x32xbf16>, vector<5x32xf32> -> vector<5x32xf32>
    %c5 = arith.constant 5 : index
    %c0_36 = arith.constant 0 : index
    %147 = vector.load %arg8[%c5, %c0_36] : memref<10x32xf32, #tpu.memory_space<vmem>>, vector<5x32xf32>
    tpu.vector_store %arg8[%c5, %c0_36], %146 {strides = array<i32>} : memref<10x32xf32, #tpu.memory_space<vmem>>, vector<5x32xf32>,
    %c0_37 = arith.constant 0 : index
    %c0_38 = arith.constant 0 : index
    %148 = vector.load %arg8[%c0_37, %c0_38] : memref<10x32xf32, #tpu.memory_space<vmem>>, vector<10x32xf32>
    %149 = arith.truncf %148 : vector<10x32xf32> to vector<10x32xbf16>
    %150 = vector.extract_strided_slice %61 {offsets = [96, 0], sizes = [32, 32], strides = [1, 1]} : vector<384x32xbf16> to vector<32x32xbf16>
    %cst_39 = arith.constant dense<0.000000e+00> : vector<10x32xf32>
    %151 = tpu.matmul %149, %150, %cst_39 {dimension_numbers = #tpu.dot_dimension_numbers<[1], [1], [0], [0], [0, 0, 1, 0], [], []>} : vector<10x32xbf16>, vector<32x32xbf16>, vector<10x32xf32> -> vector<10x32xf32>
    %152 = arith.addf %5, %151 : vector<10x32xf32>
    %153 = vector.broadcast %70 : vector<1x32xf32> to vector<10x32xf32>
    %154 = arith.addf %152, %153 : vector<10x32xf32>
    %cst_40 = arith.constant dense<0.000000e+00> : vector<10xf32>
    %155 = vector.multi_reduction <add>, %154, %cst_40 [1] : vector<10x32xf32> to vector<10xf32>
    %156 = vector.shape_cast %155 : vector<10xf32> to vector<10x1xf32>
    %cst_41 = arith.constant 3.200000e+01 : f32
    %157 = vector.broadcast %cst_41 : f32 to vector<10x1xf32>
    %158 = arith.divf %156, %157 : vector<10x1xf32>
    %159 = vector.broadcast %158 : vector<10x1xf32> to vector<10x32xf32>
    %160 = arith.subf %154, %159 : vector<10x32xf32>
    %161 = arith.mulf %160, %160 : vector<10x32xf32>
    %cst_42 = arith.constant dense<0.000000e+00> : vector<10xf32>
    %162 = vector.multi_reduction <add>, %161, %cst_42 [1] : vector<10x32xf32> to vector<10xf32>
    %163 = vector.shape_cast %162 : vector<10xf32> to vector<10x1xf32>
    %cst_43 = arith.constant 3.200000e+01 : f32
    %164 = vector.broadcast %cst_43 : f32 to vector<10x1xf32>
    %165 = arith.divf %163, %164 : vector<10x1xf32>
    %166 = vector.broadcast %158 : vector<10x1xf32> to vector<10x32xf32>
    %167 = arith.subf %154, %166 : vector<10x32xf32>
    %cst_44 = arith.constant 9.99999997E-7 : f32
    %168 = vector.broadcast %cst_44 : f32 to vector<10x1xf32>
    %169 = arith.addf %165, %168 : vector<10x1xf32>
    %170 = math.rsqrt %169 : vector<10x1xf32>
    %171 = vector.broadcast %170 : vector<10x1xf32> to vector<10x32xf32>
    %172 = arith.mulf %167, %171 : vector<10x32xf32>
    %173 = vector.broadcast %68 : vector<1x32xf32> to vector<10x32xf32>
    %174 = arith.mulf %172, %173 : vector<10x32xf32>
    %175 = vector.broadcast %69 : vector<1x32xf32> to vector<10x32xf32>
    %176 = arith.addf %174, %175 : vector<10x32xf32>
    %177 = arith.truncf %176 : vector<10x32xf32> to vector<10x32xbf16>
    %178 = vector.extract_strided_slice %61 {offsets = [128, 0], sizes = [128, 32], strides = [1, 1]} : vector<384x32xbf16> to vector<128x32xbf16>
    %cst_45 = arith.constant dense<0.000000e+00> : vector<10x128xf32>
    %179 = tpu.matmul %177, %178, %cst_45 {dimension_numbers = #tpu.dot_dimension_numbers<[1], [1], [0], [0], [0, 0, 1, 0], [], []>} : vector<10x32xbf16>, vector<128x32xbf16>, vector<10x128xf32> -> vector<10x128xf32>
    %180 = vector.broadcast %73 : vector<1x128xf32> to vector<10x128xf32>
    %181 = arith.addf %179, %180 : vector<10x128xf32>
    %182 = arith.mulf %181, %181 : vector<10x128xf32>
    %183 = arith.mulf %181, %182 : vector<10x128xf32>
    %cst_46 = arith.constant 4.471500e-02 : f32
    %184 = vector.broadcast %cst_46 : f32 to vector<10x128xf32>
    %185 = arith.mulf %184, %183 : vector<10x128xf32>
    %186 = arith.addf %181, %185 : vector<10x128xf32>
    %cst_47 = arith.constant 0.797884583 : f32
    %187 = vector.broadcast %cst_47 : f32 to vector<10x128xf32>
    %188 = arith.mulf %187, %186 : vector<10x128xf32>
    %189 = math.tanh %188 : vector<10x128xf32>
    %cst_48 = arith.constant 1.000000e+00 : f32
    %190 = vector.broadcast %cst_48 : f32 to vector<10x128xf32>
    %191 = arith.addf %190, %189 : vector<10x128xf32>
    %cst_49 = arith.constant 5.000000e-01 : f32
    %192 = vector.broadcast %cst_49 : f32 to vector<10x128xf32>
    %193 = arith.mulf %192, %191 : vector<10x128xf32>
    %194 = arith.mulf %181, %193 : vector<10x128xf32>
    %195 = arith.truncf %194 : vector<10x128xf32> to vector<10x128xbf16>
    %196 = vector.extract_strided_slice %61 {offsets = [256, 0], sizes = [128, 32], strides = [1, 1]} : vector<384x32xbf16> to vector<128x32xbf16>
    %cst_50 = arith.constant dense<0.000000e+00> : vector<10x32xf32>
    %197 = tpu.matmul %195, %196, %cst_50 {dimension_numbers = #tpu.dot_dimension_numbers<[1], [0], [0], [1], [0, 0, 1, 1], [], []>} : vector<10x128xbf16>, vector<128x32xbf16>, vector<10x32xf32> -> vector<10x32xf32>
    %198 = arith.addf %154, %197 : vector<10x32xf32>
    %199 = vector.broadcast %71 : vector<1x32xf32> to vector<10x32xf32>
    %200 = arith.addf %198, %199 : vector<10x32xf32>
    %c1 = arith.constant 1 : index
    %c0_51 = arith.constant 0 : index
    %c0_52 = arith.constant 0 : index
    %201 = vector.load %arg4[%c1, %c0_51, %c0_52] : memref<2x384x32xbf16, #tpu.memory_space<vmem>>, vector<1x384x32xbf16>
    %202 = vector.shape_cast %201 : vector<1x384x32xbf16> to vector<384x32xbf16>
    %c1_53 = arith.constant 1 : index
    %c0_54 = arith.constant 0 : index
    %c0_55 = arith.constant 0 : index
    %203 = vector.load %arg5[%c1_53, %c0_54, %c0_55] : memref<2x6x32xf32, #tpu.memory_space<vmem>>, vector<1x6x32xf32>
    %204 = vector.shape_cast %203 : vector<1x6x32xf32> to vector<6x32xf32>
    %c1_56 = arith.constant 1 : index
    %c0_57 = arith.constant 0 : index
    %c0_58 = arith.constant 0 : index
    %205 = vector.load %arg6[%c1_56, %c0_57, %c0_58] : memref<2x2x128xf32, #tpu.memory_space<vmem>>, vector<1x2x128xf32>
    %206 = vector.shape_cast %205 : vector<1x2x128xf32> to vector<2x128xf32>
    %207 = vector.extract_strided_slice %204 {offsets = [0, 0], sizes = [1, 32], strides = [1, 1]} : vector<6x32xf32> to vector<1x32xf32>
    %208 = vector.extract_strided_slice %204 {offsets = [1, 0], sizes = [1, 32], strides = [1, 1]} : vector<6x32xf32> to vector<1x32xf32>
    %209 = vector.extract_strided_slice %204 {offsets = [2, 0], sizes = [1, 32], strides = [1, 1]} : vector<6x32xf32> to vector<1x32xf32>
    %210 = vector.extract_strided_slice %204 {offsets = [3, 0], sizes = [1, 32], strides = [1, 1]} : vector<6x32xf32> to vector<1x32xf32>
    %211 = vector.extract_strided_slice %204 {offsets = [4, 0], sizes = [1, 32], strides = [1, 1]} : vector<6x32xf32> to vector<1x32xf32>
    %212 = vector.extract_strided_slice %204 {offsets = [5, 0], sizes = [1, 32], strides = [1, 1]} : vector<6x32xf32> to vector<1x32xf32>
    %213 = vector.extract_strided_slice %206 {offsets = [0, 0], sizes = [1, 96], strides = [1, 1]} : vector<2x128xf32> to vector<1x96xf32>
    %214 = vector.extract_strided_slice %206 {offsets = [1, 0], sizes = [1, 128], strides = [1, 1]} : vector<2x128xf32> to vector<1x128xf32>
    %cst_59 = arith.constant dense<0.000000e+00> : vector<10xf32>
    %215 = vector.multi_reduction <add>, %200, %cst_59 [1] : vector<10x32xf32> to vector<10xf32>
    %216 = vector.shape_cast %215 : vector<10xf32> to vector<10x1xf32>
    %cst_60 = arith.constant 3.200000e+01 : f32
    %217 = vector.broadcast %cst_60 : f32 to vector<10x1xf32>
    %218 = arith.divf %216, %217 : vector<10x1xf32>
    %219 = vector.broadcast %218 : vector<10x1xf32> to vector<10x32xf32>
    %220 = arith.subf %200, %219 : vector<10x32xf32>
    %221 = arith.mulf %220, %220 : vector<10x32xf32>
    %cst_61 = arith.constant dense<0.000000e+00> : vector<10xf32>
    %222 = vector.multi_reduction <add>, %221, %cst_61 [1] : vector<10x32xf32> to vector<10xf32>
    %223 = vector.shape_cast %222 : vector<10xf32> to vector<10x1xf32>
    %cst_62 = arith.constant 3.200000e+01 : f32
    %224 = vector.broadcast %cst_62 : f32 to vector<10x1xf32>
    %225 = arith.divf %223, %224 : vector<10x1xf32>
    %226 = vector.broadcast %218 : vector<10x1xf32> to vector<10x32xf32>
    %227 = arith.subf %200, %226 : vector<10x32xf32>
    %cst_63 = arith.constant 9.99999997E-7 : f32
    %228 = vector.broadcast %cst_63 : f32 to vector<10x1xf32>
    %229 = arith.addf %225, %228 : vector<10x1xf32>
    %230 = math.rsqrt %229 : vector<10x1xf32>
    %231 = vector.broadcast %230 : vector<10x1xf32> to vector<10x32xf32>
    %232 = arith.mulf %227, %231 : vector<10x32xf32>
    %233 = vector.broadcast %207 : vector<1x32xf32> to vector<10x32xf32>
    %234 = arith.mulf %232, %233 : vector<10x32xf32>
    %235 = vector.broadcast %208 : vector<1x32xf32> to vector<10x32xf32>
    %236 = arith.addf %234, %235 : vector<10x32xf32>
    %237 = arith.truncf %236 : vector<10x32xf32> to vector<10x32xbf16>
    %238 = vector.extract_strided_slice %202 {offsets = [0, 0], sizes = [96, 32], strides = [1, 1]} : vector<384x32xbf16> to vector<96x32xbf16>
    %cst_64 = arith.constant dense<0.000000e+00> : vector<10x96xf32>
    %239 = tpu.matmul %237, %238, %cst_64 {dimension_numbers = #tpu.dot_dimension_numbers<[1], [1], [0], [0], [0, 0, 1, 0], [], []>} : vector<10x32xbf16>, vector<96x32xbf16>, vector<10x96xf32> -> vector<10x96xf32>
    %240 = vector.broadcast %213 : vector<1x96xf32> to vector<10x96xf32>
    %241 = arith.addf %239, %240 : vector<10x96xf32>
    %242 = vector.extract_strided_slice %241 {offsets = [0, 0], sizes = [10, 32], strides = [1, 1]} : vector<10x96xf32> to vector<10x32xf32>
    %243 = vector.extract_strided_slice %241 {offsets = [0, 32], sizes = [10, 32], strides = [1, 1]} : vector<10x96xf32> to vector<10x32xf32>
    %244 = vector.extract_strided_slice %241 {offsets = [0, 64], sizes = [10, 32], strides = [1, 1]} : vector<10x96xf32> to vector<10x32xf32>
    %245 = vector.extract_strided_slice %242 {offsets = [0, 0], sizes = [5, 32], strides = [1, 1]} : vector<10x32xf32> to vector<5x32xf32>
    %246 = arith.truncf %245 : vector<5x32xf32> to vector<5x32xbf16>
    %247 = vector.extract_strided_slice %243 {offsets = [0, 0], sizes = [5, 32], strides = [1, 1]} : vector<10x32xf32> to vector<5x32xf32>
    %248 = tpu.concatenate %247, %247, %247, %247 in 0 : vector<5x32xf32>, vector<5x32xf32>, vector<5x32xf32>, vector<5x32xf32> -> vector<20x32xf32>
    %249 = arith.mulf %248, %32 : vector<20x32xf32>
    %250 = arith.truncf %249 : vector<20x32xf32> to vector<20x32xbf16>
    %251 = vector.extract_strided_slice %244 {offsets = [0, 0], sizes = [5, 32], strides = [1, 1]} : vector<10x32xf32> to vector<5x32xf32>
    %252 = tpu.concatenate %251, %251, %251, %251 in 0 : vector<5x32xf32>, vector<5x32xf32>, vector<5x32xf32>, vector<5x32xf32> -> vector<20x32xf32>
    %253 = arith.mulf %252, %32 : vector<20x32xf32>
    %254 = arith.truncf %253 : vector<20x32xf32> to vector<20x32xbf16>
    %cst_65 = arith.constant dense<0.000000e+00> : vector<5x20xf32>
    %255 = tpu.matmul %246, %250, %cst_65 {dimension_numbers = #tpu.dot_dimension_numbers<[1], [1], [0], [0], [0, 0, 1, 0], [], []>} : vector<5x32xbf16>, vector<20x32xbf16>, vector<5x20xf32> -> vector<5x20xf32>
    %cst_66 = arith.constant dense<0xFF800000> : vector<5xf32>
    %256 = vector.multi_reduction <maximumf>, %255, %cst_66 [1] : vector<5x20xf32> to vector<5xf32>
    %257 = vector.shape_cast %256 : vector<5xf32> to vector<5x1xf32>
    %258 = vector.broadcast %257 : vector<5x1xf32> to vector<5x20xf32>
    %259 = arith.subf %255, %258 : vector<5x20xf32>
    %260 = math.exp %259 : vector<5x20xf32>
    %cst_67 = arith.constant dense<0.000000e+00> : vector<5x20xf32>
    %261 = tpu.matmul %260, %59, %cst_67 {dimension_numbers = #tpu.dot_dimension_numbers<[1], [0], [0], [1], [0, 0, 1, 1], [], []>} : vector<5x20xf32>, vector<20x20xf32>, vector<5x20xf32> -> vector<5x20xf32>
    %262 = tpu.reciprocal %261 {approx = true} : vector<5x20xf32> -> vector<5x20xf32>
    %263 = arith.mulf %260, %262 : vector<5x20xf32>
    %264 = arith.truncf %263 : vector<5x20xf32> to vector<5x20xbf16>
    %cst_68 = arith.constant dense<0.000000e+00> : vector<5x32xf32>
    %265 = tpu.matmul %264, %254, %cst_68 {dimension_numbers = #tpu.dot_dimension_numbers<[1], [0], [0], [1], [0, 0, 1, 1], [], []>} : vector<5x20xbf16>, vector<20x32xbf16>, vector<5x32xf32> -> vector<5x32xf32>
    %c0_69 = arith.constant 0 : index
    %c0_70 = arith.constant 0 : index
    %266 = vector.load %arg8[%c0_69, %c0_70] : memref<10x32xf32, #tpu.memory_space<vmem>>, vector<5x32xf32>
    tpu.vector_store %arg8[%c0_69, %c0_70], %265 {strides = array<i32>} : memref<10x32xf32, #tpu.memory_space<vmem>>, vector<5x32xf32>,
    %267 = vector.extract_strided_slice %242 {offsets = [5, 0], sizes = [5, 32], strides = [1, 1]} : vector<10x32xf32> to vector<5x32xf32>
    %268 = arith.truncf %267 : vector<5x32xf32> to vector<5x32xbf16>
    %269 = vector.extract_strided_slice %243 {offsets = [5, 0], sizes = [5, 32], strides = [1, 1]} : vector<10x32xf32> to vector<5x32xf32>
    %270 = tpu.concatenate %269, %269, %269, %269 in 0 : vector<5x32xf32>, vector<5x32xf32>, vector<5x32xf32>, vector<5x32xf32> -> vector<20x32xf32>
    %271 = arith.mulf %270, %32 : vector<20x32xf32>
    %272 = arith.truncf %271 : vector<20x32xf32> to vector<20x32xbf16>
    %273 = vector.extract_strided_slice %244 {offsets = [5, 0], sizes = [5, 32], strides = [1, 1]} : vector<10x32xf32> to vector<5x32xf32>
    %274 = tpu.concatenate %273, %273, %273, %273 in 0 : vector<5x32xf32>, vector<5x32xf32>, vector<5x32xf32>, vector<5x32xf32> -> vector<20x32xf32>
    %275 = arith.mulf %274, %32 : vector<20x32xf32>
    %276 = arith.truncf %275 : vector<20x32xf32> to vector<20x32xbf16>
    %cst_71 = arith.constant dense<0.000000e+00> : vector<5x20xf32>
    %277 = tpu.matmul %268, %272, %cst_71 {dimension_numbers = #tpu.dot_dimension_numbers<[1], [1], [0], [0], [0, 0, 1, 0], [], []>} : vector<5x32xbf16>, vector<20x32xbf16>, vector<5x20xf32> -> vector<5x20xf32>
    %cst_72 = arith.constant dense<0xFF800000> : vector<5xf32>
    %278 = vector.multi_reduction <maximumf>, %277, %cst_72 [1] : vector<5x20xf32> to vector<5xf32>
    %279 = vector.shape_cast %278 : vector<5xf32> to vector<5x1xf32>
    %280 = vector.broadcast %279 : vector<5x1xf32> to vector<5x20xf32>
    %281 = arith.subf %277, %280 : vector<5x20xf32>
    %282 = math.exp %281 : vector<5x20xf32>
    %cst_73 = arith.constant dense<0.000000e+00> : vector<5x20xf32>
    %283 = tpu.matmul %282, %59, %cst_73 {dimension_numbers = #tpu.dot_dimension_numbers<[1], [0], [0], [1], [0, 0, 1, 1], [], []>} : vector<5x20xf32>, vector<20x20xf32>, vector<5x20xf32> -> vector<5x20xf32>
    %284 = tpu.reciprocal %283 {approx = true} : vector<5x20xf32> -> vector<5x20xf32>
    %285 = arith.mulf %282, %284 : vector<5x20xf32>
    %286 = arith.truncf %285 : vector<5x20xf32> to vector<5x20xbf16>
    %cst_74 = arith.constant dense<0.000000e+00> : vector<5x32xf32>
    %287 = tpu.matmul %286, %276, %cst_74 {dimension_numbers = #tpu.dot_dimension_numbers<[1], [0], [0], [1], [0, 0, 1, 1], [], []>} : vector<5x20xbf16>, vector<20x32xbf16>, vector<5x32xf32> -> vector<5x32xf32>
    %c5_75 = arith.constant 5 : index
    %c0_76 = arith.constant 0 : index
    %288 = vector.load %arg8[%c5_75, %c0_76] : memref<10x32xf32, #tpu.memory_space<vmem>>, vector<5x32xf32>
    tpu.vector_store %arg8[%c5_75, %c0_76], %287 {strides = array<i32>} : memref<10x32xf32, #tpu.memory_space<vmem>>, vector<5x32xf32>,
    %c0_77 = arith.constant 0 : index
    %c0_78 = arith.constant 0 : index
    %289 = vector.load %arg8[%c0_77, %c0_78] : memref<10x32xf32, #tpu.memory_space<vmem>>, vector<10x32xf32>
    %290 = arith.truncf %289 : vector<10x32xf32> to vector<10x32xbf16>
    %291 = vector.extract_strided_slice %202 {offsets = [96, 0], sizes = [32, 32], strides = [1, 1]} : vector<384x32xbf16> to vector<32x32xbf16>
    %cst_79 = arith.constant dense<0.000000e+00> : vector<10x32xf32>
    %292 = tpu.matmul %290, %291, %cst_79 {dimension_numbers = #tpu.dot_dimension_numbers<[1], [1], [0], [0], [0, 0, 1, 0], [], []>} : vector<10x32xbf16>, vector<32x32xbf16>, vector<10x32xf32> -> vector<10x32xf32>
    %293 = arith.addf %200, %292 : vector<10x32xf32>
    %294 = vector.broadcast %211 : vector<1x32xf32> to vector<10x32xf32>
    %295 = arith.addf %293, %294 : vector<10x32xf32>
    %cst_80 = arith.constant dense<0.000000e+00> : vector<10xf32>
    %296 = vector.multi_reduction <add>, %295, %cst_80 [1] : vector<10x32xf32> to vector<10xf32>
    %297 = vector.shape_cast %296 : vector<10xf32> to vector<10x1xf32>
    %cst_81 = arith.constant 3.200000e+01 : f32
    %298 = vector.broadcast %cst_81 : f32 to vector<10x1xf32>
    %299 = arith.divf %297, %298 : vector<10x1xf32>
    %300 = vector.broadcast %299 : vector<10x1xf32> to vector<10x32xf32>
    %301 = arith.subf %295, %300 : vector<10x32xf32>
    %302 = arith.mulf %301, %301 : vector<10x32xf32>
    %cst_82 = arith.constant dense<0.000000e+00> : vector<10xf32>
    %303 = vector.multi_reduction <add>, %302, %cst_82 [1] : vector<10x32xf32> to vector<10xf32>
    %304 = vector.shape_cast %303 : vector<10xf32> to vector<10x1xf32>
    %cst_83 = arith.constant 3.200000e+01 : f32
    %305 = vector.broadcast %cst_83 : f32 to vector<10x1xf32>
    %306 = arith.divf %304, %305 : vector<10x1xf32>
    %307 = vector.broadcast %299 : vector<10x1xf32> to vector<10x32xf32>
    %308 = arith.subf %295, %307 : vector<10x32xf32>
    %cst_84 = arith.constant 9.99999997E-7 : f32
    %309 = vector.broadcast %cst_84 : f32 to vector<10x1xf32>
    %310 = arith.addf %306, %309 : vector<10x1xf32>
    %311 = math.rsqrt %310 : vector<10x1xf32>
    %312 = vector.broadcast %311 : vector<10x1xf32> to vector<10x32xf32>
    %313 = arith.mulf %308, %312 : vector<10x32xf32>
    %314 = vector.broadcast %209 : vector<1x32xf32> to vector<10x32xf32>
    %315 = arith.mulf %313, %314 : vector<10x32xf32>
    %316 = vector.broadcast %210 : vector<1x32xf32> to vector<10x32xf32>
    %317 = arith.addf %315, %316 : vector<10x32xf32>
    %318 = arith.truncf %317 : vector<10x32xf32> to vector<10x32xbf16>
    %319 = vector.extract_strided_slice %202 {offsets = [128, 0], sizes = [128, 32], strides = [1, 1]} : vector<384x32xbf16> to vector<128x32xbf16>
    %cst_85 = arith.constant dense<0.000000e+00> : vector<10x128xf32>
    %320 = tpu.matmul %318, %319, %cst_85 {dimension_numbers = #tpu.dot_dimension_numbers<[1], [1], [0], [0], [0, 0, 1, 0], [], []>} : vector<10x32xbf16>, vector<128x32xbf16>, vector<10x128xf32> -> vector<10x128xf32>
    %321 = vector.broadcast %214 : vector<1x128xf32> to vector<10x128xf32>
    %322 = arith.addf %320, %321 : vector<10x128xf32>
    %323 = arith.mulf %322, %322 : vector<10x128xf32>
    %324 = arith.mulf %322, %323 : vector<10x128xf32>
    %cst_86 = arith.constant 4.471500e-02 : f32
    %325 = vector.broadcast %cst_86 : f32 to vector<10x128xf32>
    %326 = arith.mulf %325, %324 : vector<10x128xf32>
    %327 = arith.addf %322, %326 : vector<10x128xf32>
    %cst_87 = arith.constant 0.797884583 : f32
    %328 = vector.broadcast %cst_87 : f32 to vector<10x128xf32>
    %329 = arith.mulf %328, %327 : vector<10x128xf32>
    %330 = math.tanh %329 : vector<10x128xf32>
    %cst_88 = arith.constant 1.000000e+00 : f32
    %331 = vector.broadcast %cst_88 : f32 to vector<10x128xf32>
    %332 = arith.addf %331, %330 : vector<10x128xf32>
    %cst_89 = arith.constant 5.000000e-01 : f32
    %333 = vector.broadcast %cst_89 : f32 to vector<10x128xf32>
    %334 = arith.mulf %333, %332 : vector<10x128xf32>
    %335 = arith.mulf %322, %334 : vector<10x128xf32>
    %336 = arith.truncf %335 : vector<10x128xf32> to vector<10x128xbf16>
    %337 = vector.extract_strided_slice %202 {offsets = [256, 0], sizes = [128, 32], strides = [1, 1]} : vector<384x32xbf16> to vector<128x32xbf16>
    %cst_90 = arith.constant dense<0.000000e+00> : vector<10x32xf32>
    %338 = tpu.matmul %336, %337, %cst_90 {dimension_numbers = #tpu.dot_dimension_numbers<[1], [0], [0], [1], [0, 0, 1, 1], [], []>} : vector<10x128xbf16>, vector<128x32xbf16>, vector<10x32xf32> -> vector<10x32xf32>
    %339 = arith.addf %295, %338 : vector<10x32xf32>
    %340 = vector.broadcast %212 : vector<1x32xf32> to vector<10x32xf32>
    %341 = arith.addf %339, %340 : vector<10x32xf32>
    %c10 = arith.constant 10 : index
    %c0_91 = arith.constant 0 : index
    %342 = vector.load %arg3[%c10, %c0_91] : memref<12x32xf32, #tpu.memory_space<vmem>>, vector<1x32xf32>
    %c11 = arith.constant 11 : index
    %c0_92 = arith.constant 0 : index
    %343 = vector.load %arg3[%c11, %c0_92] : memref<12x32xf32, #tpu.memory_space<vmem>>, vector<1x32xf32>
    %cst_93 = arith.constant dense<0.000000e+00> : vector<10xf32>
    %344 = vector.multi_reduction <add>, %341, %cst_93 [1] : vector<10x32xf32> to vector<10xf32>
    %345 = vector.shape_cast %344 : vector<10xf32> to vector<10x1xf32>
    %cst_94 = arith.constant 3.200000e+01 : f32
    %346 = vector.broadcast %cst_94 : f32 to vector<10x1xf32>
    %347 = arith.divf %345, %346 : vector<10x1xf32>
    %348 = vector.broadcast %347 : vector<10x1xf32> to vector<10x32xf32>
    %349 = arith.subf %341, %348 : vector<10x32xf32>
    %350 = arith.mulf %349, %349 : vector<10x32xf32>
    %cst_95 = arith.constant dense<0.000000e+00> : vector<10xf32>
    %351 = vector.multi_reduction <add>, %350, %cst_95 [1] : vector<10x32xf32> to vector<10xf32>
    %352 = vector.shape_cast %351 : vector<10xf32> to vector<10x1xf32>
    %cst_96 = arith.constant 3.200000e+01 : f32
    %353 = vector.broadcast %cst_96 : f32 to vector<10x1xf32>
    %354 = arith.divf %352, %353 : vector<10x1xf32>
    %355 = vector.broadcast %347 : vector<10x1xf32> to vector<10x32xf32>
    %356 = arith.subf %341, %355 : vector<10x32xf32>
    %cst_97 = arith.constant 9.99999997E-7 : f32
    %357 = vector.broadcast %cst_97 : f32 to vector<10x1xf32>
    %358 = arith.addf %354, %357 : vector<10x1xf32>
    %359 = math.rsqrt %358 : vector<10x1xf32>
    %360 = vector.broadcast %359 : vector<10x1xf32> to vector<10x32xf32>
    %361 = arith.mulf %356, %360 : vector<10x32xf32>
    %362 = vector.broadcast %342 : vector<1x32xf32> to vector<10x32xf32>
    %363 = arith.mulf %361, %362 : vector<10x32xf32>
    %364 = vector.broadcast %343 : vector<1x32xf32> to vector<10x32xf32>
    %365 = arith.addf %363, %364 : vector<10x32xf32>
    %c0_98 = arith.constant 0 : index
    %c0_99 = arith.constant 0 : index
    %366 = vector.load %arg7[%c0_98, %c0_99] : memref<10x32xf32, #tpu.memory_space<vmem>>, vector<10x32xf32>
    tpu.vector_store %arg7[%c0_98, %c0_99], %365 {strides = array<i32>} : memref<10x32xf32, #tpu.memory_space<vmem>>, vector<10x32xf32>,
    return
  }
  func.func @transform_0(%arg0: i32) -> (i32, i32) {
    %c0_i32 = arith.constant 0 : i32
    %c0_i32_0 = arith.constant 0 : i32
    return %arg0, %c0_i32 : i32, i32
  }
  func.func @transform_1(%arg0: i32) -> (i32, i32) {
    %c0_i32 = arith.constant 0 : i32
    %c0_i32_0 = arith.constant 0 : i32
    %c0_i32_1 = arith.constant 0 : i32
    return %c0_i32, %c0_i32_0 : i32, i32
  }
  func.func @transform_2(%arg0: i32) -> (i32, i32) {
    %c0_i32 = arith.constant 0 : i32
    %c0_i32_0 = arith.constant 0 : i32
    %c0_i32_1 = arith.constant 0 : i32
    return %c0_i32, %c0_i32_0 : i32, i32
  }
  func.func @transform_3(%arg0: i32) -> (i32, i32, i32) {
    %c0_i32 = arith.constant 0 : i32
    %c0_i32_0 = arith.constant 0 : i32
    %c0_i32_1 = arith.constant 0 : i32
    %c0_i32_2 = arith.constant 0 : i32
    return %c0_i32, %c0_i32_0, %c0_i32_1 : i32, i32, i32
  }
  func.func @transform_4(%arg0: i32) -> (i32, i32, i32) {
    %c0_i32 = arith.constant 0 : i32
    %c0_i32_0 = arith.constant 0 : i32
    %c0_i32_1 = arith.constant 0 : i32
    %c0_i32_2 = arith.constant 0 : i32
    return %c0_i32, %c0_i32_0, %c0_i32_1 : i32, i32, i32
  }
  func.func @transform_5(%arg0: i32) -> (i32, i32, i32) {
    %c0_i32 = arith.constant 0 : i32
    %c0_i32_0 = arith.constant 0 : i32
    %c0_i32_1 = arith.constant 0 : i32
    %c0_i32_2 = arith.constant 0 : i32
    return %c0_i32, %c0_i32_0, %c0_i32_1 : i32, i32, i32
  }
  func.func @transform_6(%arg0: i32) -> (i32, i32) {
    %c0_i32 = arith.constant 0 : i32
    %c0_i32_0 = arith.constant 0 : i32
    return %arg0, %c0_i32 : i32, i32
  }
}

</mosaic_0001>

<llo_original>
// kernel: tpu_custom_call.1
$region0: #{tpu_custom_call.1}
  #allocation0 [shape = 'u32[]', space=smem, size = 0x4, offset = 0x4, fixed_abs, tag = 'smem constant byte address 0x4 - core index']
  #allocation1 [shape = 'u32[144,128]{1,0:T(1,128)}', space=vmem, size = 0x12000, scoped, tag = 'internal scratch']
  #allocation2 [shape = 'f32[10,32]{1,0:T(8,128)}', space=vmem, size = 0x2000, scoped, tag = 'scratch operand']
  %s0 = inlined_call_operand.vmem [shape: f32[10,768], index: 0, kind: input, shape index: {}]
  %s1 = inlined_call_operand.vmem [shape: bf16[768,32], index: 1, kind: input, shape index: {}]
  %s2 = inlined_call_operand.vmem [shape: f32[12,32], index: 2, kind: input, shape index: {}]
  %s3 = inlined_call_operand.vmem [shape: bf16[2,384,32], index: 3, kind: input, shape index: {}]
  %s4 = inlined_call_operand.vmem [shape: f32[2,6,32], index: 4, kind: input, shape index: {}]
  %s5 = inlined_call_operand.vmem [shape: f32[2,2,128], index: 5, kind: input, shape index: {}]
  %s6 = inlined_call_operand.hbm [shape: f32[10,32], index: 6, kind: output, shape index: {}]
  %s7 = sld [smem:[#allocation0]]
  $region34: #{tpu_custom_call.1} parent=0
    _
  %s9 = ssub.s32 1, %s7
  %s10 = scalar_select 0, %s9, %s7
  $region1: #{tpu_custom_call.1} parent=0
    #allocation3 [shape = 'u8[8192]{0}', space=vmem, size = 0x2000, scoped, tag = 'output window, operand 0, single buffered']
    #allocation4 [shape = 's32[1]{0}', space=sflag, size = 0x4, scoped, tag = 'scoped memory for tpu_custom_call.1']
    %11 = vsyncpa [#allocation4], 0
    // Predicated region
    $region2: #{tpu_custom_call.1} parent=1 // pred_check
      _
    $region3: #{tpu_custom_call.1} parent=1 // pred_check_branch
      %13 = sbr.rel (0) target = $region5
    $region4: #{tpu_custom_call.1} parent=1 // pred_region
      _
    $region5: #{tpu_custom_call.1} parent=1 // pred_fallthru
      _
    // Predicated region
    $region6: #{tpu_custom_call.1} parent=1 // pred_check
      _
    $region7: #{tpu_custom_call.1} parent=1 // pred_check_branch
      %15 = sbr.rel (0) target = $region9
    $region8: #{tpu_custom_call.1} parent=1 // pred_region
      _
    $region9: #{tpu_custom_call.1} parent=1 // pred_fallthru
      _
    // Predicated region
    $region10: #{tpu_custom_call.1} parent=1 // pred_check
      _
    $region11: #{tpu_custom_call.1} parent=1 // pred_check_branch
      %17 = sbr.rel (0) target = $region13
    $region12: #{tpu_custom_call.1} parent=1 // pred_region
      _
    $region13: #{tpu_custom_call.1} parent=1 // pred_fallthru
      _
    // Predicated region
    $region14: #{tpu_custom_call.1} parent=1 // pred_check
      _
    $region15: #{tpu_custom_call.1} parent=1 // pred_check_branch
      %19 = sbr.rel (0) target = $region17
    $region16: #{tpu_custom_call.1} parent=1 // pred_region
      _
    $region17: #{tpu_custom_call.1} parent=1 // pred_fallthru
      _
    // Predicated region
    $region18: #{tpu_custom_call.1} parent=1 // pred_check
      _
    $region19: #{tpu_custom_call.1} parent=1 // pred_check_branch
      %21 = sbr.rel (0) target = $region21
    $region20: #{tpu_custom_call.1} parent=1 // pred_region
      _
    $region21: #{tpu_custom_call.1} parent=1 // pred_fallthru
      _
    // Predicated region
    $region22: #{tpu_custom_call.1} parent=1 // pred_check
      _
    $region23: #{tpu_custom_call.1} parent=1 // pred_check_branch
      %23 = sbr.rel (0) target = $region25
    $region24: #{tpu_custom_call.1} parent=1 // pred_region
      _
    $region25: #{tpu_custom_call.1} parent=1 // pred_fallthru
      _
    %v25 = vld [vmem:[%s0] sm:$0xff]
    %v26 = vld [vmem:[%s0 + $0x8] sm:$0xff]
    %v27 = vld [vmem:[%s0 + $0x10] sm:$0xff]
    %v28 = vld [vmem:[%s0 + $0x18] sm:$0xff]
    %v29 = vld [vmem:[%s0 + $0x20] sm:$0xff]
    %v30 = vld [vmem:[%s0 + $0x28] sm:$0xff]
    %v31 = vld [vmem:[%s0 + $0x30] sm:$0x3]
    %v32 = vld [vmem:[%s0 + $0x38] sm:$0x3]
    %v33 = vld [vmem:[%s0 + $0x40] sm:$0x3]
    %v34 = vld [vmem:[%s0 + $0x48] sm:$0x3]
    %v35 = vld [vmem:[%s0 + $0x50] sm:$0x3]
    %v36 = vld [vmem:[%s0 + $0x58] sm:$0x3]
    %v37 = vpack.c.bf16 %v31, %v25
    %v38 = vpack.c.bf16 %v32, %v26
    %v39 = vpack.c.bf16 %v33, %v27
    %v40 = vpack.c.bf16 %v34, %v28
    %v41 = vpack.c.bf16 %v35, %v29
    %v42 = vpack.c.bf16 %v36, %v30
    %v43 = vld [vmem:[%s1] sm:$0xf]
    %v44 = vld [vmem:[%s1 + $0x4] sm:$0xf]
    %v45 = vld [vmem:[%s1 + $0x8] sm:$0xf]
    %v46 = vld [vmem:[%s1 + $0xc] sm:$0xf]
    %v47 = vld [vmem:[%s1 + $0x10] sm:$0xf]
    %v48 = vld [vmem:[%s1 + $0x14] sm:$0xf]
    %v49 = vld [vmem:[%s1 + $0x18] sm:$0xf]
    %v50 = vld [vmem:[%s1 + $0x1c] sm:$0xf]
    %v51 = vld [vmem:[%s1 + $0x20] sm:$0xf]
    %v52 = vld [vmem:[%s1 + $0x24] sm:$0xf]
    %v53 = vld [vmem:[%s1 + $0x28] sm:$0xf]
    %v54 = vld [vmem:[%s1 + $0x2c] sm:$0xf]
    %v55 = vld [vmem:[%s1 + $0x30] sm:$0xf]
    %v56 = vld [vmem:[%s1 + $0x34] sm:$0xf]
    %v57 = vld [vmem:[%s1 + $0x38] sm:$0xf]
    %v58 = vld [vmem:[%s1 + $0x3c] sm:$0xf]
    %v59 = vld [vmem:[%s1 + $0x40] sm:$0xf]
    %v60 = vld [vmem:[%s1 + $0x44] sm:$0xf]
    %v61 = vld [vmem:[%s1 + $0x48] sm:$0xf]
    %v62 = vld [vmem:[%s1 + $0x4c] sm:$0xf]
    %v63 = vld [vmem:[%s1 + $0x50] sm:$0xf]
    %v64 = vld [vmem:[%s1 + $0x54] sm:$0xf]
    %v65 = vld [vmem:[%s1 + $0x58] sm:$0xf]
    %v66 = vld [vmem:[%s1 + $0x5c] sm:$0xf]
    %v67 = vld [vmem:[%s1 + $0x60] sm:$0xf]
    %v68 = vld [vmem:[%s1 + $0x64] sm:$0xf]
    %v69 = vld [vmem:[%s1 + $0x68] sm:$0xf]
    %v70 = vld [vmem:[%s1 + $0x6c] sm:$0xf]
    %v71 = vld [vmem:[%s1 + $0x70] sm:$0xf]
    %v72 = vld [vmem:[%s1 + $0x74] sm:$0xf]
    %v73 = vld [vmem:[%s1 + $0x78] sm:$0xf]
    %v74 = vld [vmem:[%s1 + $0x7c] sm:$0xf]
    %v75 = vld [vmem:[%s1 + $0x80] sm:$0xf]
    %v76 = vld [vmem:[%s1 + $0x84] sm:$0xf]
    %v77 = vld [vmem:[%s1 + $0x88] sm:$0xf]
    %v78 = vld [vmem:[%s1 + $0x8c] sm:$0xf]
    %v79 = vld [vmem:[%s1 + $0x90] sm:$0xf]
    %v80 = vld [vmem:[%s1 + $0x94] sm:$0xf]
    %v81 = vld [vmem:[%s1 + $0x98] sm:$0xf]
    %v82 = vld [vmem:[%s1 + $0x9c] sm:$0xf]
    %v83 = vld [vmem:[%s1 + $0xa0] sm:$0xf]
    %v84 = vld [vmem:[%s1 + $0xa4] sm:$0xf]
    %v85 = vld [vmem:[%s1 + $0xa8] sm:$0xf]
    %v86 = vld [vmem:[%s1 + $0xac] sm:$0xf]
    %v87 = vld [vmem:[%s1 + $0xb0] sm:$0xf]
    %v88 = vld [vmem:[%s1 + $0xb4] sm:$0xf]
    %v89 = vld [vmem:[%s1 + $0xb8] sm:$0xf]
    %v90 = vld [vmem:[%s1 + $0xbc] sm:$0xf]
    %v91 = vld [vmem:[%s1 + $0xc0] sm:$0xf]
    %v92 = vld [vmem:[%s1 + $0xc4] sm:$0xf]
    %v93 = vld [vmem:[%s1 + $0xc8] sm:$0xf]
    %v94 = vld [vmem:[%s1 + $0xcc] sm:$0xf]
    %v95 = vld [vmem:[%s1 + $0xd0] sm:$0xf]
    %v96 = vld [vmem:[%s1 + $0xd4] sm:$0xf]
    %v97 = vld [vmem:[%s1 + $0xd8] sm:$0xf]
    %v98 = vld [vmem:[%s1 + $0xdc] sm:$0xf]
    %v99 = vld [vmem:[%s1 + $0xe0] sm:$0xf]
    %v100 = vld [vmem:[%s1 + $0xe4] sm:$0xf]
    %v101 = vld [vmem:[%s1 + $0xe8] sm:$0xf]
    %v102 = vld [vmem:[%s1 + $0xec] sm:$0xf]
    %v103 = vld [vmem:[%s1 + $0xf0] sm:$0xf]
    %v104 = vld [vmem:[%s1 + $0xf4] sm:$0xf]
    %v105 = vld [vmem:[%s1 + $0xf8] sm:$0xf]
    %v106 = vld [vmem:[%s1 + $0xfc] sm:$0xf]
    %v107 = vld [vmem:[%s1 + $0x100] sm:$0xf]
    %v108 = vld [vmem:[%s1 + $0x104] sm:$0xf]
    %v109 = vld [vmem:[%s1 + $0x108] sm:$0xf]
    %v110 = vld [vmem:[%s1 + $0x10c] sm:$0xf]
    %v111 = vld [vmem:[%s1 + $0x110] sm:$0xf]
    %v112 = vld [vmem:[%s1 + $0x114] sm:$0xf]
    %v113 = vld [vmem:[%s1 + $0x118] sm:$0xf]
    %v114 = vld [vmem:[%s1 + $0x11c] sm:$0xf]
    %v115 = vld [vmem:[%s1 + $0x120] sm:$0xf]
    %v116 = vld [vmem:[%s1 + $0x124] sm:$0xf]
    %v117 = vld [vmem:[%s1 + $0x128] sm:$0xf]
    %v118 = vld [vmem:[%s1 + $0x12c] sm:$0xf]
    %v119 = vld [vmem:[%s1 + $0x130] sm:$0xf]
    %v120 = vld [vmem:[%s1 + $0x134] sm:$0xf]
    %v121 = vld [vmem:[%s1 + $0x138] sm:$0xf]
    %v122 = vld [vmem:[%s1 + $0x13c] sm:$0xf]
    %v123 = vld [vmem:[%s1 + $0x140] sm:$0xf]
    %v124 = vld [vmem:[%s1 + $0x144] sm:$0xf]
    %v125 = vld [vmem:[%s1 + $0x148] sm:$0xf]
    %v126 = vld [vmem:[%s1 + $0x14c] sm:$0xf]
    %v127 = vld [vmem:[%s1 + $0x150] sm:$0xf]
    %v128 = vld [vmem:[%s1 + $0x154] sm:$0xf]
    %v129 = vld [vmem:[%s1 + $0x158] sm:$0xf]
    %v130 = vld [vmem:[%s1 + $0x15c] sm:$0xf]
    %v131 = vld [vmem:[%s1 + $0x160] sm:$0xf]
    %v132 = vld [vmem:[%s1 + $0x164] sm:$0xf]
    %v133 = vld [vmem:[%s1 + $0x168] sm:$0xf]
    %v134 = vld [vmem:[%s1 + $0x16c] sm:$0xf]
    %v135 = vld [vmem:[%s1 + $0x170] sm:$0xf]
    %v136 = vld [vmem:[%s1 + $0x174] sm:$0xf]
    %v137 = vld [vmem:[%s1 + $0x178] sm:$0xf]
    %v138 = vld [vmem:[%s1 + $0x17c] sm:$0xf]
    %v139 = vld [vmem:[%s2] sm:$0xff]
    %v140 = vld [vmem:[%s2 + $0x8] sm:$0x3]
    %v237 = vunpack.c.l.b16 %v43
    %v238 = vunpack.c.l.b16 %v44
    %v239 = vunpack.c.l.b16 %v45
    %v240 = vunpack.c.l.b16 %v46
    %v241 = vunpack.c.l.b16 %v47
    %v242 = vunpack.c.l.b16 %v48
    %v243 = vunpack.c.l.b16 %v49
    %v244 = vunpack.c.l.b16 %v50
    %v245 = vunpack.c.l.b16 %v51
    %v246 = vunpack.c.l.b16 %v52
    %v247 = vunpack.c.l.b16 %v53
    %v248 = vunpack.c.l.b16 %v54
    %v249 = vunpack.c.l.b16 %v55
    %v250 = vunpack.c.l.b16 %v56
    %v251 = vunpack.c.l.b16 %v57
    %v252 = vunpack.c.l.b16 %v58
    %v253 = vunpack.c.l.b16 %v59
    %v254 = vunpack.c.l.b16 %v60
    %v255 = vunpack.c.l.b16 %v61
    %v256 = vunpack.c.l.b16 %v62
    %v257 = vunpack.c.l.b16 %v63
    %v258 = vunpack.c.l.b16 %v64
    %v259 = vunpack.c.l.b16 %v65
    %v260 = vunpack.c.l.b16 %v66
    %v261 = vunpack.c.l.b16 %v67
    %v262 = vunpack.c.l.b16 %v68
    %v263 = vunpack.c.l.b16 %v69
    %v264 = vunpack.c.l.b16 %v70
    %v265 = vunpack.c.l.b16 %v71
    %v266 = vunpack.c.l.b16 %v72
    %v267 = vunpack.c.l.b16 %v73
    %v268 = vunpack.c.l.b16 %v74
    %v269 = vunpack.c.l.b16 %v75
    %v270 = vunpack.c.l.b16 %v76
    %v271 = vunpack.c.l.b16 %v77
    %v272 = vunpack.c.l.b16 %v78
    %v273 = vunpack.c.l.b16 %v79
    %v274 = vunpack.c.l.b16 %v80
    %v275 = vunpack.c.l.b16 %v81
    %v276 = vunpack.c.l.b16 %v82
    %v277 = vunpack.c.l.b16 %v83
    %v278 = vunpack.c.l.b16 %v84
    %v279 = vunpack.c.l.b16 %v85
    %v280 = vunpack.c.l.b16 %v86
    %v281 = vunpack.c.l.b16 %v87
    %v282 = vunpack.c.l.b16 %v88
    %v283 = vunpack.c.l.b16 %v89
    %v284 = vunpack.c.l.b16 %v90
    %v285 = vunpack.c.l.b16 %v91
    %v286 = vunpack.c.l.b16 %v92
    %v287 = vunpack.c.l.b16 %v93
    %v288 = vunpack.c.l.b16 %v94
    %v289 = vunpack.c.l.b16 %v95
    %v290 = vunpack.c.l.b16 %v96
    %v291 = vunpack.c.l.b16 %v97
    %v292 = vunpack.c.l.b16 %v98
    %v293 = vunpack.c.l.b16 %v99
    %v294 = vunpack.c.l.b16 %v100
    %v295 = vunpack.c.l.b16 %v101
    %v296 = vunpack.c.l.b16 %v102
    %v297 = vunpack.c.l.b16 %v103
    %v298 = vunpack.c.l.b16 %v104
    %v299 = vunpack.c.l.b16 %v105
    %v300 = vunpack.c.l.b16 %v106
    %v301 = vunpack.c.l.b16 %v107
    %v302 = vunpack.c.l.b16 %v108
    %v303 = vunpack.c.l.b16 %v109
    %v304 = vunpack.c.l.b16 %v110
    %v305 = vunpack.c.l.b16 %v111
    %v306 = vunpack.c.l.b16 %v112
    %v307 = vunpack.c.l.b16 %v113
    %v308 = vunpack.c.l.b16 %v114
    %v309 = vunpack.c.l.b16 %v115
    %v310 = vunpack.c.l.b16 %v116
    %v311 = vunpack.c.l.b16 %v117
    %v312 = vunpack.c.l.b16 %v118
    %v313 = vunpack.c.l.b16 %v119
    %v314 = vunpack.c.l.b16 %v120
    %v315 = vunpack.c.l.b16 %v121
    %v316 = vunpack.c.l.b16 %v122
    %v317 = vunpack.c.l.b16 %v123
    %v318 = vunpack.c.l.b16 %v124
    %v319 = vunpack.c.l.b16 %v125
    %v320 = vunpack.c.l.b16 %v126
    %v321 = vunpack.c.l.b16 %v127
    %v322 = vunpack.c.l.b16 %v128
    %v323 = vunpack.c.l.b16 %v129
    %v324 = vunpack.c.l.b16 %v130
    %v325 = vunpack.c.l.b16 %v131
    %v326 = vunpack.c.l.b16 %v132
    %v327 = vunpack.c.l.b16 %v133
    %v328 = vunpack.c.l.b16 %v134
    %v329 = vunpack.c.l.b16 %v135
    %v330 = vunpack.c.l.b16 %v136
    %v331 = vunpack.c.l.b16 %v137
    %v332 = vunpack.c.l.b16 %v138
    %v333 = vpack.c.b16 %v238, %v237
    %v334 = vpack.c.b16 %v240, %v239
    %v335 = vpack.c.b16 %v242, %v241
    %v336 = vpack.c.b16 %v244, %v243
    %v337 = vpack.c.b16 %v246, %v245
    %v338 = vpack.c.b16 %v248, %v247
    %v339 = vpack.c.b16 %v250, %v249
    %v340 = vpack.c.b16 %v252, %v251
    %v341 = vpack.c.b16 %v254, %v253
    %v342 = vpack.c.b16 %v256, %v255
    %v343 = vpack.c.b16 %v258, %v257
    %v344 = vpack.c.b16 %v260, %v259
    %v345 = vpack.c.b16 %v262, %v261
    %v346 = vpack.c.b16 %v264, %v263
    %v347 = vpack.c.b16 %v266, %v265
    %v348 = vpack.c.b16 %v268, %v267
    %v349 = vpack.c.b16 %v270, %v269
    %v350 = vpack.c.b16 %v272, %v271
    %v351 = vpack.c.b16 %v274, %v273
    %v352 = vpack.c.b16 %v276, %v275
    %v353 = vpack.c.b16 %v278, %v277
    %v354 = vpack.c.b16 %v280, %v279
    %v355 = vpack.c.b16 %v282, %v281
    %v356 = vpack.c.b16 %v284, %v283
    %v357 = vpack.c.b16 %v286, %v285
    %v358 = vpack.c.b16 %v288, %v287
    %v359 = vpack.c.b16 %v290, %v289
    %v360 = vpack.c.b16 %v292, %v291
    %v361 = vpack.c.b16 %v294, %v293
    %v362 = vpack.c.b16 %v296, %v295
    %v363 = vpack.c.b16 %v298, %v297
    %v364 = vpack.c.b16 %v300, %v299
    %v365 = vpack.c.b16 %v302, %v301
    %v366 = vpack.c.b16 %v304, %v303
    %v367 = vpack.c.b16 %v306, %v305
    %v368 = vpack.c.b16 %v308, %v307
    %v369 = vpack.c.b16 %v310, %v309
    %v370 = vpack.c.b16 %v312, %v311
    %v371 = vpack.c.b16 %v314, %v313
    %v372 = vpack.c.b16 %v316, %v315
    %v373 = vpack.c.b16 %v318, %v317
    %v374 = vpack.c.b16 %v320, %v319
    %v375 = vpack.c.b16 %v322, %v321
    %v376 = vpack.c.b16 %v324, %v323
    %v377 = vpack.c.b16 %v326, %v325
    %v378 = vpack.c.b16 %v328, %v327
    %v379 = vpack.c.b16 %v330, %v329
    %v380 = vpack.c.b16 %v332, %v331
    %429 = vmatprep.subr.bf16.mxu0 0
    %430 = vmatpush1.bf16.msra.mxu0 %v340
    %431 = vmatprep.subr.bf16.mxu0 0
    %432 = vmatpush1.bf16.msra.mxu0 %v339
    %433 = vmatprep.subr.bf16.mxu0 0
    %434 = vmatpush1.bf16.msra.mxu0 %v338
    %435 = vmatprep.subr.bf16.mxu0 0
    %436 = vmatpush1.bf16.msra.mxu0 %v337
    %437 = vmatprep.subr.bf16.mxu0 0
    %438 = vmatpush1.bf16.msra.mxu0 %v336
    %439 = vmatprep.subr.bf16.mxu0 0
    %440 = vmatpush1.bf16.msra.mxu0 %v335
    %441 = vmatprep.subr.bf16.mxu0 0
    %442 = vmatpush1.bf16.msra.mxu0 %v334
    %443 = vmatprep.subr.bf16.mxu0 0
    %444 = vmatpush1.bf16.msra.mxu0 %v333
    %445 = vmatprep.subr.bf16.mxu0 0
    %446 = vmatpush2.bf16.msra.mxu0 %v348
    %447 = vmatprep.subr.bf16.mxu0 0
    %448 = vmatpush2.bf16.msra.mxu0 %v347
    %449 = vmatprep.subr.bf16.mxu0 0
    %450 = vmatpush2.bf16.msra.mxu0 %v346
    %451 = vmatprep.subr.bf16.mxu0 0
    %452 = vmatpush2.bf16.msra.mxu0 %v345
    %453 = vmatprep.subr.bf16.mxu0 0
    %454 = vmatpush2.bf16.msra.mxu0 %v344
    %455 = vmatprep.subr.bf16.mxu0 0
    %456 = vmatpush2.bf16.msra.mxu0 %v343
    %457 = vmatprep.subr.bf16.mxu0 0
    %458 = vmatpush2.bf16.msra.mxu0 %v342
    %459 = vmatprep.subr.bf16.mxu0 0
    %460 = vmatpush2.bf16.msra.mxu0 %v341
    %461 = vmatprep.mubr.bf16.mxu0 %v38
    %462 = vmatmul.mubr.bf16.gmra.mxu0 %v37
    %v463 = vpop.f32.mrf.mxu0
    %v464 = vadd.f32 %v139, %v463
    %v465 = vpop.f32.mrf.mxu0
    %v466 = vpop.f32.mrf.mxu0
    %v467 = vadd.f32 %v140, %v466
    %v468 = vpop.f32.mrf.mxu0
    %469 = vdwg.mxu0
    %470 = vmatprep.subr.bf16.mxu0 0
    %471 = vmatpush1.bf16.msra.mxu0 %v356
    %472 = vmatprep.subr.bf16.mxu0 0
    %473 = vmatpush1.bf16.msra.mxu0 %v355
    %474 = vmatprep.subr.bf16.mxu0 0
    %475 = vmatpush1.bf16.msra.mxu0 %v354
    %476 = vmatprep.subr.bf16.mxu0 0
    %477 = vmatpush1.bf16.msra.mxu0 %v353
    %478 = vmatprep.subr.bf16.mxu0 0
    %479 = vmatpush1.bf16.msra.mxu0 %v352
    %480 = vmatprep.subr.bf16.mxu0 0
    %481 = vmatpush1.bf16.msra.mxu0 %v351
    %482 = vmatprep.subr.bf16.mxu0 0
    %483 = vmatpush1.bf16.msra.mxu0 %v350
    %484 = vmatprep.subr.bf16.mxu0 0
    %485 = vmatpush1.bf16.msra.mxu0 %v349
    %486 = vmatprep.subr.bf16.mxu0 0
    %487 = vmatpush2.bf16.msra.mxu0 %v364
    %488 = vmatprep.subr.bf16.mxu0 0
    %489 = vmatpush2.bf16.msra.mxu0 %v363
    %490 = vmatprep.subr.bf16.mxu0 0
    %491 = vmatpush2.bf16.msra.mxu0 %v362
    %492 = vmatprep.subr.bf16.mxu0 0
    %493 = vmatpush2.bf16.msra.mxu0 %v361
    %494 = vmatprep.subr.bf16.mxu0 0
    %495 = vmatpush2.bf16.msra.mxu0 %v360
    %496 = vmatprep.subr.bf16.mxu0 0
    %497 = vmatpush2.bf16.msra.mxu0 %v359
    %498 = vmatprep.subr.bf16.mxu0 0
    %499 = vmatpush2.bf16.msra.mxu0 %v358
    %500 = vmatprep.subr.bf16.mxu0 0
    %501 = vmatpush2.bf16.msra.mxu0 %v357
    %502 = vmatprep.mubr.bf16.mxu0 %v40
    %503 = vmatmul.mubr.bf16.gmra.mxu0 %v39
    %v504 = vpop.f32.mrf.mxu0
    %v505 = vadd.f32 %v464, %v504
    %v506 = vpop.f32.mrf.mxu0
    %v507 = vpop.f32.mrf.mxu0
    %v508 = vadd.f32 %v467, %v507
    %v509 = vpop.f32.mrf.mxu0
    %510 = vdwg.mxu0
    %511 = vmatprep.subr.bf16.mxu0 0
    %512 = vmatpush1.bf16.msra.mxu0 %v372
    %513 = vmatprep.subr.bf16.mxu0 0
    %514 = vmatpush1.bf16.msra.mxu0 %v371
    %515 = vmatprep.subr.bf16.mxu0 0
    %516 = vmatpush1.bf16.msra.mxu0 %v370
    %517 = vmatprep.subr.bf16.mxu0 0
    %518 = vmatpush1.bf16.msra.mxu0 %v369
    %519 = vmatprep.subr.bf16.mxu0 0
    %520 = vmatpush1.bf16.msra.mxu0 %v368
    %521 = vmatprep.subr.bf16.mxu0 0
    %522 = vmatpush1.bf16.msra.mxu0 %v367
    %523 = vmatprep.subr.bf16.mxu0 0
    %524 = vmatpush1.bf16.msra.mxu0 %v366
    %525 = vmatprep.subr.bf16.mxu0 0
    %526 = vmatpush1.bf16.msra.mxu0 %v365
    %527 = vmatprep.subr.bf16.mxu0 0
    %528 = vmatpush2.bf16.msra.mxu0 %v380
    %529 = vmatprep.subr.bf16.mxu0 0
    %530 = vmatpush2.bf16.msra.mxu0 %v379
    %531 = vmatprep.subr.bf16.mxu0 0
    %532 = vmatpush2.bf16.msra.mxu0 %v378
    %533 = vmatprep.subr.bf16.mxu0 0
    %534 = vmatpush2.bf16.msra.mxu0 %v377
    %535 = vmatprep.subr.bf16.mxu0 0
    %536 = vmatpush2.bf16.msra.mxu0 %v376
    %537 = vmatprep.subr.bf16.mxu0 0
    %538 = vmatpush2.bf16.msra.mxu0 %v375
    %539 = vmatprep.subr.bf16.mxu0 0
    %540 = vmatpush2.bf16.msra.mxu0 %v374
    %541 = vmatprep.subr.bf16.mxu0 0
    %542 = vmatpush2.bf16.msra.mxu0 %v373
    %543 = vmatprep.mubr.bf16.mxu0 %v42
    %544 = vmatmul.mubr.bf16.gmra.mxu0 %v41
    %v545 = vpop.f32.mrf.mxu0
    %v546 = vadd.f32 %v505, %v545
    %v547 = vpop.f32.mrf.mxu0
    %v548 = vpop.f32.mrf.mxu0
    %v549 = vadd.f32 %v508, %v548
    %v550 = vpop.f32.mrf.mxu0
    %551 = vdwg.mxu0
    %v552 = vlaneseq
    %v553 = vshrl.u32 %v552, 7
    %v554 = vadd.s32 %v553, 8
    %v555 = vadd.s32 %v553, 16
    %vm556 = vcmp.ge.s32.totalorder %v553, 5
    %vm557 = vcmp.ge.s32.totalorder %v554, 5
    %vm558 = vcmp.ge.s32.totalorder %v555, 5
    %v559 = vsel %vm556, 1, 0
    %v560 = vsel %vm557, 1, 0
    %v561 = vsel %vm558, 1, 0
    %vm562 = vcmp.ge.s32.totalorder %v553, 10
    %vm563 = vcmp.ge.s32.totalorder %v554, 10
    %vm564 = vcmp.ge.s32.totalorder %v555, 10
    %v565 = vsel %vm562, 1, 0
    %v566 = vsel %vm563, 1, 0
    %v567 = vsel %vm564, 1, 0
    %v568 = vadd.s32 %v559, %v565
    %v569 = vadd.s32 %v560, %v566
    %v570 = vadd.s32 %v561, %v567
    %vm571 = vcmp.ge.s32.totalorder %v553, 15
    %vm572 = vcmp.ge.s32.totalorder %v554, 15
    %vm573 = vcmp.ge.s32.totalorder %v555, 15
    %v574 = vsel %vm571, 1, 0
    %v575 = vsel %vm572, 1, 0
    %v576 = vsel %vm573, 1, 0
    %v577 = vadd.s32 %v568, %v574
    %v578 = vadd.s32 %v569, %v575
    %v579 = vadd.s32 %v570, %v576
    %v580 = vlaneseq
    %v581 = vand.u32 %v580, 127
    %vm582 = vcmp.ge.s32.totalorder %v581, 8
    %v583 = vsel %vm582, 1, 0
    %vm584 = vcmp.ge.s32.totalorder %v581, 16
    %v585 = vsel %vm584, 1, 0
    %v586 = vadd.s32 %v583, %v585
    %vm587 = vcmp.ge.s32.totalorder %v581, 24
    %v588 = vsel %vm587, 1, 0
    %v589 = vadd.s32 %v586, %v588
    %vm590 = vcmp.eq.s32.totalorder %v577, %v589
    %vm591 = vcmp.eq.s32.totalorder %v578, %v589
    %vm592 = vcmp.eq.s32.totalorder %v579, %v589
    %v593 = vsel %vm590, 1, 0
    %v594 = vsel %vm591, 1, 0
    %v595 = vsel %vm592, 1, 0
    %v596 = vcvt.s32.f32 %v593
    %v597 = vcvt.s32.f32 %v594
    %v598 = vcvt.s32.f32 %v595
    %vm599 = vcmp.ge.s32.totalorder %v581, 5
    %v600 = vsel %vm599, 1, 0
    %vm601 = vcmp.ge.s32.totalorder %v581, 10
    %v602 = vsel %vm601, 1, 0
    %v603 = vadd.s32 %v600, %v602
    %vm604 = vcmp.ge.s32.totalorder %v581, 15
    %v605 = vsel %vm604, 1, 0
    %v606 = vadd.s32 %v603, %v605
    %vm607 = vcmp.eq.s32.totalorder %v577, %v606
    %vm608 = vcmp.eq.s32.totalorder %v578, %v606
    %vm609 = vcmp.eq.s32.totalorder %v579, %v606
    %v610 = vsel %vm607, 1, 0
    %v611 = vsel %vm608, 1, 0
    %v612 = vsel %vm609, 1, 0
    %v613 = vcvt.s32.f32 %v610
    %v614 = vcvt.s32.f32 %v611
    %v615 = vcvt.s32.f32 %v612
    %v616 = vld [vmem:[%s3] sm:$0xf]
    %v617 = vld [vmem:[%s3 + $0x4] sm:$0xf]
    %v618 = vld [vmem:[%s3 + $0x8] sm:$0xf]
    %v619 = vld [vmem:[%s3 + $0xc] sm:$0xf]
    %v620 = vld [vmem:[%s3 + $0x10] sm:$0xf]
    %v621 = vld [vmem:[%s3 + $0x14] sm:$0xf]
    %v622 = vld [vmem:[%s3 + $0x18] sm:$0xf]
    %v623 = vld [vmem:[%s3 + $0x1c] sm:$0xf]
    %v624 = vld [vmem:[%s3 + $0x20] sm:$0xf]
    %v625 = vld [vmem:[%s3 + $0x24] sm:$0xf]
    %v626 = vld [vmem:[%s3 + $0x28] sm:$0xf]
    %v627 = vld [vmem:[%s3 + $0x2c] sm:$0xf]
    %v628 = vld [vmem:[%s3 + $0x30] sm:$0xf]
    %v629 = vld [vmem:[%s3 + $0x34] sm:$0xf]
    %v630 = vld [vmem:[%s3 + $0x38] sm:$0xf]
    %v631 = vld [vmem:[%s3 + $0x3c] sm:$0xf]
    %v632 = vld [vmem:[%s3 + $0x40] sm:$0xf]
    %v633 = vld [vmem:[%s3 + $0x44] sm:$0xf]
    %v634 = vld [vmem:[%s3 + $0x48] sm:$0xf]
    %v635 = vld [vmem:[%s3 + $0x4c] sm:$0xf]
    %v636 = vld [vmem:[%s3 + $0x50] sm:$0xf]
    %v637 = vld [vmem:[%s3 + $0x54] sm:$0xf]
    %v638 = vld [vmem:[%s3 + $0x58] sm:$0xf]
    %v639 = vld [vmem:[%s3 + $0x5c] sm:$0xf]
    %v640 = vld [vmem:[%s3 + $0x60] sm:$0xf]
    %v641 = vld [vmem:[%s3 + $0x64] sm:$0xf]
    %v642 = vld [vmem:[%s3 + $0x68] sm:$0xf]
    %v643 = vld [vmem:[%s3 + $0x6c] sm:$0xf]
    %v644 = vld [vmem:[%s3 + $0x70] sm:$0xf]
    %v645 = vld [vmem:[%s3 + $0x74] sm:$0xf]
    %v646 = vld [vmem:[%s3 + $0x78] sm:$0xf]
    %v647 = vld [vmem:[%s3 + $0x7c] sm:$0xf]
    %v648 = vld [vmem:[%s3 + $0x80] sm:$0xf]
    %v649 = vld [vmem:[%s3 + $0x84] sm:$0xf]
    %v650 = vld [vmem:[%s3 + $0x88] sm:$0xf]
    %v651 = vld [vmem:[%s3 + $0x8c] sm:$0xf]
    %v652 = vld [vmem:[%s3 + $0x90] sm:$0xf]
    %v653 = vld [vmem:[%s3 + $0x94] sm:$0xf]
    %v654 = vld [vmem:[%s3 + $0x98] sm:$0xf]
    %v655 = vld [vmem:[%s3 + $0x9c] sm:$0xf]
    %v656 = vld [vmem:[%s3 + $0xa0] sm:$0xf]
    %v657 = vld [vmem:[%s3 + $0xa4] sm:$0xf]
    %v658 = vld [vmem:[%s3 + $0xa8] sm:$0xf]
    %v659 = vld [vmem:[%s3 + $0xac] sm:$0xf]
    %v660 = vld [vmem:[%s3 + $0xb0] sm:$0xf]
    %v661 = vld [vmem:[%s3 + $0xb4] sm:$0xf]
    %v662 = vld [vmem:[%s3 + $0xb8] sm:$0xf]
    %v663 = vld [vmem:[%s3 + $0xbc] sm:$0xf]
    %v664 = vld [vmem:[%s4] sm:$0x3f]
    %v665 = vld [vmem:[%s5] sm:$0x3]
    %vm666 = vcmask 261120
    %v667 = vsel %vm666, %v546, 0.0
    %668 = vadd.xlane.f32.xlu0 %v667
    %v669 = vpop.xlane.xlu0 %668
    %vm670 = vcmask 254976
    %v671 = vsel %vm670, %v549, 0.0
    %672 = vadd.xlane.f32.xlu0 %v671
    %v673 = vpop.xlane.xlu0 %672
    %v674 = vrcp.pop 32.0
    %v675 = vmul.f32 %v669, %v674
    %v676 = vmul.f32 %v673, %v674
    %v677 = vsub.f32 %v546, %v675
    %v678 = vsub.f32 %v549, %v676
    %v679 = vmul.f32 %v677, %v677
    %v680 = vmul.f32 %v678, %v678
    %v681 = vsel %vm666, %v679, 0.0
    %682 = vadd.xlane.f32.xlu0 %v681
    %v683 = vpop.xlane.xlu0 %682
    %v684 = vsel %vm670, %v680, 0.0
    %685 = vadd.xlane.f32.xlu0 %v684
    %v686 = vpop.xlane.xlu0 %685
    %v687 = vmul.f32 %v683, %v674
    %v688 = vmul.f32 %v686, %v674
    %v689 = vadd.f32 %v687, 1e-06
    %v690 = vadd.f32 %v688, 1e-06
    %v691 = vrsqrt.pop %v689
    %v692 = vrsqrt.pop %v690
    %v693 = vmul.f32 %v677, %v691
    %v694 = vmul.f32 %v678, %v692
    %v695 = vlaneseq
    %v696 = vshrl.u32 %v695, 7
    %v697 = vsub.s32 0, %v696
    %v698 = vrot.slane %v664, %v697
    %v699 = vmul.f32 %v693, %v698
    %v700 = vmul.f32 %v694, %v698
    %v701 = vlaneseq
    %v702 = vshrl.u32 %v701, 7
    %v703 = vsub.s32 1, %v702
    %v704 = vrot.slane %v664, %v703
    %v705 = vadd.f32 %v699, %v704
    %v706 = vadd.f32 %v700, %v704
    %v707 = vpack.c.bf16 %v706, %v705
    %v708 = vlaneseq
    %v709 = vshrl.u32 %v708, 7
    %v710 = vsub.s32 0, %v709
    %v711 = vrot.slane %v665, %v710
    %v724 = vunpack.c.l.b16 %v616
    %v725 = vunpack.c.l.b16 %v617
    %v726 = vunpack.c.l.b16 %v618
    %v727 = vunpack.c.l.b16 %v619
    %v728 = vunpack.c.l.b16 %v620
    %v729 = vunpack.c.l.b16 %v621
    %v730 = vunpack.c.l.b16 %v622
    %v731 = vunpack.c.l.b16 %v623
    %v732 = vunpack.c.l.b16 %v624
    %v733 = vunpack.c.l.b16 %v625
    %v734 = vunpack.c.l.b16 %v626
    %v735 = vunpack.c.l.b16 %v627
    %v736 = vpack.c.b16 %v725, %v724
    %v737 = vpack.c.b16 %v727, %v726
    %v738 = vpack.c.b16 %v729, %v728
    %v739 = vpack.c.b16 %v731, %v730
    %v740 = vpack.c.b16 %v733, %v732
    %v741 = vpack.c.b16 %v735, %v734
    %v743 = vsel %vm666, %v707, 0
    %v746 = vsel %vm666, %v736, 0
    %v749 = vsel %vm666, %v737, 0
    %v752 = vsel %vm666, %v738, 0
    %v755 = vsel %vm666, %v739, 0
    %v758 = vsel %vm666, %v740, 0
    %v761 = vsel %vm666, %v741, 0
    %763 = vmatprep.subr.bf16.mxu0 0
    %764 = vmatpush1.bf16.xpose.msra.mxu0 0
    %765 = vmatprep.subr.bf16.mxu0 0
    %766 = vmatpush1.bf16.xpose.msra.mxu0 0
    %767 = vmatprep.subr.bf16.mxu0 0
    %768 = vmatpush1.bf16.xpose.msra.mxu0 %v761
    %769 = vmatprep.subr.bf16.mxu0 0
    %770 = vmatpush1.bf16.xpose.msra.mxu0 %v758
    %771 = vmatprep.subr.bf16.mxu0 0
    %772 = vmatpush1.bf16.xpose.msra.mxu0 %v755
    %773 = vmatprep.subr.bf16.mxu0 0
    %774 = vmatpush1.bf16.xpose.msra.mxu0 %v752
    %775 = vmatprep.subr.bf16.mxu0 0
    %776 = vmatpush1.bf16.xpose.msra.mxu0 %v749
    %777 = vmatprep.subr.bf16.mxu0 0
    %778 = vmatpush1.bf16.xpose.msra.mxu0 %v746
    %779 = vmatprep.subr.bf16.mxu0 0
    %780 = vmatpush2.bf16.xpose.msra.mxu0 0
    %781 = vmatprep.subr.bf16.mxu0 0
    %782 = vmatpush2.bf16.xpose.msra.mxu0 0
    %783 = vmatprep.subr.bf16.mxu0 0
    %784 = vmatpush2.bf16.xpose.msra.mxu0 0
    %785 = vmatprep.subr.bf16.mxu0 0
    %786 = vmatpush2.bf16.xpose.msra.mxu0 0
    %787 = vmatprep.subr.bf16.mxu0 0
    %788 = vmatpush2.bf16.xpose.msra.mxu0 0
    %789 = vmatprep.subr.bf16.mxu0 0
    %790 = vmatpush2.bf16.xpose.msra.mxu0 0
    %791 = vmatprep.subr.bf16.mxu0 0
    %792 = vmatpush2.bf16.xpose.msra.mxu0 0
    %793 = vmatprep.subr.bf16.mxu0 0
    %794 = vmatpush2.bf16.xpose.msra.mxu0 0
    %795 = vmatprep.mubr.bf16.mxu0 0
    %796 = vmatmul.mubr.bf16.gmra.mxu0 %v743
    %v797 = vpop.f32.mrf.mxu0
    %v798 = vadd.f32 %v711, %v797
    %v799 = vpop.f32.mrf.mxu0
    %v800 = vpop.f32.mrf.mxu0
    %v801 = vadd.f32 %v711, %v800
    %v802 = vpop.f32.mrf.mxu0
    %803 = vdwg.mxu0
    %v804 = vpack.c.bf16 %v798, %v798
    %v806 = vrot.slane %v798, 3
    %v808 = vrot.slane %v798, 6
    %v810 = vrot.slane %v798, 1
    %vm812 = vcmask 1044480
    %v813 = vsel %vm812, %v798, %v806
    %vm814 = vcmask 1041408
    %v815 = vsel %vm814, %v806, %v808
    %vm816 = vcmask 1046528
    %v817 = vsel %vm816, %v815, %v810
    %821 = vrot.lane.b32.xlu0 %v596, 32
    %v822 = vpop.permute.xlu0 %821
    %823 = vrot.lane.b32.xlu0 %v597, 32
    %v824 = vpop.permute.xlu0 %823
    %825 = vrot.lane.b32.xlu0 %v598, 32
    %v826 = vpop.permute.xlu0 %825
    %v830 = vmul.f32 %v813, %v822
    %v831 = vmul.f32 %v817, %v824
    %v832 = vmul.f32 %v810, %v826
    %v833 = vpack.c.bf16 %v831, %v830
    %v834 = vpack.c.bf16 %v832, %v832
    %835 = vrot.lane.b32.xlu0 %v596, 64
    %v836 = vpop.permute.xlu0 %835
    %837 = vrot.lane.b32.xlu0 %v597, 64
    %v838 = vpop.permute.xlu0 %837
    %839 = vrot.lane.b32.xlu0 %v598, 64
    %v840 = vpop.permute.xlu0 %839
    %v844 = vmul.f32 %v813, %v836
    %v845 = vmul.f32 %v817, %v838
    %v846 = vmul.f32 %v810, %v840
    %v847 = vpack.c.bf16 %v845, %v844
    %v848 = vpack.c.bf16 %v846, %v846
    %851 = vrot.lane.b32.xlu0 %v833, 96
    %v852 = vpop.permute.xlu0 %851
    %853 = vrot.lane.b32.xlu0 %v834, 96
    %v854 = vpop.permute.xlu0 %853
    %v856 = vsel %vm666, %v804, 0
    %v859 = vsel %vm666, %v852, 0
    %v862 = vsel %vm666, %v854, 0
    %864 = vmatprep.subr.bf16.mxu0 0
    %865 = vmatpush1.bf16.xpose.msra.mxu0 0
    %866 = vmatprep.subr.bf16.mxu0 0
    %867 = vmatpush1.bf16.xpose.msra.mxu0 0
    %868 = vmatprep.subr.bf16.mxu0 0
    %869 = vmatpush1.bf16.xpose.msra.mxu0 0
    %870 = vmatprep.subr.bf16.mxu0 0
    %871 = vmatpush1.bf16.xpose.msra.mxu0 0
    %872 = vmatprep.subr.bf16.mxu0 0
    %873 = vmatpush1.bf16.xpose.msra.mxu0 0
    %874 = vmatprep.subr.bf16.mxu0 0
    %875 = vmatpush1.bf16.xpose.msra.mxu0 0
    %876 = vmatprep.subr.bf16.mxu0 0
    %877 = vmatpush1.bf16.xpose.msra.mxu0 %v862
    %878 = vmatprep.subr.bf16.mxu0 0
    %879 = vmatpush1.bf16.xpose.msra.mxu0 %v859
    %880 = vmatprep.subr.bf16.mxu0 0
    %881 = vmatpush2.bf16.xpose.msra.mxu0 0
    %882 = vmatprep.subr.bf16.mxu0 0
    %883 = vmatpush2.bf16.xpose.msra.mxu0 0
    %884 = vmatprep.subr.bf16.mxu0 0
    %885 = vmatpush2.bf16.xpose.msra.mxu0 0
    %886 = vmatprep.subr.bf16.mxu0 0
    %887 = vmatpush2.bf16.xpose.msra.mxu0 0
    %888 = vmatprep.subr.bf16.mxu0 0
    %889 = vmatpush2.bf16.xpose.msra.mxu0 0
    %890 = vmatprep.subr.bf16.mxu0 0
    %891 = vmatpush2.bf16.xpose.msra.mxu0 0
    %892 = vmatprep.subr.bf16.mxu0 0
    %893 = vmatpush2.bf16.xpose.msra.mxu0 0
    %894 = vmatprep.subr.bf16.mxu0 0
    %895 = vmatpush2.bf16.xpose.msra.mxu0 0
    %896 = vmatprep.mubr.bf16.mxu0 0
    %897 = vmatmul.mubr.bf16.gmra.mxu0 %v856
    %v898 = vpop.f32.mrf.mxu0
    %v899 = vadd.f32 0.0, %v898
    %v900 = vpop.f32.mrf.mxu0
    %v901 = vpop.f32.mrf.mxu0
    %v902 = vpop.f32.mrf.mxu0
    %903 = vdwg.mxu0
    %vm904 = vcmask 159744
    %v905 = vsel %vm904, %v899, -inf
    %906 = vmax.xlane.f32.xlu0 %v905
    %v907 = vpop.xlane.xlu0 %906
    %v908 = vsub.f32 %v899, %v907
    %v909 = vmul.f32 %v908, 1.442695
    %v910 = vpow.pop %v909
    %vm911 = vcmask 162816
    %v913 = vsel %vm911, %v910, 0
    %vm915 = vcmask 1043456
    %v917 = vsel %vm915, %v615, 0
    %919 = vmatprep.subr.mxu0 0.0
    %920 = vmatpush1.msra.mxu0 0.0
    %921 = vmatprep.subr.mxu0 0.0
    %922 = vmatpush1.msra.mxu0 0.0
    %923 = vmatprep.subr.mxu0 0.0
    %924 = vmatpush1.msra.mxu0 0.0
    %925 = vmatprep.subr.mxu0 0.0
    %926 = vmatpush1.msra.mxu0 0.0
    %927 = vmatprep.subr.mxu0 0.0
    %928 = vmatpush1.msra.mxu0 0.0
    %929 = vmatprep.subr.mxu0 0.0
    %930 = vmatpush1.msra.mxu0 0.0
    %931 = vmatprep.subr.mxu0 0.0
    %932 = vmatpush1.msra.mxu0 0.0
    %933 = vmatprep.subr.mxu0 0.0
    %934 = vmatpush1.msra.mxu0 0.0
    %935 = vmatprep.subr.mxu0 0.0
    %936 = vmatpush1.msra.mxu0 0.0
    %937 = vmatprep.subr.mxu0 0.0
    %938 = vmatpush1.msra.mxu0 0.0
    %939 = vmatprep.subr.mxu0 0.0
    %940 = vmatpush1.msra.mxu0 0.0
    %941 = vmatprep.subr.mxu0 0.0
    %942 = vmatpush1.msra.mxu0 0.0
    %943 = vmatprep.subr.mxu0 0.0
    %944 = vmatpush1.msra.mxu0 0.0
    %945 = vmatprep.subr.mxu0 0.0
    %946 = vmatpush1.msra.mxu0 %v917
    %947 = vmatprep.subr.mxu0 0.0
    %948 = vmatpush1.msra.mxu0 %v614
    %949 = vmatprep.subr.mxu0 0.0
    %950 = vmatpush1.msra.mxu0 %v613
    %951 = vmatprep.subr.mxu0 0.0
    %952 = vmatpush2.msra.mxu0 0.0
    %953 = vmatprep.subr.mxu0 0.0
    %954 = vmatpush2.msra.mxu0 0.0
    %955 = vmatprep.subr.mxu0 0.0
    %956 = vmatpush2.msra.mxu0 0.0
    %957 = vmatprep.subr.mxu0 0.0
    %958 = vmatpush2.msra.mxu0 0.0
    %959 = vmatprep.subr.mxu0 0.0
    %960 = vmatpush2.msra.mxu0 0.0
    %961 = vmatprep.subr.mxu0 0.0
    %962 = vmatpush2.msra.mxu0 0.0
    %963 = vmatprep.subr.mxu0 0.0
    %964 = vmatpush2.msra.mxu0 0.0
    %965 = vmatprep.subr.mxu0 0.0
    %966 = vmatpush2.msra.mxu0 0.0
    %967 = vmatprep.subr.mxu0 0.0
    %968 = vmatpush2.msra.mxu0 0.0
    %969 = vmatprep.subr.mxu0 0.0
    %970 = vmatpush2.msra.mxu0 0.0
    %971 = vmatprep.subr.mxu0 0.0
    %972 = vmatpush2.msra.mxu0 0.0
    %973 = vmatprep.subr.mxu0 0.0
    %974 = vmatpush2.msra.mxu0 0.0
    %975 = vmatprep.subr.mxu0 0.0
    %976 = vmatpush2.msra.mxu0 0.0
    %977 = vmatprep.subr.mxu0 0.0
    %978 = vmatpush2.msra.mxu0 0.0
    %979 = vmatprep.subr.mxu0 0.0
    %980 = vmatpush2.msra.mxu0 0.0
    %981 = vmatprep.subr.mxu0 0.0
    %982 = vmatpush2.msra.mxu0 0.0
    %983 = vmatprep.mubr.f32.mxu0 0.0
    %984 = vmatmul.mubr.f32.gmra.mxu0 %v913
    %v985 = vpop.f32.mrf.mxu0
    %v986 = vadd.f32 0.0, %v985
    %v987 = vpop.f32.mrf.mxu0
    %988 = vdwg.mxu0
    %v989 = vrcp.pop %v986
    %v990 = vmul.f32 %v910, %v989
    %v991 = vpack.c.bf16 %v990, %v990
    %994 = vrot.lane.b32.xlu0 %v847, 64
    %v995 = vpop.permute.xlu0 %994
    %996 = vrot.lane.b32.xlu0 %v848, 64
    %v997 = vpop.permute.xlu0 %996
    %v1000 = vsel %vm911, %v991, 0
    %v1003 = vsel %vm814, %v997, 0
    %1005 = vmatprep.subr.bf16.mxu0 0
    %1006 = vmatpush1.bf16.msra.mxu0 0
    %1007 = vmatprep.subr.bf16.mxu0 0
    %1008 = vmatpush1.bf16.msra.mxu0 0
    %1009 = vmatprep.subr.bf16.mxu0 0
    %1010 = vmatpush1.bf16.msra.mxu0 0
    %1011 = vmatprep.subr.bf16.mxu0 0
    %1012 = vmatpush1.bf16.msra.mxu0 0
    %1013 = vmatprep.subr.bf16.mxu0 0
    %1014 = vmatpush1.bf16.msra.mxu0 0
    %1015 = vmatprep.subr.bf16.mxu0 0
    %1016 = vmatpush1.bf16.msra.mxu0 0
    %1017 = vmatprep.subr.bf16.mxu0 0
    %1018 = vmatpush1.bf16.msra.mxu0 %v1003
    %1019 = vmatprep.subr.bf16.mxu0 0
    %1020 = vmatpush1.bf16.msra.mxu0 %v995
    %1021 = vmatprep.subr.bf16.mxu0 0
    %1022 = vmatpush2.bf16.msra.mxu0 0
    %1023 = vmatprep.subr.bf16.mxu0 0
    %1024 = vmatpush2.bf16.msra.mxu0 0
    %1025 = vmatprep.subr.bf16.mxu0 0
    %1026 = vmatpush2.bf16.msra.mxu0 0
    %1027 = vmatprep.subr.bf16.mxu0 0
    %1028 = vmatpush2.bf16.msra.mxu0 0
    %1029 = vmatprep.subr.bf16.mxu0 0
    %1030 = vmatpush2.bf16.msra.mxu0 0
    %1031 = vmatprep.subr.bf16.mxu0 0
    %1032 = vmatpush2.bf16.msra.mxu0 0
    %1033 = vmatprep.subr.bf16.mxu0 0
    %1034 = vmatpush2.bf16.msra.mxu0 0
    %1035 = vmatprep.subr.bf16.mxu0 0
    %1036 = vmatpush2.bf16.msra.mxu0 0
    %1037 = vmatprep.mubr.bf16.mxu0 0
    %1038 = vmatmul.mubr.bf16.gmra.mxu0 %v1000
    %v1039 = vpop.f32.mrf.mxu0
    %v1040 = vadd.f32 0.0, %v1039
    %v1041 = vpop.f32.mrf.mxu0
    %v1042 = vpop.f32.mrf.mxu0
    %v1043 = vpop.f32.mrf.mxu0
    %1044 = vdwg.mxu0
    %vm1045 = vcmask 258048
    %1046 = vst.msk [vmem:[#allocation2] sm:$0x1f] %vm1045, %v1040
    %v1047 = vpack.c.bf16 %v801, %v798
    %vm1049 = vcmask 1042432
    %v1050 = vrot.slane %v798, 5
    %v1051 = vrot.slane %v801, 5
    %v1052 = vsel %vm1049, %v1050, %v1051
    %v1054 = vrot.slane %v801, 3
    %v1055 = vsel %vm812, %v806, %v1054
    %v1057 = vrot.slane %v801, 6
    %v1058 = vsel %vm814, %v808, %v1057
    %v1060 = vsel %vm812, %v1052, %v798
    %v1061 = vsel %vm814, %v801, %v1055
    %v1062 = vsel %vm816, %v1061, %v808
    %v1063 = vmul.f32 %v1060, %v822
    %v1064 = vmul.f32 %v1062, %v824
    %v1065 = vmul.f32 %v1058, %v826
    %v1066 = vpack.c.bf16 %v1064, %v1063
    %v1067 = vpack.c.bf16 %v1065, %v1065
    %v1068 = vmul.f32 %v1060, %v836
    %v1069 = vmul.f32 %v1062, %v838
    %v1070 = vmul.f32 %v1058, %v840
    %v1071 = vpack.c.bf16 %v1069, %v1068
    %v1072 = vpack.c.bf16 %v1070, %v1070
    %v1074 = vshrl.u32 %v1047, 16
    %v1076 = vrot.slane %v1074, 2
    %v1077 = vshll.u32 %v1047, 16
    %v1079 = vrot.slane %v1077, 3
    %v1080 = vor.u32 %v1076, %v1079
    %1083 = vrot.lane.b32.xlu0 %v1066, 96
    %v1084 = vpop.permute.xlu0 %1083
    %1085 = vrot.lane.b32.xlu0 %v1067, 96
    %v1086 = vpop.permute.xlu0 %1085
    %v1088 = vsel %vm666, %v1080, 0
    %v1091 = vsel %vm666, %v1084, 0
    %v1094 = vsel %vm666, %v1086, 0
    %1096 = vmatprep.subr.bf16.mxu0 0
    %1097 = vmatpush1.bf16.xpose.msra.mxu0 0
    %1098 = vmatprep.subr.bf16.mxu0 0
    %1099 = vmatpush1.bf16.xpose.msra.mxu0 0
    %1100 = vmatprep.subr.bf16.mxu0 0
    %1101 = vmatpush1.bf16.xpose.msra.mxu0 0
    %1102 = vmatprep.subr.bf16.mxu0 0
    %1103 = vmatpush1.bf16.xpose.msra.mxu0 0
    %1104 = vmatprep.subr.bf16.mxu0 0
    %1105 = vmatpush1.bf16.xpose.msra.mxu0 0
    %1106 = vmatprep.subr.bf16.mxu0 0
    %1107 = vmatpush1.bf16.xpose.msra.mxu0 0
    %1108 = vmatprep.subr.bf16.mxu0 0
    %1109 = vmatpush1.bf16.xpose.msra.mxu0 %v1094
    %1110 = vmatprep.subr.bf16.mxu0 0
    %1111 = vmatpush1.bf16.xpose.msra.mxu0 %v1091
    %1112 = vmatprep.subr.bf16.mxu0 0
    %1113 = vmatpush2.bf16.xpose.msra.mxu0 0
    %1114 = vmatprep.subr.bf16.mxu0 0
    %1115 = vmatpush2.bf16.xpose.msra.mxu0 0
    %1116 = vmatprep.subr.bf16.mxu0 0
    %1117 = vmatpush2.bf16.xpose.msra.mxu0 0
    %1118 = vmatprep.subr.bf16.mxu0 0
    %1119 = vmatpush2.bf16.xpose.msra.mxu0 0
    %1120 = vmatprep.subr.bf16.mxu0 0
    %1121 = vmatpush2.bf16.xpose.msra.mxu0 0
    %1122 = vmatprep.subr.bf16.mxu0 0
    %1123 = vmatpush2.bf16.xpose.msra.mxu0 0
    %1124 = vmatprep.subr.bf16.mxu0 0
    %1125 = vmatpush2.bf16.xpose.msra.mxu0 0
    %1126 = vmatprep.subr.bf16.mxu0 0
    %1127 = vmatpush2.bf16.xpose.msra.mxu0 0
    %1128 = vmatprep.mubr.bf16.mxu0 0
    %1129 = vmatmul.mubr.bf16.gmra.mxu0 %v1088
    %v1130 = vpop.f32.mrf.mxu0
    %v1131 = vadd.f32 0.0, %v1130
    %v1132 = vpop.f32.mrf.mxu0
    %v1133 = vpop.f32.mrf.mxu0
    %v1134 = vpop.f32.mrf.mxu0
    %1135 = vdwg.mxu0
    %v1136 = vsel %vm904, %v1131, -inf
    %1137 = vmax.xlane.f32.xlu0 %v1136
    %v1138 = vpop.xlane.xlu0 %1137
    %v1139 = vsub.f32 %v1131, %v1138
    %v1140 = vmul.f32 %v1139, 1.442695
    %v1141 = vpow.pop %v1140
    %v1143 = vsel %vm911, %v1141, 0
    %1145 = vmatprep.subr.mxu0 0.0
    %1146 = vmatpush1.msra.mxu0 0.0
    %1147 = vmatprep.subr.mxu0 0.0
    %1148 = vmatpush1.msra.mxu0 0.0
    %1149 = vmatprep.subr.mxu0 0.0
    %1150 = vmatpush1.msra.mxu0 0.0
    %1151 = vmatprep.subr.mxu0 0.0
    %1152 = vmatpush1.msra.mxu0 0.0
    %1153 = vmatprep.subr.mxu0 0.0
    %1154 = vmatpush1.msra.mxu0 0.0
    %1155 = vmatprep.subr.mxu0 0.0
    %1156 = vmatpush1.msra.mxu0 0.0
    %1157 = vmatprep.subr.mxu0 0.0
    %1158 = vmatpush1.msra.mxu0 0.0
    %1159 = vmatprep.subr.mxu0 0.0
    %1160 = vmatpush1.msra.mxu0 0.0
    %1161 = vmatprep.subr.mxu0 0.0
    %1162 = vmatpush1.msra.mxu0 0.0
    %1163 = vmatprep.subr.mxu0 0.0
    %1164 = vmatpush1.msra.mxu0 0.0
    %1165 = vmatprep.subr.mxu0 0.0
    %1166 = vmatpush1.msra.mxu0 0.0
    %1167 = vmatprep.subr.mxu0 0.0
    %1168 = vmatpush1.msra.mxu0 0.0
    %1169 = vmatprep.subr.mxu0 0.0
    %1170 = vmatpush1.msra.mxu0 0.0
    %1171 = vmatprep.subr.mxu0 0.0
    %1172 = vmatpush1.msra.mxu0 %v917
    %1173 = vmatprep.subr.mxu0 0.0
    %1174 = vmatpush1.msra.mxu0 %v614
    %1175 = vmatprep.subr.mxu0 0.0
    %1176 = vmatpush1.msra.mxu0 %v613
    %1177 = vmatprep.subr.mxu0 0.0
    %1178 = vmatpush2.msra.mxu0 0.0
    %1179 = vmatprep.subr.mxu0 0.0
    %1180 = vmatpush2.msra.mxu0 0.0
    %1181 = vmatprep.subr.mxu0 0.0
    %1182 = vmatpush2.msra.mxu0 0.0
    %1183 = vmatprep.subr.mxu0 0.0
    %1184 = vmatpush2.msra.mxu0 0.0
    %1185 = vmatprep.subr.mxu0 0.0
    %1186 = vmatpush2.msra.mxu0 0.0
    %1187 = vmatprep.subr.mxu0 0.0
    %1188 = vmatpush2.msra.mxu0 0.0
    %1189 = vmatprep.subr.mxu0 0.0
    %1190 = vmatpush2.msra.mxu0 0.0
    %1191 = vmatprep.subr.mxu0 0.0
    %1192 = vmatpush2.msra.mxu0 0.0
    %1193 = vmatprep.subr.mxu0 0.0
    %1194 = vmatpush2.msra.mxu0 0.0
    %1195 = vmatprep.subr.mxu0 0.0
    %1196 = vmatpush2.msra.mxu0 0.0
    %1197 = vmatprep.subr.mxu0 0.0
    %1198 = vmatpush2.msra.mxu0 0.0
    %1199 = vmatprep.subr.mxu0 0.0
    %1200 = vmatpush2.msra.mxu0 0.0
    %1201 = vmatprep.subr.mxu0 0.0
    %1202 = vmatpush2.msra.mxu0 0.0
    %1203 = vmatprep.subr.mxu0 0.0
    %1204 = vmatpush2.msra.mxu0 0.0
    %1205 = vmatprep.subr.mxu0 0.0
    %1206 = vmatpush2.msra.mxu0 0.0
    %1207 = vmatprep.subr.mxu0 0.0
    %1208 = vmatpush2.msra.mxu0 0.0
    %1209 = vmatprep.mubr.f32.mxu0 0.0
    %1210 = vmatmul.mubr.f32.gmra.mxu0 %v1143
    %v1211 = vpop.f32.mrf.mxu0
    %v1212 = vadd.f32 0.0, %v1211
    %v1213 = vpop.f32.mrf.mxu0
    %1214 = vdwg.mxu0
    %v1215 = vrcp.pop %v1212
    %v1216 = vmul.f32 %v1141, %v1215
    %v1217 = vpack.c.bf16 %v1216, %v1216
    %1220 = vrot.lane.b32.xlu0 %v1071, 64
    %v1221 = vpop.permute.xlu0 %1220
    %1222 = vrot.lane.b32.xlu0 %v1072, 64
    %v1223 = vpop.permute.xlu0 %1222
    %v1226 = vsel %vm911, %v1217, 0
    %v1229 = vsel %vm814, %v1223, 0
    %1231 = vmatprep.subr.bf16.mxu0 0
    %1232 = vmatpush1.bf16.msra.mxu0 0
    %1233 = vmatprep.subr.bf16.mxu0 0
    %1234 = vmatpush1.bf16.msra.mxu0 0
    %1235 = vmatprep.subr.bf16.mxu0 0
    %1236 = vmatpush1.bf16.msra.mxu0 0
    %1237 = vmatprep.subr.bf16.mxu0 0
    %1238 = vmatpush1.bf16.msra.mxu0 0
    %1239 = vmatprep.subr.bf16.mxu0 0
    %1240 = vmatpush1.bf16.msra.mxu0 0
    %1241 = vmatprep.subr.bf16.mxu0 0
    %1242 = vmatpush1.bf16.msra.mxu0 0
    %1243 = vmatprep.subr.bf16.mxu0 0
    %1244 = vmatpush1.bf16.msra.mxu0 %v1229
    %1245 = vmatprep.subr.bf16.mxu0 0
    %1246 = vmatpush1.bf16.msra.mxu0 %v1221
    %1247 = vmatprep.subr.bf16.mxu0 0
    %1248 = vmatpush2.bf16.msra.mxu0 0
    %1249 = vmatprep.subr.bf16.mxu0 0
    %1250 = vmatpush2.bf16.msra.mxu0 0
    %1251 = vmatprep.subr.bf16.mxu0 0
    %1252 = vmatpush2.bf16.msra.mxu0 0
    %1253 = vmatprep.subr.bf16.mxu0 0
    %1254 = vmatpush2.bf16.msra.mxu0 0
    %1255 = vmatprep.subr.bf16.mxu0 0
    %1256 = vmatpush2.bf16.msra.mxu0 0
    %1257 = vmatprep.subr.bf16.mxu0 0
    %1258 = vmatpush2.bf16.msra.mxu0 0
    %1259 = vmatprep.subr.bf16.mxu0 0
    %1260 = vmatpush2.bf16.msra.mxu0 0
    %1261 = vmatprep.subr.bf16.mxu0 0
    %1262 = vmatpush2.bf16.msra.mxu0 0
    %1263 = vmatprep.mubr.bf16.mxu0 0
    %1264 = vmatmul.mubr.bf16.gmra.mxu0 %v1226
    %v1265 = vpop.f32.mrf.mxu0
    %v1266 = vadd.f32 0.0, %v1265
    %v1267 = vpop.f32.mrf.mxu0
    %v1268 = vpop.f32.mrf.mxu0
    %v1269 = vpop.f32.mrf.mxu0
    %1270 = vdwg.mxu0
    %1271 = vst.msk [vmem:[#allocation2 + $0x5] sm:$0x1f] %vm1045, %v1266
    %v1272 = vld [vmem:[#allocation2] sm:$0xff]
    %v1273 = vld [vmem:[#allocation2 + $0x8] sm:$0x3]
    %v1274 = vpack.c.bf16 %v1273, %v1272
    %v1279 = vunpack.c.l.b16 %v628
    %v1280 = vunpack.c.l.b16 %v629
    %v1281 = vunpack.c.l.b16 %v630
    %v1282 = vunpack.c.l.b16 %v631
    %v1283 = vpack.c.b16 %v1280, %v1279
    %v1284 = vpack.c.b16 %v1282, %v1281
    %v1286 = vsel %vm666, %v1274, 0
    %v1289 = vsel %vm666, %v1283, 0
    %v1292 = vsel %vm666, %v1284, 0
    %1294 = vmatprep.subr.bf16.mxu0 0
    %1295 = vmatpush1.bf16.xpose.msra.mxu0 0
    %1296 = vmatprep.subr.bf16.mxu0 0
    %1297 = vmatpush1.bf16.xpose.msra.mxu0 0
    %1298 = vmatprep.subr.bf16.mxu0 0
    %1299 = vmatpush1.bf16.xpose.msra.mxu0 0
    %1300 = vmatprep.subr.bf16.mxu0 0
    %1301 = vmatpush1.bf16.xpose.msra.mxu0 0
    %1302 = vmatprep.subr.bf16.mxu0 0
    %1303 = vmatpush1.bf16.xpose.msra.mxu0 0
    %1304 = vmatprep.subr.bf16.mxu0 0
    %1305 = vmatpush1.bf16.xpose.msra.mxu0 0
    %1306 = vmatprep.subr.bf16.mxu0 0
    %1307 = vmatpush1.bf16.xpose.msra.mxu0 %v1292
    %1308 = vmatprep.subr.bf16.mxu0 0
    %1309 = vmatpush1.bf16.xpose.msra.mxu0 %v1289
    %1310 = vmatprep.subr.bf16.mxu0 0
    %1311 = vmatpush2.bf16.xpose.msra.mxu0 0
    %1312 = vmatprep.subr.bf16.mxu0 0
    %1313 = vmatpush2.bf16.xpose.msra.mxu0 0
    %1314 = vmatprep.subr.bf16.mxu0 0
    %1315 = vmatpush2.bf16.xpose.msra.mxu0 0
    %1316 = vmatprep.subr.bf16.mxu0 0
    %1317 = vmatpush2.bf16.xpose.msra.mxu0 0
    %1318 = vmatprep.subr.bf16.mxu0 0
    %1319 = vmatpush2.bf16.xpose.msra.mxu0 0
    %1320 = vmatprep.subr.bf16.mxu0 0
    %1321 = vmatpush2.bf16.xpose.msra.mxu0 0
    %1322 = vmatprep.subr.bf16.mxu0 0
    %1323 = vmatpush2.bf16.xpose.msra.mxu0 0
    %1324 = vmatprep.subr.bf16.mxu0 0
    %1325 = vmatpush2.bf16.xpose.msra.mxu0 0
    %1326 = vmatprep.mubr.bf16.mxu0 0
    %1327 = vmatmul.mubr.bf16.gmra.mxu0 %v1286
    %v1328 = vpop.f32.mrf.mxu0
    %v1329 = vadd.f32 0.0, %v1328
    %v1330 = vpop.f32.mrf.mxu0
    %v1331 = vpop.f32.mrf.mxu0
    %v1332 = vadd.f32 0.0, %v1331
    %v1333 = vpop.f32.mrf.mxu0
    %1334 = vdwg.mxu0
    %v1335 = vadd.f32 %v546, %v1329
    %v1336 = vadd.f32 %v549, %v1332
    %v1337 = vlaneseq
    %v1338 = vshrl.u32 %v1337, 7
    %v1339 = vsub.s32 4, %v1338
    %v1340 = vrot.slane %v664, %v1339
    %v1341 = vadd.f32 %v1335, %v1340
    %v1342 = vadd.f32 %v1336, %v1340
    %v1343 = vsel %vm666, %v1341, 0.0
    %1344 = vadd.xlane.f32.xlu0 %v1343
    %v1345 = vpop.xlane.xlu0 %1344
    %v1346 = vsel %vm670, %v1342, 0.0
    %1347 = vadd.xlane.f32.xlu0 %v1346
    %v1348 = vpop.xlane.xlu0 %1347
    %v1349 = vmul.f32 %v1345, %v674
    %v1350 = vmul.f32 %v1348, %v674
    %v1351 = vsub.f32 %v1341, %v1349
    %v1352 = vsub.f32 %v1342, %v1350
    %v1353 = vmul.f32 %v1351, %v1351
    %v1354 = vmul.f32 %v1352, %v1352
    %v1355 = vsel %vm666, %v1353, 0.0
    %1356 = vadd.xlane.f32.xlu0 %v1355
    %v1357 = vpop.xlane.xlu0 %1356
    %v1358 = vsel %vm670, %v1354, 0.0
    %1359 = vadd.xlane.f32.xlu0 %v1358
    %v1360 = vpop.xlane.xlu0 %1359
    %v1361 = vmul.f32 %v1357, %v674
    %v1362 = vmul.f32 %v1360, %v674
    %v1363 = vadd.f32 %v1361, 1e-06
    %v1364 = vadd.f32 %v1362, 1e-06
    %v1365 = vrsqrt.pop %v1363
    %v1366 = vrsqrt.pop %v1364
    %v1367 = vmul.f32 %v1351, %v1365
    %v1368 = vmul.f32 %v1352, %v1366
    %v1369 = vlaneseq
    %v1370 = vshrl.u32 %v1369, 7
    %v1371 = vsub.s32 2, %v1370
    %v1372 = vrot.slane %v664, %v1371
    %v1373 = vmul.f32 %v1367, %v1372
    %v1374 = vmul.f32 %v1368, %v1372
    %v1375 = vlaneseq
    %v1376 = vshrl.u32 %v1375, 7
    %v1377 = vsub.s32 3, %v1376
    %v1378 = vrot.slane %v664, %v1377
    %v1379 = vadd.f32 %v1373, %v1378
    %v1380 = vadd.f32 %v1374, %v1378
    %v1381 = vpack.c.bf16 %v1380, %v1379
    %v1382 = vlaneseq
    %v1383 = vshrl.u32 %v1382, 7
    %v1384 = vsub.s32 1, %v1383
    %v1385 = vrot.slane %v665, %v1384
    %v1402 = vunpack.c.l.b16 %v632
    %v1403 = vunpack.c.l.b16 %v633
    %v1404 = vunpack.c.l.b16 %v634
    %v1405 = vunpack.c.l.b16 %v635
    %v1406 = vunpack.c.l.b16 %v636
    %v1407 = vunpack.c.l.b16 %v637
    %v1408 = vunpack.c.l.b16 %v638
    %v1409 = vunpack.c.l.b16 %v639
    %v1410 = vunpack.c.l.b16 %v640
    %v1411 = vunpack.c.l.b16 %v641
    %v1412 = vunpack.c.l.b16 %v642
    %v1413 = vunpack.c.l.b16 %v643
    %v1414 = vunpack.c.l.b16 %v644
    %v1415 = vunpack.c.l.b16 %v645
    %v1416 = vunpack.c.l.b16 %v646
    %v1417 = vunpack.c.l.b16 %v647
    %v1418 = vpack.c.b16 %v1403, %v1402
    %v1419 = vpack.c.b16 %v1405, %v1404
    %v1420 = vpack.c.b16 %v1407, %v1406
    %v1421 = vpack.c.b16 %v1409, %v1408
    %v1422 = vpack.c.b16 %v1411, %v1410
    %v1423 = vpack.c.b16 %v1413, %v1412
    %v1424 = vpack.c.b16 %v1415, %v1414
    %v1425 = vpack.c.b16 %v1417, %v1416
    %v1427 = vsel %vm666, %v1381, 0
    %v1430 = vsel %vm666, %v1418, 0
    %v1433 = vsel %vm666, %v1419, 0
    %v1436 = vsel %vm666, %v1420, 0
    %v1439 = vsel %vm666, %v1421, 0
    %v1442 = vsel %vm666, %v1422, 0
    %v1445 = vsel %vm666, %v1423, 0
    %v1448 = vsel %vm666, %v1424, 0
    %v1451 = vsel %vm666, %v1425, 0
    %1453 = vmatprep.subr.bf16.mxu0 0
    %1454 = vmatpush1.bf16.xpose.msra.mxu0 %v1451
    %1455 = vmatprep.subr.bf16.mxu0 0
    %1456 = vmatpush1.bf16.xpose.msra.mxu0 %v1448
    %1457 = vmatprep.subr.bf16.mxu0 0
    %1458 = vmatpush1.bf16.xpose.msra.mxu0 %v1445
    %1459 = vmatprep.subr.bf16.mxu0 0
    %1460 = vmatpush1.bf16.xpose.msra.mxu0 %v1442
    %1461 = vmatprep.subr.bf16.mxu0 0
    %1462 = vmatpush1.bf16.xpose.msra.mxu0 %v1439
    %1463 = vmatprep.subr.bf16.mxu0 0
    %1464 = vmatpush1.bf16.xpose.msra.mxu0 %v1436
    %1465 = vmatprep.subr.bf16.mxu0 0
    %1466 = vmatpush1.bf16.xpose.msra.mxu0 %v1433
    %1467 = vmatprep.subr.bf16.mxu0 0
    %1468 = vmatpush1.bf16.xpose.msra.mxu0 %v1430
    %1469 = vmatprep.subr.bf16.mxu0 0
    %1470 = vmatpush2.bf16.xpose.msra.mxu0 0
    %1471 = vmatprep.subr.bf16.mxu0 0
    %1472 = vmatpush2.bf16.xpose.msra.mxu0 0
    %1473 = vmatprep.subr.bf16.mxu0 0
    %1474 = vmatpush2.bf16.xpose.msra.mxu0 0
    %1475 = vmatprep.subr.bf16.mxu0 0
    %1476 = vmatpush2.bf16.xpose.msra.mxu0 0
    %1477 = vmatprep.subr.bf16.mxu0 0
    %1478 = vmatpush2.bf16.xpose.msra.mxu0 0
    %1479 = vmatprep.subr.bf16.mxu0 0
    %1480 = vmatpush2.bf16.xpose.msra.mxu0 0
    %1481 = vmatprep.subr.bf16.mxu0 0
    %1482 = vmatpush2.bf16.xpose.msra.mxu0 0
    %1483 = vmatprep.subr.bf16.mxu0 0
    %1484 = vmatpush2.bf16.xpose.msra.mxu0 0
    %1485 = vmatprep.mubr.bf16.mxu0 0
    %1486 = vmatmul.mubr.bf16.gmra.mxu0 %v1427
    %v1487 = vpop.f32.mrf.mxu0
    %v1488 = vadd.f32 %v1385, %v1487
    %v1489 = vpop.f32.mrf.mxu0
    %v1490 = vpop.f32.mrf.mxu0
    %v1491 = vadd.f32 %v1385, %v1490
    %v1492 = vpop.f32.mrf.mxu0
    %1493 = vdwg.mxu0
    %v1494 = vmul.f32 %v1488, %v1488
    %v1495 = vmul.f32 %v1491, %v1491
    %v1496 = vmul.f32 %v1488, %v1494
    %v1497 = vmul.f32 %v1491, %v1495
    %v1498 = vmul.f32 %v1496, 0.044715
    %v1499 = vmul.f32 %v1497, 0.044715
    %v1500 = vadd.f32 %v1488, %v1498
    %v1501 = vadd.f32 %v1491, %v1499
    %v1502 = vmul.f32 %v1500, 0.7978846
    %v1503 = vmul.f32 %v1501, 0.7978846
    %v1504 = vtanh.pop %v1502
    %v1505 = vtanh.pop %v1503
    %v1506 = vadd.f32 %v1504, 1.0
    %v1507 = vadd.f32 %v1505, 1.0
    %v1508 = vmul.f32 %v1506, 0.5
    %v1509 = vmul.f32 %v1507, 0.5
    %v1510 = vmul.f32 %v1488, %v1508
    %v1511 = vmul.f32 %v1491, %v1509
    %v1512 = vpack.c.bf16 %v1511, %v1510
    %v1529 = vunpack.c.l.b16 %v648
    %v1530 = vunpack.c.l.b16 %v649
    %v1531 = vunpack.c.l.b16 %v650
    %v1532 = vunpack.c.l.b16 %v651
    %v1533 = vunpack.c.l.b16 %v652
    %v1534 = vunpack.c.l.b16 %v653
    %v1535 = vunpack.c.l.b16 %v654
    %v1536 = vunpack.c.l.b16 %v655
    %v1537 = vunpack.c.l.b16 %v656
    %v1538 = vunpack.c.l.b16 %v657
    %v1539 = vunpack.c.l.b16 %v658
    %v1540 = vunpack.c.l.b16 %v659
    %v1541 = vunpack.c.l.b16 %v660
    %v1542 = vunpack.c.l.b16 %v661
    %v1543 = vunpack.c.l.b16 %v662
    %v1544 = vunpack.c.l.b16 %v663
    %v1545 = vpack.c.b16 %v1530, %v1529
    %v1546 = vpack.c.b16 %v1532, %v1531
    %v1547 = vpack.c.b16 %v1534, %v1533
    %v1548 = vpack.c.b16 %v1536, %v1535
    %v1549 = vpack.c.b16 %v1538, %v1537
    %v1550 = vpack.c.b16 %v1540, %v1539
    %v1551 = vpack.c.b16 %v1542, %v1541
    %v1552 = vpack.c.b16 %v1544, %v1543
    %1561 = vmatprep.subr.bf16.mxu0 0
    %1562 = vmatpush1.bf16.msra.mxu0 %v1552
    %1563 = vmatprep.subr.bf16.mxu0 0
    %1564 = vmatpush1.bf16.msra.mxu0 %v1551
    %1565 = vmatprep.subr.bf16.mxu0 0
    %1566 = vmatpush1.bf16.msra.mxu0 %v1550
    %1567 = vmatprep.subr.bf16.mxu0 0
    %1568 = vmatpush1.bf16.msra.mxu0 %v1549
    %1569 = vmatprep.subr.bf16.mxu0 0
    %1570 = vmatpush1.bf16.msra.mxu0 %v1548
    %1571 = vmatprep.subr.bf16.mxu0 0
    %1572 = vmatpush1.bf16.msra.mxu0 %v1547
    %1573 = vmatprep.subr.bf16.mxu0 0
    %1574 = vmatpush1.bf16.msra.mxu0 %v1546
    %1575 = vmatprep.subr.bf16.mxu0 0
    %1576 = vmatpush1.bf16.msra.mxu0 %v1545
    %1577 = vmatprep.subr.bf16.mxu0 0
    %1578 = vmatpush2.bf16.msra.mxu0 0
    %1579 = vmatprep.subr.bf16.mxu0 0
    %1580 = vmatpush2.bf16.msra.mxu0 0
    %1581 = vmatprep.subr.bf16.mxu0 0
    %1582 = vmatpush2.bf16.msra.mxu0 0
    %1583 = vmatprep.subr.bf16.mxu0 0
    %1584 = vmatpush2.bf16.msra.mxu0 0
    %1585 = vmatprep.subr.bf16.mxu0 0
    %1586 = vmatpush2.bf16.msra.mxu0 0
    %1587 = vmatprep.subr.bf16.mxu0 0
    %1588 = vmatpush2.bf16.msra.mxu0 0
    %1589 = vmatprep.subr.bf16.mxu0 0
    %1590 = vmatpush2.bf16.msra.mxu0 0
    %1591 = vmatprep.subr.bf16.mxu0 0
    %1592 = vmatpush2.bf16.msra.mxu0 0
    %1593 = vmatprep.mubr.bf16.mxu0 0
    %1594 = vmatmul.mubr.bf16.gmra.mxu0 %v1512
    %v1595 = vpop.f32.mrf.mxu0
    %v1596 = vadd.f32 0.0, %v1595
    %v1597 = vpop.f32.mrf.mxu0
    %v1598 = vpop.f32.mrf.mxu0
    %v1599 = vadd.f32 0.0, %v1598
    %v1600 = vpop.f32.mrf.mxu0
    %1601 = vdwg.mxu0
    %v1602 = vadd.f32 %v1341, %v1596
    %v1603 = vadd.f32 %v1342, %v1599
    %v1604 = vlaneseq
    %v1605 = vshrl.u32 %v1604, 7
    %v1606 = vsub.s32 5, %v1605
    %v1607 = vrot.slane %v664, %v1606
    %v1608 = vadd.f32 %v1602, %v1607
    %v1609 = vadd.f32 %v1603, %v1607
    %s1610 = scalar_lea.vmem %s3, 192
    %v1611 = vld [vmem:[%s1610] sm:$0xf]
    %v1612 = vld [vmem:[%s1610 + $0x4] sm:$0xf]
    %v1613 = vld [vmem:[%s1610 + $0x8] sm:$0xf]
    %v1614 = vld [vmem:[%s1610 + $0xc] sm:$0xf]
    %v1615 = vld [vmem:[%s1610 + $0x10] sm:$0xf]
    %v1616 = vld [vmem:[%s1610 + $0x14] sm:$0xf]
    %v1617 = vld [vmem:[%s1610 + $0x18] sm:$0xf]
    %v1618 = vld [vmem:[%s1610 + $0x1c] sm:$0xf]
    %v1619 = vld [vmem:[%s1610 + $0x20] sm:$0xf]
    %v1620 = vld [vmem:[%s1610 + $0x24] sm:$0xf]
    %v1621 = vld [vmem:[%s1610 + $0x28] sm:$0xf]
    %v1622 = vld [vmem:[%s1610 + $0x2c] sm:$0xf]
    %v1623 = vld [vmem:[%s1610 + $0x30] sm:$0xf]
    %v1624 = vld [vmem:[%s1610 + $0x34] sm:$0xf]
    %v1625 = vld [vmem:[%s1610 + $0x38] sm:$0xf]
    %v1626 = vld [vmem:[%s1610 + $0x3c] sm:$0xf]
    %v1627 = vld [vmem:[%s1610 + $0x40] sm:$0xf]
    %v1628 = vld [vmem:[%s1610 + $0x44] sm:$0xf]
    %v1629 = vld [vmem:[%s1610 + $0x48] sm:$0xf]
    %v1630 = vld [vmem:[%s1610 + $0x4c] sm:$0xf]
    %v1631 = vld [vmem:[%s1610 + $0x50] sm:$0xf]
    %v1632 = vld [vmem:[%s1610 + $0x54] sm:$0xf]
    %v1633 = vld [vmem:[%s1610 + $0x58] sm:$0xf]
    %v1634 = vld [vmem:[%s1610 + $0x5c] sm:$0xf]
    %v1635 = vld [vmem:[%s1610 + $0x60] sm:$0xf]
    %v1636 = vld [vmem:[%s1610 + $0x64] sm:$0xf]
    %v1637 = vld [vmem:[%s1610 + $0x68] sm:$0xf]
    %v1638 = vld [vmem:[%s1610 + $0x6c] sm:$0xf]
    %v1639 = vld [vmem:[%s1610 + $0x70] sm:$0xf]
    %v1640 = vld [vmem:[%s1610 + $0x74] sm:$0xf]
    %v1641 = vld [vmem:[%s1610 + $0x78] sm:$0xf]
    %v1642 = vld [vmem:[%s1610 + $0x7c] sm:$0xf]
    %v1643 = vld [vmem:[%s1610 + $0x80] sm:$0xf]
    %v1644 = vld [vmem:[%s1610 + $0x84] sm:$0xf]
    %v1645 = vld [vmem:[%s1610 + $0x88] sm:$0xf]
    %v1646 = vld [vmem:[%s1610 + $0x8c] sm:$0xf]
    %v1647 = vld [vmem:[%s1610 + $0x90] sm:$0xf]
    %v1648 = vld [vmem:[%s1610 + $0x94] sm:$0xf]
    %v1649 = vld [vmem:[%s1610 + $0x98] sm:$0xf]
    %v1650 = vld [vmem:[%s1610 + $0x9c] sm:$0xf]
    %v1651 = vld [vmem:[%s1610 + $0xa0] sm:$0xf]
    %v1652 = vld [vmem:[%s1610 + $0xa4] sm:$0xf]
    %v1653 = vld [vmem:[%s1610 + $0xa8] sm:$0xf]
    %v1654 = vld [vmem:[%s1610 + $0xac] sm:$0xf]
    %v1655 = vld [vmem:[%s1610 + $0xb0] sm:$0xf]
    %v1656 = vld [vmem:[%s1610 + $0xb4] sm:$0xf]
    %v1657 = vld [vmem:[%s1610 + $0xb8] sm:$0xf]
    %v1658 = vld [vmem:[%s1610 + $0xbc] sm:$0xf]
    %s1659 = scalar_lea.vmem %s4, 8
    %v1660 = vld [vmem:[%s1659] sm:$0x3f]
    %s1661 = scalar_lea.vmem %s5, 2
    %v1662 = vld [vmem:[%s1661] sm:$0x3]
    %v1663 = vsel %vm666, %v1608, 0.0
    %1664 = vadd.xlane.f32.xlu0 %v1663
    %v1665 = vpop.xlane.xlu0 %1664
    %v1666 = vsel %vm670, %v1609, 0.0
    %1667 = vadd.xlane.f32.xlu0 %v1666
    %v1668 = vpop.xlane.xlu0 %1667
    %v1669 = vmul.f32 %v1665, %v674
    %v1670 = vmul.f32 %v1668, %v674
    %v1671 = vsub.f32 %v1608, %v1669
    %v1672 = vsub.f32 %v1609, %v1670
    %v1673 = vmul.f32 %v1671, %v1671
    %v1674 = vmul.f32 %v1672, %v1672
    %v1675 = vsel %vm666, %v1673, 0.0
    %1676 = vadd.xlane.f32.xlu0 %v1675
    %v1677 = vpop.xlane.xlu0 %1676
    %v1678 = vsel %vm670, %v1674, 0.0
    %1679 = vadd.xlane.f32.xlu0 %v1678
    %v1680 = vpop.xlane.xlu0 %1679
    %v1681 = vmul.f32 %v1677, %v674
    %v1682 = vmul.f32 %v1680, %v674
    %v1683 = vadd.f32 %v1681, 1e-06
    %v1684 = vadd.f32 %v1682, 1e-06
    %v1685 = vrsqrt.pop %v1683
    %v1686 = vrsqrt.pop %v1684
    %v1687 = vmul.f32 %v1671, %v1685
    %v1688 = vmul.f32 %v1672, %v1686
    %v1689 = vlaneseq
    %v1690 = vshrl.u32 %v1689, 7
    %v1691 = vsub.s32 0, %v1690
    %v1692 = vrot.slane %v1660, %v1691
    %v1693 = vmul.f32 %v1687, %v1692
    %v1694 = vmul.f32 %v1688, %v1692
    %v1695 = vlaneseq
    %v1696 = vshrl.u32 %v1695, 7
    %v1697 = vsub.s32 1, %v1696
    %v1698 = vrot.slane %v1660, %v1697
    %v1699 = vadd.f32 %v1693, %v1698
    %v1700 = vadd.f32 %v1694, %v1698
    %v1701 = vpack.c.bf16 %v1700, %v1699
    %v1702 = vlaneseq
    %v1703 = vshrl.u32 %v1702, 7
    %v1704 = vsub.s32 0, %v1703
    %v1705 = vrot.slane %v1662, %v1704
    %v1718 = vunpack.c.l.b16 %v1611
    %v1719 = vunpack.c.l.b16 %v1612
    %v1720 = vunpack.c.l.b16 %v1613
    %v1721 = vunpack.c.l.b16 %v1614
    %v1722 = vunpack.c.l.b16 %v1615
    %v1723 = vunpack.c.l.b16 %v1616
    %v1724 = vunpack.c.l.b16 %v1617
    %v1725 = vunpack.c.l.b16 %v1618
    %v1726 = vunpack.c.l.b16 %v1619
    %v1727 = vunpack.c.l.b16 %v1620
    %v1728 = vunpack.c.l.b16 %v1621
    %v1729 = vunpack.c.l.b16 %v1622
    %v1730 = vpack.c.b16 %v1719, %v1718
    %v1731 = vpack.c.b16 %v1721, %v1720
    %v1732 = vpack.c.b16 %v1723, %v1722
    %v1733 = vpack.c.b16 %v1725, %v1724
    %v1734 = vpack.c.b16 %v1727, %v1726
    %v1735 = vpack.c.b16 %v1729, %v1728
    %v1737 = vsel %vm666, %v1701, 0
    %v1740 = vsel %vm666, %v1730, 0
    %v1743 = vsel %vm666, %v1731, 0
    %v1746 = vsel %vm666, %v1732, 0
    %v1749 = vsel %vm666, %v1733, 0
    %v1752 = vsel %vm666, %v1734, 0
    %v1755 = vsel %vm666, %v1735, 0
    %1757 = vmatprep.subr.bf16.mxu0 0
    %1758 = vmatpush1.bf16.xpose.msra.mxu0 0
    %1759 = vmatprep.subr.bf16.mxu0 0
    %1760 = vmatpush1.bf16.xpose.msra.mxu0 0
    %1761 = vmatprep.subr.bf16.mxu0 0
    %1762 = vmatpush1.bf16.xpose.msra.mxu0 %v1755
    %1763 = vmatprep.subr.bf16.mxu0 0
    %1764 = vmatpush1.bf16.xpose.msra.mxu0 %v1752
    %1765 = vmatprep.subr.bf16.mxu0 0
    %1766 = vmatpush1.bf16.xpose.msra.mxu0 %v1749
    %1767 = vmatprep.subr.bf16.mxu0 0
    %1768 = vmatpush1.bf16.xpose.msra.mxu0 %v1746
    %1769 = vmatprep.subr.bf16.mxu0 0
    %1770 = vmatpush1.bf16.xpose.msra.mxu0 %v1743
    %1771 = vmatprep.subr.bf16.mxu0 0
    %1772 = vmatpush1.bf16.xpose.msra.mxu0 %v1740
    %1773 = vmatprep.subr.bf16.mxu0 0
    %1774 = vmatpush2.bf16.xpose.msra.mxu0 0
    %1775 = vmatprep.subr.bf16.mxu0 0
    %1776 = vmatpush2.bf16.xpose.msra.mxu0 0
    %1777 = vmatprep.subr.bf16.mxu0 0
    %1778 = vmatpush2.bf16.xpose.msra.mxu0 0
    %1779 = vmatprep.subr.bf16.mxu0 0
    %1780 = vmatpush2.bf16.xpose.msra.mxu0 0
    %1781 = vmatprep.subr.bf16.mxu0 0
    %1782 = vmatpush2.bf16.xpose.msra.mxu0 0
    %1783 = vmatprep.subr.bf16.mxu0 0
    %1784 = vmatpush2.bf16.xpose.msra.mxu0 0
    %1785 = vmatprep.subr.bf16.mxu0 0
    %1786 = vmatpush2.bf16.xpose.msra.mxu0 0
    %1787 = vmatprep.subr.bf16.mxu0 0
    %1788 = vmatpush2.bf16.xpose.msra.mxu0 0
    %1789 = vmatprep.mubr.bf16.mxu0 0
    %1790 = vmatmul.mubr.bf16.gmra.mxu0 %v1737
    %v1791 = vpop.f32.mrf.mxu0
    %v1792 = vadd.f32 %v1705, %v1791
    %v1793 = vpop.f32.mrf.mxu0
    %v1794 = vpop.f32.mrf.mxu0
    %v1795 = vadd.f32 %v1705, %v1794
    %v1796 = vpop.f32.mrf.mxu0
    %1797 = vdwg.mxu0
    %v1798 = vpack.c.bf16 %v1792, %v1792
    %v1800 = vrot.slane %v1792, 3
    %v1802 = vrot.slane %v1792, 6
    %v1804 = vrot.slane %v1792, 1
    %v1806 = vsel %vm812, %v1792, %v1800
    %v1807 = vsel %vm814, %v1800, %v1802
    %v1808 = vsel %vm816, %v1807, %v1804
    %v1809 = vmul.f32 %v1806, %v822
    %v1810 = vmul.f32 %v1808, %v824
    %v1811 = vmul.f32 %v1804, %v826
    %v1812 = vpack.c.bf16 %v1810, %v1809
    %v1813 = vpack.c.bf16 %v1811, %v1811
    %v1814 = vmul.f32 %v1806, %v836
    %v1815 = vmul.f32 %v1808, %v838
    %v1816 = vmul.f32 %v1804, %v840
    %v1817 = vpack.c.bf16 %v1815, %v1814
    %v1818 = vpack.c.bf16 %v1816, %v1816
    %1821 = vrot.lane.b32.xlu0 %v1812, 96
    %v1822 = vpop.permute.xlu0 %1821
    %1823 = vrot.lane.b32.xlu0 %v1813, 96
    %v1824 = vpop.permute.xlu0 %1823
    %v1826 = vsel %vm666, %v1798, 0
    %v1829 = vsel %vm666, %v1822, 0
    %v1832 = vsel %vm666, %v1824, 0
    %1834 = vmatprep.subr.bf16.mxu0 0
    %1835 = vmatpush1.bf16.xpose.msra.mxu0 0
    %1836 = vmatprep.subr.bf16.mxu0 0
    %1837 = vmatpush1.bf16.xpose.msra.mxu0 0
    %1838 = vmatprep.subr.bf16.mxu0 0
    %1839 = vmatpush1.bf16.xpose.msra.mxu0 0
    %1840 = vmatprep.subr.bf16.mxu0 0
    %1841 = vmatpush1.bf16.xpose.msra.mxu0 0
    %1842 = vmatprep.subr.bf16.mxu0 0
    %1843 = vmatpush1.bf16.xpose.msra.mxu0 0
    %1844 = vmatprep.subr.bf16.mxu0 0
    %1845 = vmatpush1.bf16.xpose.msra.mxu0 0
    %1846 = vmatprep.subr.bf16.mxu0 0
    %1847 = vmatpush1.bf16.xpose.msra.mxu0 %v1832
    %1848 = vmatprep.subr.bf16.mxu0 0
    %1849 = vmatpush1.bf16.xpose.msra.mxu0 %v1829
    %1850 = vmatprep.subr.bf16.mxu0 0
    %1851 = vmatpush2.bf16.xpose.msra.mxu0 0
    %1852 = vmatprep.subr.bf16.mxu0 0
    %1853 = vmatpush2.bf16.xpose.msra.mxu0 0
    %1854 = vmatprep.subr.bf16.mxu0 0
    %1855 = vmatpush2.bf16.xpose.msra.mxu0 0
    %1856 = vmatprep.subr.bf16.mxu0 0
    %1857 = vmatpush2.bf16.xpose.msra.mxu0 0
    %1858 = vmatprep.subr.bf16.mxu0 0
    %1859 = vmatpush2.bf16.xpose.msra.mxu0 0
    %1860 = vmatprep.subr.bf16.mxu0 0
    %1861 = vmatpush2.bf16.xpose.msra.mxu0 0
    %1862 = vmatprep.subr.bf16.mxu0 0
    %1863 = vmatpush2.bf16.xpose.msra.mxu0 0
    %1864 = vmatprep.subr.bf16.mxu0 0
    %1865 = vmatpush2.bf16.xpose.msra.mxu0 0
    %1866 = vmatprep.mubr.bf16.mxu0 0
    %1867 = vmatmul.mubr.bf16.gmra.mxu0 %v1826
    %v1868 = vpop.f32.mrf.mxu0
    %v1869 = vadd.f32 0.0, %v1868
    %v1870 = vpop.f32.mrf.mxu0
    %v1871 = vpop.f32.mrf.mxu0
    %v1872 = vpop.f32.mrf.mxu0
    %1873 = vdwg.mxu0
    %v1874 = vsel %vm904, %v1869, -inf
    %1875 = vmax.xlane.f32.xlu0 %v1874
    %v1876 = vpop.xlane.xlu0 %1875
    %v1877 = vsub.f32 %v1869, %v1876
    %v1878 = vmul.f32 %v1877, 1.442695
    %v1879 = vpow.pop %v1878
    %v1881 = vsel %vm911, %v1879, 0
    %1883 = vmatprep.subr.mxu0 0.0
    %1884 = vmatpush1.msra.mxu0 0.0
    %1885 = vmatprep.subr.mxu0 0.0
    %1886 = vmatpush1.msra.mxu0 0.0
    %1887 = vmatprep.subr.mxu0 0.0
    %1888 = vmatpush1.msra.mxu0 0.0
    %1889 = vmatprep.subr.mxu0 0.0
    %1890 = vmatpush1.msra.mxu0 0.0
    %1891 = vmatprep.subr.mxu0 0.0
    %1892 = vmatpush1.msra.mxu0 0.0
    %1893 = vmatprep.subr.mxu0 0.0
    %1894 = vmatpush1.msra.mxu0 0.0
    %1895 = vmatprep.subr.mxu0 0.0
    %1896 = vmatpush1.msra.mxu0 0.0
    %1897 = vmatprep.subr.mxu0 0.0
    %1898 = vmatpush1.msra.mxu0 0.0
    %1899 = vmatprep.subr.mxu0 0.0
    %1900 = vmatpush1.msra.mxu0 0.0
    %1901 = vmatprep.subr.mxu0 0.0
    %1902 = vmatpush1.msra.mxu0 0.0
    %1903 = vmatprep.subr.mxu0 0.0
    %1904 = vmatpush1.msra.mxu0 0.0
    %1905 = vmatprep.subr.mxu0 0.0
    %1906 = vmatpush1.msra.mxu0 0.0
    %1907 = vmatprep.subr.mxu0 0.0
    %1908 = vmatpush1.msra.mxu0 0.0
    %1909 = vmatprep.subr.mxu0 0.0
    %1910 = vmatpush1.msra.mxu0 %v917
    %1911 = vmatprep.subr.mxu0 0.0
    %1912 = vmatpush1.msra.mxu0 %v614
    %1913 = vmatprep.subr.mxu0 0.0
    %1914 = vmatpush1.msra.mxu0 %v613
    %1915 = vmatprep.subr.mxu0 0.0
    %1916 = vmatpush2.msra.mxu0 0.0
    %1917 = vmatprep.subr.mxu0 0.0
    %1918 = vmatpush2.msra.mxu0 0.0
    %1919 = vmatprep.subr.mxu0 0.0
    %1920 = vmatpush2.msra.mxu0 0.0
    %1921 = vmatprep.subr.mxu0 0.0
    %1922 = vmatpush2.msra.mxu0 0.0
    %1923 = vmatprep.subr.mxu0 0.0
    %1924 = vmatpush2.msra.mxu0 0.0
    %1925 = vmatprep.subr.mxu0 0.0
    %1926 = vmatpush2.msra.mxu0 0.0
    %1927 = vmatprep.subr.mxu0 0.0
    %1928 = vmatpush2.msra.mxu0 0.0
    %1929 = vmatprep.subr.mxu0 0.0
    %1930 = vmatpush2.msra.mxu0 0.0
    %1931 = vmatprep.subr.mxu0 0.0
    %1932 = vmatpush2.msra.mxu0 0.0
    %1933 = vmatprep.subr.mxu0 0.0
    %1934 = vmatpush2.msra.mxu0 0.0
    %1935 = vmatprep.subr.mxu0 0.0
    %1936 = vmatpush2.msra.mxu0 0.0
    %1937 = vmatprep.subr.mxu0 0.0
    %1938 = vmatpush2.msra.mxu0 0.0
    %1939 = vmatprep.subr.mxu0 0.0
    %1940 = vmatpush2.msra.mxu0 0.0
    %1941 = vmatprep.subr.mxu0 0.0
    %1942 = vmatpush2.msra.mxu0 0.0
    %1943 = vmatprep.subr.mxu0 0.0
    %1944 = vmatpush2.msra.mxu0 0.0
    %1945 = vmatprep.subr.mxu0 0.0
    %1946 = vmatpush2.msra.mxu0 0.0
    %1947 = vmatprep.mubr.f32.mxu0 0.0
    %1948 = vmatmul.mubr.f32.gmra.mxu0 %v1881
    %v1949 = vpop.f32.mrf.mxu0
    %v1950 = vadd.f32 0.0, %v1949
    %v1951 = vpop.f32.mrf.mxu0
    %1952 = vdwg.mxu0
    %v1953 = vrcp.pop %v1950
    %v1954 = vmul.f32 %v1879, %v1953
    %v1955 = vpack.c.bf16 %v1954, %v1954
    %1958 = vrot.lane.b32.xlu0 %v1817, 64
    %v1959 = vpop.permute.xlu0 %1958
    %1960 = vrot.lane.b32.xlu0 %v1818, 64
    %v1961 = vpop.permute.xlu0 %1960
    %v1964 = vsel %vm911, %v1955, 0
    %v1967 = vsel %vm814, %v1961, 0
    %1969 = vmatprep.subr.bf16.mxu0 0
    %1970 = vmatpush1.bf16.msra.mxu0 0
    %1971 = vmatprep.subr.bf16.mxu0 0
    %1972 = vmatpush1.bf16.msra.mxu0 0
    %1973 = vmatprep.subr.bf16.mxu0 0
    %1974 = vmatpush1.bf16.msra.mxu0 0
    %1975 = vmatprep.subr.bf16.mxu0 0
    %1976 = vmatpush1.bf16.msra.mxu0 0
    %1977 = vmatprep.subr.bf16.mxu0 0
    %1978 = vmatpush1.bf16.msra.mxu0 0
    %1979 = vmatprep.subr.bf16.mxu0 0
    %1980 = vmatpush1.bf16.msra.mxu0 0
    %1981 = vmatprep.subr.bf16.mxu0 0
    %1982 = vmatpush1.bf16.msra.mxu0 %v1967
    %1983 = vmatprep.subr.bf16.mxu0 0
    %1984 = vmatpush1.bf16.msra.mxu0 %v1959
    %1985 = vmatprep.subr.bf16.mxu0 0
    %1986 = vmatpush2.bf16.msra.mxu0 0
    %1987 = vmatprep.subr.bf16.mxu0 0
    %1988 = vmatpush2.bf16.msra.mxu0 0
    %1989 = vmatprep.subr.bf16.mxu0 0
    %1990 = vmatpush2.bf16.msra.mxu0 0
    %1991 = vmatprep.subr.bf16.mxu0 0
    %1992 = vmatpush2.bf16.msra.mxu0 0
    %1993 = vmatprep.subr.bf16.mxu0 0
    %1994 = vmatpush2.bf16.msra.mxu0 0
    %1995 = vmatprep.subr.bf16.mxu0 0
    %1996 = vmatpush2.bf16.msra.mxu0 0
    %1997 = vmatprep.subr.bf16.mxu0 0
    %1998 = vmatpush2.bf16.msra.mxu0 0
    %1999 = vmatprep.subr.bf16.mxu0 0
    %2000 = vmatpush2.bf16.msra.mxu0 0
    %2001 = vmatprep.mubr.bf16.mxu0 0
    %2002 = vmatmul.mubr.bf16.gmra.mxu0 %v1964
    %v2003 = vpop.f32.mrf.mxu0
    %v2004 = vadd.f32 0.0, %v2003
    %v2005 = vpop.f32.mrf.mxu0
    %v2006 = vpop.f32.mrf.mxu0
    %v2007 = vpop.f32.mrf.mxu0
    %2008 = vdwg.mxu0
    %2009 = vst.msk [vmem:[#allocation2] sm:$0x1f] %vm1045, %v2004
    %v2010 = vpack.c.bf16 %v1795, %v1792
    %v2012 = vrot.slane %v1792, 5
    %v2013 = vrot.slane %v1795, 5
    %v2014 = vsel %vm1049, %v2012, %v2013
    %v2016 = vrot.slane %v1795, 3
    %v2017 = vsel %vm812, %v1800, %v2016
    %v2019 = vrot.slane %v1795, 6
    %v2020 = vsel %vm814, %v1802, %v2019
    %v2022 = vsel %vm812, %v2014, %v1792
    %v2023 = vsel %vm814, %v1795, %v2017
    %v2024 = vsel %vm816, %v2023, %v1802
    %v2025 = vmul.f32 %v2022, %v822
    %v2026 = vmul.f32 %v2024, %v824
    %v2027 = vmul.f32 %v2020, %v826
    %v2028 = vpack.c.bf16 %v2026, %v2025
    %v2029 = vpack.c.bf16 %v2027, %v2027
    %v2030 = vmul.f32 %v2022, %v836
    %v2031 = vmul.f32 %v2024, %v838
    %v2032 = vmul.f32 %v2020, %v840
    %v2033 = vpack.c.bf16 %v2031, %v2030
    %v2034 = vpack.c.bf16 %v2032, %v2032
    %v2036 = vshrl.u32 %v2010, 16
    %v2038 = vrot.slane %v2036, 2
    %v2039 = vshll.u32 %v2010, 16
    %v2041 = vrot.slane %v2039, 3
    %v2042 = vor.u32 %v2038, %v2041
    %2045 = vrot.lane.b32.xlu0 %v2028, 96
    %v2046 = vpop.permute.xlu0 %2045
    %2047 = vrot.lane.b32.xlu0 %v2029, 96
    %v2048 = vpop.permute.xlu0 %2047
    %v2050 = vsel %vm666, %v2042, 0
    %v2053 = vsel %vm666, %v2046, 0
    %v2056 = vsel %vm666, %v2048, 0
    %2058 = vmatprep.subr.bf16.mxu0 0
    %2059 = vmatpush1.bf16.xpose.msra.mxu0 0
    %2060 = vmatprep.subr.bf16.mxu0 0
    %2061 = vmatpush1.bf16.xpose.msra.mxu0 0
    %2062 = vmatprep.subr.bf16.mxu0 0
    %2063 = vmatpush1.bf16.xpose.msra.mxu0 0
    %2064 = vmatprep.subr.bf16.mxu0 0
    %2065 = vmatpush1.bf16.xpose.msra.mxu0 0
    %2066 = vmatprep.subr.bf16.mxu0 0
    %2067 = vmatpush1.bf16.xpose.msra.mxu0 0
    %2068 = vmatprep.subr.bf16.mxu0 0
    %2069 = vmatpush1.bf16.xpose.msra.mxu0 0
    %2070 = vmatprep.subr.bf16.mxu0 0
    %2071 = vmatpush1.bf16.xpose.msra.mxu0 %v2056
    %2072 = vmatprep.subr.bf16.mxu0 0
    %2073 = vmatpush1.bf16.xpose.msra.mxu0 %v2053
    %2074 = vmatprep.subr.bf16.mxu0 0
    %2075 = vmatpush2.bf16.xpose.msra.mxu0 0
    %2076 = vmatprep.subr.bf16.mxu0 0
    %2077 = vmatpush2.bf16.xpose.msra.mxu0 0
    %2078 = vmatprep.subr.bf16.mxu0 0
    %2079 = vmatpush2.bf16.xpose.msra.mxu0 0
    %2080 = vmatprep.subr.bf16.mxu0 0
    %2081 = vmatpush2.bf16.xpose.msra.mxu0 0
    %2082 = vmatprep.subr.bf16.mxu0 0
    %2083 = vmatpush2.bf16.xpose.msra.mxu0 0
    %2084 = vmatprep.subr.bf16.mxu0 0
    %2085 = vmatpush2.bf16.xpose.msra.mxu0 0
    %2086 = vmatprep.subr.bf16.mxu0 0
    %2087 = vmatpush2.bf16.xpose.msra.mxu0 0
    %2088 = vmatprep.subr.bf16.mxu0 0
    %2089 = vmatpush2.bf16.xpose.msra.mxu0 0
    %2090 = vmatprep.mubr.bf16.mxu0 0
    %2091 = vmatmul.mubr.bf16.gmra.mxu0 %v2050
    %v2092 = vpop.f32.mrf.mxu0
    %v2093 = vadd.f32 0.0, %v2092
    %v2094 = vpop.f32.mrf.mxu0
    %v2095 = vpop.f32.mrf.mxu0
    %v2096 = vpop.f32.mrf.mxu0
    %2097 = vdwg.mxu0
    %v2098 = vsel %vm904, %v2093, -inf
    %2099 = vmax.xlane.f32.xlu0 %v2098
    %v2100 = vpop.xlane.xlu0 %2099
    %v2101 = vsub.f32 %v2093, %v2100
    %v2102 = vmul.f32 %v2101, 1.442695
    %v2103 = vpow.pop %v2102
    %v2105 = vsel %vm911, %v2103, 0
    %2107 = vmatprep.subr.mxu0 0.0
    %2108 = vmatpush1.msra.mxu0 0.0
    %2109 = vmatprep.subr.mxu0 0.0
    %2110 = vmatpush1.msra.mxu0 0.0
    %2111 = vmatprep.subr.mxu0 0.0
    %2112 = vmatpush1.msra.mxu0 0.0
    %2113 = vmatprep.subr.mxu0 0.0
    %2114 = vmatpush1.msra.mxu0 0.0
    %2115 = vmatprep.subr.mxu0 0.0
    %2116 = vmatpush1.msra.mxu0 0.0
    %2117 = vmatprep.subr.mxu0 0.0
    %2118 = vmatpush1.msra.mxu0 0.0
    %2119 = vmatprep.subr.mxu0 0.0
    %2120 = vmatpush1.msra.mxu0 0.0
    %2121 = vmatprep.subr.mxu0 0.0
    %2122 = vmatpush1.msra.mxu0 0.0
    %2123 = vmatprep.subr.mxu0 0.0
    %2124 = vmatpush1.msra.mxu0 0.0
    %2125 = vmatprep.subr.mxu0 0.0
    %2126 = vmatpush1.msra.mxu0 0.0
    %2127 = vmatprep.subr.mxu0 0.0
    %2128 = vmatpush1.msra.mxu0 0.0
    %2129 = vmatprep.subr.mxu0 0.0
    %2130 = vmatpush1.msra.mxu0 0.0
    %2131 = vmatprep.subr.mxu0 0.0
    %2132 = vmatpush1.msra.mxu0 0.0
    %2133 = vmatprep.subr.mxu0 0.0
    %2134 = vmatpush1.msra.mxu0 %v917
    %2135 = vmatprep.subr.mxu0 0.0
    %2136 = vmatpush1.msra.mxu0 %v614
    %2137 = vmatprep.subr.mxu0 0.0
    %2138 = vmatpush1.msra.mxu0 %v613
    %2139 = vmatprep.subr.mxu0 0.0
    %2140 = vmatpush2.msra.mxu0 0.0
    %2141 = vmatprep.subr.mxu0 0.0
    %2142 = vmatpush2.msra.mxu0 0.0
    %2143 = vmatprep.subr.mxu0 0.0
    %2144 = vmatpush2.msra.mxu0 0.0
    %2145 = vmatprep.subr.mxu0 0.0
    %2146 = vmatpush2.msra.mxu0 0.0
    %2147 = vmatprep.subr.mxu0 0.0
    %2148 = vmatpush2.msra.mxu0 0.0
    %2149 = vmatprep.subr.mxu0 0.0
    %2150 = vmatpush2.msra.mxu0 0.0
    %2151 = vmatprep.subr.mxu0 0.0
    %2152 = vmatpush2.msra.mxu0 0.0
    %2153 = vmatprep.subr.mxu0 0.0
    %2154 = vmatpush2.msra.mxu0 0.0
    %2155 = vmatprep.subr.mxu0 0.0
    %2156 = vmatpush2.msra.mxu0 0.0
    %2157 = vmatprep.subr.mxu0 0.0
    %2158 = vmatpush2.msra.mxu0 0.0
    %2159 = vmatprep.subr.mxu0 0.0
    %2160 = vmatpush2.msra.mxu0 0.0
    %2161 = vmatprep.subr.mxu0 0.0
    %2162 = vmatpush2.msra.mxu0 0.0
    %2163 = vmatprep.subr.mxu0 0.0
    %2164 = vmatpush2.msra.mxu0 0.0
    %2165 = vmatprep.subr.mxu0 0.0
    %2166 = vmatpush2.msra.mxu0 0.0
    %2167 = vmatprep.subr.mxu0 0.0
    %2168 = vmatpush2.msra.mxu0 0.0
    %2169 = vmatprep.subr.mxu0 0.0
    %2170 = vmatpush2.msra.mxu0 0.0
    %2171 = vmatprep.mubr.f32.mxu0 0.0
    %2172 = vmatmul.mubr.f32.gmra.mxu0 %v2105
    %v2173 = vpop.f32.mrf.mxu0
    %v2174 = vadd.f32 0.0, %v2173
    %v2175 = vpop.f32.mrf.mxu0
    %2176 = vdwg.mxu0
    %v2177 = vrcp.pop %v2174
    %v2178 = vmul.f32 %v2103, %v2177
    %v2179 = vpack.c.bf16 %v2178, %v2178
    %2182 = vrot.lane.b32.xlu0 %v2033, 64
    %v2183 = vpop.permute.xlu0 %2182
    %2184 = vrot.lane.b32.xlu0 %v2034, 64
    %v2185 = vpop.permute.xlu0 %2184
    %v2188 = vsel %vm911, %v2179, 0
    %v2191 = vsel %vm814, %v2185, 0
    %2193 = vmatprep.subr.bf16.mxu0 0
    %2194 = vmatpush1.bf16.msra.mxu0 0
    %2195 = vmatprep.subr.bf16.mxu0 0
    %2196 = vmatpush1.bf16.msra.mxu0 0
    %2197 = vmatprep.subr.bf16.mxu0 0
    %2198 = vmatpush1.bf16.msra.mxu0 0
    %2199 = vmatprep.subr.bf16.mxu0 0
    %2200 = vmatpush1.bf16.msra.mxu0 0
    %2201 = vmatprep.subr.bf16.mxu0 0
    %2202 = vmatpush1.bf16.msra.mxu0 0
    %2203 = vmatprep.subr.bf16.mxu0 0
    %2204 = vmatpush1.bf16.msra.mxu0 0
    %2205 = vmatprep.subr.bf16.mxu0 0
    %2206 = vmatpush1.bf16.msra.mxu0 %v2191
    %2207 = vmatprep.subr.bf16.mxu0 0
    %2208 = vmatpush1.bf16.msra.mxu0 %v2183
    %2209 = vmatprep.subr.bf16.mxu0 0
    %2210 = vmatpush2.bf16.msra.mxu0 0
    %2211 = vmatprep.subr.bf16.mxu0 0
    %2212 = vmatpush2.bf16.msra.mxu0 0
    %2213 = vmatprep.subr.bf16.mxu0 0
    %2214 = vmatpush2.bf16.msra.mxu0 0
    %2215 = vmatprep.subr.bf16.mxu0 0
    %2216 = vmatpush2.bf16.msra.mxu0 0
    %2217 = vmatprep.subr.bf16.mxu0 0
    %2218 = vmatpush2.bf16.msra.mxu0 0
    %2219 = vmatprep.subr.bf16.mxu0 0
    %2220 = vmatpush2.bf16.msra.mxu0 0
    %2221 = vmatprep.subr.bf16.mxu0 0
    %2222 = vmatpush2.bf16.msra.mxu0 0
    %2223 = vmatprep.subr.bf16.mxu0 0
    %2224 = vmatpush2.bf16.msra.mxu0 0
    %2225 = vmatprep.mubr.bf16.mxu0 0
    %2226 = vmatmul.mubr.bf16.gmra.mxu0 %v2188
    %v2227 = vpop.f32.mrf.mxu0
    %v2228 = vadd.f32 0.0, %v2227
    %v2229 = vpop.f32.mrf.mxu0
    %v2230 = vpop.f32.mrf.mxu0
    %v2231 = vpop.f32.mrf.mxu0
    %2232 = vdwg.mxu0
    %2233 = vst.msk [vmem:[#allocation2 + $0x5] sm:$0x1f] %vm1045, %v2228
    %v2234 = vld [vmem:[#allocation2] sm:$0xff]
    %v2235 = vld [vmem:[#allocation2 + $0x8] sm:$0x3]
    %v2236 = vpack.c.bf16 %v2235, %v2234
    %v2241 = vunpack.c.l.b16 %v1623
    %v2242 = vunpack.c.l.b16 %v1624
    %v2243 = vunpack.c.l.b16 %v1625
    %v2244 = vunpack.c.l.b16 %v1626
    %v2245 = vpack.c.b16 %v2242, %v2241
    %v2246 = vpack.c.b16 %v2244, %v2243
    %v2248 = vsel %vm666, %v2236, 0
    %v2251 = vsel %vm666, %v2245, 0
    %v2254 = vsel %vm666, %v2246, 0
    %2256 = vmatprep.subr.bf16.mxu0 0
    %2257 = vmatpush1.bf16.xpose.msra.mxu0 0
    %2258 = vmatprep.subr.bf16.mxu0 0
    %2259 = vmatpush1.bf16.xpose.msra.mxu0 0
    %2260 = vmatprep.subr.bf16.mxu0 0
    %2261 = vmatpush1.bf16.xpose.msra.mxu0 0
    %2262 = vmatprep.subr.bf16.mxu0 0
    %2263 = vmatpush1.bf16.xpose.msra.mxu0 0
    %2264 = vmatprep.subr.bf16.mxu0 0
    %2265 = vmatpush1.bf16.xpose.msra.mxu0 0
    %2266 = vmatprep.subr.bf16.mxu0 0
    %2267 = vmatpush1.bf16.xpose.msra.mxu0 0
    %2268 = vmatprep.subr.bf16.mxu0 0
    %2269 = vmatpush1.bf16.xpose.msra.mxu0 %v2254
    %2270 = vmatprep.subr.bf16.mxu0 0
    %2271 = vmatpush1.bf16.xpose.msra.mxu0 %v2251
    %2272 = vmatprep.subr.bf16.mxu0 0
    %2273 = vmatpush2.bf16.xpose.msra.mxu0 0
    %2274 = vmatprep.subr.bf16.mxu0 0
    %2275 = vmatpush2.bf16.xpose.msra.mxu0 0
    %2276 = vmatprep.subr.bf16.mxu0 0
    %2277 = vmatpush2.bf16.xpose.msra.mxu0 0
    %2278 = vmatprep.subr.bf16.mxu0 0
    %2279 = vmatpush2.bf16.xpose.msra.mxu0 0
    %2280 = vmatprep.subr.bf16.mxu0 0
    %2281 = vmatpush2.bf16.xpose.msra.mxu0 0
    %2282 = vmatprep.subr.bf16.mxu0 0
    %2283 = vmatpush2.bf16.xpose.msra.mxu0 0
    %2284 = vmatprep.subr.bf16.mxu0 0
    %2285 = vmatpush2.bf16.xpose.msra.mxu0 0
    %2286 = vmatprep.subr.bf16.mxu0 0
    %2287 = vmatpush2.bf16.xpose.msra.mxu0 0
    %2288 = vmatprep.mubr.bf16.mxu0 0
    %2289 = vmatmul.mubr.bf16.gmra.mxu0 %v2248
    %v2290 = vpop.f32.mrf.mxu0
    %v2291 = vadd.f32 0.0, %v2290
    %v2292 = vpop.f32.mrf.mxu0
    %v2293 = vpop.f32.mrf.mxu0
    %v2294 = vadd.f32 0.0, %v2293
    %v2295 = vpop.f32.mrf.mxu0
    %2296 = vdwg.mxu0
    %v2297 = vadd.f32 %v1608, %v2291
    %v2298 = vadd.f32 %v1609, %v2294
    %v2299 = vlaneseq
    %v2300 = vshrl.u32 %v2299, 7
    %v2301 = vsub.s32 4, %v2300
    %v2302 = vrot.slane %v1660, %v2301
    %v2303 = vadd.f32 %v2297, %v2302
    %v2304 = vadd.f32 %v2298, %v2302
    %v2305 = vsel %vm666, %v2303, 0.0
    %2306 = vadd.xlane.f32.xlu0 %v2305
    %v2307 = vpop.xlane.xlu0 %2306
    %v2308 = vsel %vm670, %v2304, 0.0
    %2309 = vadd.xlane.f32.xlu0 %v2308
    %v2310 = vpop.xlane.xlu0 %2309
    %v2311 = vmul.f32 %v2307, %v674
    %v2312 = vmul.f32 %v2310, %v674
    %v2313 = vsub.f32 %v2303, %v2311
    %v2314 = vsub.f32 %v2304, %v2312
    %v2315 = vmul.f32 %v2313, %v2313
    %v2316 = vmul.f32 %v2314, %v2314
    %v2317 = vsel %vm666, %v2315, 0.0
    %2318 = vadd.xlane.f32.xlu0 %v2317
    %v2319 = vpop.xlane.xlu0 %2318
    %v2320 = vsel %vm670, %v2316, 0.0
    %2321 = vadd.xlane.f32.xlu0 %v2320
    %v2322 = vpop.xlane.xlu0 %2321
    %v2323 = vmul.f32 %v2319, %v674
    %v2324 = vmul.f32 %v2322, %v674
    %v2325 = vadd.f32 %v2323, 1e-06
    %v2326 = vadd.f32 %v2324, 1e-06
    %v2327 = vrsqrt.pop %v2325
    %v2328 = vrsqrt.pop %v2326
    %v2329 = vmul.f32 %v2313, %v2327
    %v2330 = vmul.f32 %v2314, %v2328
    %v2331 = vlaneseq
    %v2332 = vshrl.u32 %v2331, 7
    %v2333 = vsub.s32 2, %v2332
    %v2334 = vrot.slane %v1660, %v2333
    %v2335 = vmul.f32 %v2329, %v2334
    %v2336 = vmul.f32 %v2330, %v2334
    %v2337 = vlaneseq
    %v2338 = vshrl.u32 %v2337, 7
    %v2339 = vsub.s32 3, %v2338
    %v2340 = vrot.slane %v1660, %v2339
    %v2341 = vadd.f32 %v2335, %v2340
    %v2342 = vadd.f32 %v2336, %v2340
    %v2343 = vpack.c.bf16 %v2342, %v2341
    %v2344 = vlaneseq
    %v2345 = vshrl.u32 %v2344, 7
    %v2346 = vsub.s32 1, %v2345
    %v2347 = vrot.slane %v1662, %v2346
    %v2364 = vunpack.c.l.b16 %v1627
    %v2365 = vunpack.c.l.b16 %v1628
    %v2366 = vunpack.c.l.b16 %v1629
    %v2367 = vunpack.c.l.b16 %v1630
    %v2368 = vunpack.c.l.b16 %v1631
    %v2369 = vunpack.c.l.b16 %v1632
    %v2370 = vunpack.c.l.b16 %v1633
    %v2371 = vunpack.c.l.b16 %v1634
    %v2372 = vunpack.c.l.b16 %v1635
    %v2373 = vunpack.c.l.b16 %v1636
    %v2374 = vunpack.c.l.b16 %v1637
    %v2375 = vunpack.c.l.b16 %v1638
    %v2376 = vunpack.c.l.b16 %v1639
    %v2377 = vunpack.c.l.b16 %v1640
    %v2378 = vunpack.c.l.b16 %v1641
    %v2379 = vunpack.c.l.b16 %v1642
    %v2380 = vpack.c.b16 %v2365, %v2364
    %v2381 = vpack.c.b16 %v2367, %v2366
    %v2382 = vpack.c.b16 %v2369, %v2368
    %v2383 = vpack.c.b16 %v2371, %v2370
    %v2384 = vpack.c.b16 %v2373, %v2372
    %v2385 = vpack.c.b16 %v2375, %v2374
    %v2386 = vpack.c.b16 %v2377, %v2376
    %v2387 = vpack.c.b16 %v2379, %v2378
    %v2389 = vsel %vm666, %v2343, 0
    %v2392 = vsel %vm666, %v2380, 0
    %v2395 = vsel %vm666, %v2381, 0
    %v2398 = vsel %vm666, %v2382, 0
    %v2401 = vsel %vm666, %v2383, 0
    %v2404 = vsel %vm666, %v2384, 0
    %v2407 = vsel %vm666, %v2385, 0
    %v2410 = vsel %vm666, %v2386, 0
    %v2413 = vsel %vm666, %v2387, 0
    %2415 = vmatprep.subr.bf16.mxu0 0
    %2416 = vmatpush1.bf16.xpose.msra.mxu0 %v2413
    %2417 = vmatprep.subr.bf16.mxu0 0
    %2418 = vmatpush1.bf16.xpose.msra.mxu0 %v2410
    %2419 = vmatprep.subr.bf16.mxu0 0
    %2420 = vmatpush1.bf16.xpose.msra.mxu0 %v2407
    %2421 = vmatprep.subr.bf16.mxu0 0
    %2422 = vmatpush1.bf16.xpose.msra.mxu0 %v2404
    %2423 = vmatprep.subr.bf16.mxu0 0
    %2424 = vmatpush1.bf16.xpose.msra.mxu0 %v2401
    %2425 = vmatprep.subr.bf16.mxu0 0
    %2426 = vmatpush1.bf16.xpose.msra.mxu0 %v2398
    %2427 = vmatprep.subr.bf16.mxu0 0
    %2428 = vmatpush1.bf16.xpose.msra.mxu0 %v2395
    %2429 = vmatprep.subr.bf16.mxu0 0
    %2430 = vmatpush1.bf16.xpose.msra.mxu0 %v2392
    %2431 = vmatprep.subr.bf16.mxu0 0
    %2432 = vmatpush2.bf16.xpose.msra.mxu0 0
    %2433 = vmatprep.subr.bf16.mxu0 0
    %2434 = vmatpush2.bf16.xpose.msra.mxu0 0
    %2435 = vmatprep.subr.bf16.mxu0 0
    %2436 = vmatpush2.bf16.xpose.msra.mxu0 0
    %2437 = vmatprep.subr.bf16.mxu0 0
    %2438 = vmatpush2.bf16.xpose.msra.mxu0 0
    %2439 = vmatprep.subr.bf16.mxu0 0
    %2440 = vmatpush2.bf16.xpose.msra.mxu0 0
    %2441 = vmatprep.subr.bf16.mxu0 0
    %2442 = vmatpush2.bf16.xpose.msra.mxu0 0
    %2443 = vmatprep.subr.bf16.mxu0 0
    %2444 = vmatpush2.bf16.xpose.msra.mxu0 0
    %2445 = vmatprep.subr.bf16.mxu0 0
    %2446 = vmatpush2.bf16.xpose.msra.mxu0 0
    %2447 = vmatprep.mubr.bf16.mxu0 0
    %2448 = vmatmul.mubr.bf16.gmra.mxu0 %v2389
    %v2449 = vpop.f32.mrf.mxu0
    %v2450 = vadd.f32 %v2347, %v2449
    %v2451 = vpop.f32.mrf.mxu0
    %v2452 = vpop.f32.mrf.mxu0
    %v2453 = vadd.f32 %v2347, %v2452
    %v2454 = vpop.f32.mrf.mxu0
    %2455 = vdwg.mxu0
    %v2456 = vmul.f32 %v2450, %v2450
    %v2457 = vmul.f32 %v2453, %v2453
    %v2458 = vmul.f32 %v2450, %v2456
    %v2459 = vmul.f32 %v2453, %v2457
    %v2460 = vmul.f32 %v2458, 0.044715
    %v2461 = vmul.f32 %v2459, 0.044715
    %v2462 = vadd.f32 %v2450, %v2460
    %v2463 = vadd.f32 %v2453, %v2461
    %v2464 = vmul.f32 %v2462, 0.7978846
    %v2465 = vmul.f32 %v2463, 0.7978846
    %v2466 = vtanh.pop %v2464
    %v2467 = vtanh.pop %v2465
    %v2468 = vadd.f32 %v2466, 1.0
    %v2469 = vadd.f32 %v2467, 1.0
    %v2470 = vmul.f32 %v2468, 0.5
    %v2471 = vmul.f32 %v2469, 0.5
    %v2472 = vmul.f32 %v2450, %v2470
    %v2473 = vmul.f32 %v2453, %v2471
    %v2474 = vpack.c.bf16 %v2473, %v2472
    %v2491 = vunpack.c.l.b16 %v1643
    %v2492 = vunpack.c.l.b16 %v1644
    %v2493 = vunpack.c.l.b16 %v1645
    %v2494 = vunpack.c.l.b16 %v1646
    %v2495 = vunpack.c.l.b16 %v1647
    %v2496 = vunpack.c.l.b16 %v1648
    %v2497 = vunpack.c.l.b16 %v1649
    %v2498 = vunpack.c.l.b16 %v1650
    %v2499 = vunpack.c.l.b16 %v1651
    %v2500 = vunpack.c.l.b16 %v1652
    %v2501 = vunpack.c.l.b16 %v1653
    %v2502 = vunpack.c.l.b16 %v1654
    %v2503 = vunpack.c.l.b16 %v1655
    %v2504 = vunpack.c.l.b16 %v1656
    %v2505 = vunpack.c.l.b16 %v1657
    %v2506 = vunpack.c.l.b16 %v1658
    %v2507 = vpack.c.b16 %v2492, %v2491
    %v2508 = vpack.c.b16 %v2494, %v2493
    %v2509 = vpack.c.b16 %v2496, %v2495
    %v2510 = vpack.c.b16 %v2498, %v2497
    %v2511 = vpack.c.b16 %v2500, %v2499
    %v2512 = vpack.c.b16 %v2502, %v2501
    %v2513 = vpack.c.b16 %v2504, %v2503
    %v2514 = vpack.c.b16 %v2506, %v2505
    %2523 = vmatprep.subr.bf16.mxu0 0
    %2524 = vmatpush1.bf16.msra.mxu0 %v2514
    %2525 = vmatprep.subr.bf16.mxu0 0
    %2526 = vmatpush1.bf16.msra.mxu0 %v2513
    %2527 = vmatprep.subr.bf16.mxu0 0
    %2528 = vmatpush1.bf16.msra.mxu0 %v2512
    %2529 = vmatprep.subr.bf16.mxu0 0
    %2530 = vmatpush1.bf16.msra.mxu0 %v2511
    %2531 = vmatprep.subr.bf16.mxu0 0
    %2532 = vmatpush1.bf16.msra.mxu0 %v2510
    %2533 = vmatprep.subr.bf16.mxu0 0
    %2534 = vmatpush1.bf16.msra.mxu0 %v2509
    %2535 = vmatprep.subr.bf16.mxu0 0
    %2536 = vmatpush1.bf16.msra.mxu0 %v2508
    %2537 = vmatprep.subr.bf16.mxu0 0
    %2538 = vmatpush1.bf16.msra.mxu0 %v2507
    %2539 = vmatprep.subr.bf16.mxu0 0
    %2540 = vmatpush2.bf16.msra.mxu0 0
    %2541 = vmatprep.subr.bf16.mxu0 0
    %2542 = vmatpush2.bf16.msra.mxu0 0
    %2543 = vmatprep.subr.bf16.mxu0 0
    %2544 = vmatpush2.bf16.msra.mxu0 0
    %2545 = vmatprep.subr.bf16.mxu0 0
    %2546 = vmatpush2.bf16.msra.mxu0 0
    %2547 = vmatprep.subr.bf16.mxu0 0
    %2548 = vmatpush2.bf16.msra.mxu0 0
    %2549 = vmatprep.subr.bf16.mxu0 0
    %2550 = vmatpush2.bf16.msra.mxu0 0
    %2551 = vmatprep.subr.bf16.mxu0 0
    %2552 = vmatpush2.bf16.msra.mxu0 0
    %2553 = vmatprep.subr.bf16.mxu0 0
    %2554 = vmatpush2.bf16.msra.mxu0 0
    %2555 = vmatprep.mubr.bf16.mxu0 0
    %2556 = vmatmul.mubr.bf16.gmra.mxu0 %v2474
    %v2557 = vpop.f32.mrf.mxu0
    %v2558 = vadd.f32 0.0, %v2557
    %v2559 = vpop.f32.mrf.mxu0
    %v2560 = vpop.f32.mrf.mxu0
    %v2561 = vadd.f32 0.0, %v2560
    %v2562 = vpop.f32.mrf.mxu0
    %2563 = vdwg.mxu0
    %v2564 = vadd.f32 %v2303, %v2558
    %v2565 = vadd.f32 %v2304, %v2561
    %v2566 = vlaneseq
    %v2567 = vshrl.u32 %v2566, 7
    %v2568 = vsub.s32 5, %v2567
    %v2569 = vrot.slane %v1660, %v2568
    %v2570 = vadd.f32 %v2564, %v2569
    %v2571 = vadd.f32 %v2565, %v2569
    %v2572 = vld [vmem:[%s2 + $0xa] sm:$0x1]
    %v2573 = vld [vmem:[%s2 + $0xb] sm:$0x1]
    %v2574 = vsel %vm666, %v2570, 0.0
    %2575 = vadd.xlane.f32.xlu0 %v2574
    %v2576 = vpop.xlane.xlu0 %2575
    %v2577 = vsel %vm670, %v2571, 0.0
    %2578 = vadd.xlane.f32.xlu0 %v2577
    %v2579 = vpop.xlane.xlu0 %2578
    %v2580 = vmul.f32 %v2576, %v674
    %v2581 = vmul.f32 %v2579, %v674
    %v2582 = vsub.f32 %v2570, %v2580
    %v2583 = vsub.f32 %v2571, %v2581
    %v2584 = vmul.f32 %v2582, %v2582
    %v2585 = vmul.f32 %v2583, %v2583
    %v2586 = vsel %vm666, %v2584, 0.0
    %2587 = vadd.xlane.f32.xlu0 %v2586
    %v2588 = vpop.xlane.xlu0 %2587
    %v2589 = vsel %vm670, %v2585, 0.0
    %2590 = vadd.xlane.f32.xlu0 %v2589
    %v2591 = vpop.xlane.xlu0 %2590
    %v2592 = vmul.f32 %v2588, %v674
    %v2593 = vmul.f32 %v2591, %v674
    %v2594 = vadd.f32 %v2592, 1e-06
    %v2595 = vadd.f32 %v2593, 1e-06
    %v2596 = vrsqrt.pop %v2594
    %v2597 = vrsqrt.pop %v2595
    %v2598 = vmul.f32 %v2582, %v2596
    %v2599 = vmul.f32 %v2583, %v2597
    %v2600 = vlaneseq
    %v2601 = vshrl.u32 %v2600, 7
    %v2602 = vsub.s32 0, %v2601
    %v2603 = vrot.slane %v2572, %v2602
    %v2604 = vmul.f32 %v2598, %v2603
    %v2605 = vmul.f32 %v2599, %v2603
    %v2606 = vlaneseq
    %v2607 = vshrl.u32 %v2606, 7
    %v2608 = vsub.s32 0, %v2607
    %v2609 = vrot.slane %v2573, %v2608
    %v2610 = vadd.f32 %v2604, %v2609
    %v2611 = vadd.f32 %v2605, %v2609
    %2612 = vst.msk [vmem:[#allocation3] sm:$0xff] %vm666, %v2610
    %2613 = vst.msk [vmem:[#allocation3 + $0x8] sm:$0x3] %vm670, %v2611
    // Predicated region
    $region26: #{tpu_custom_call.1} parent=1 // pred_check
      _
    $region27: #{tpu_custom_call.1} parent=1 // pred_check_branch
      %2615 = sbr.rel (0) target = $region29
    $region28: #{tpu_custom_call.1} parent=1 // pred_region
      %s2617 = ssub.s32 256, 256
      %2618 = vsyncadd [#allocation4], %s2617
      %s2619 = sshll.u32 [#allocation3], 4
      %s2620 = int_to_ptr.vmem [resolvable:$true] %s2619
      %2625 = dma.vmem_to_hbm [thread:$0]  %s2620, 256, %s6, [#allocation4], 128, 128, 8
    $region29: #{tpu_custom_call.1} parent=1 // pred_fallthru
      _
    // Predicated region
    $region30: #{tpu_custom_call.1} parent=1 // pred_check
      _
    $region31: #{tpu_custom_call.1} parent=1 // pred_check_branch
      %2627 = sbr.rel (0) target = $region33
    $region32: #{tpu_custom_call.1} parent=1 // pred_region
      %2628 = dma.done [#allocation4], 256
    $region33: #{tpu_custom_call.1} parent=1 // pred_fallthru
      _
    %2629 = vsyncpa [#allocation4], 1

</llo_original>
